<compile_context>
chip_gen: v7x
topology: tpu7x:2x2x1
jax: 0.10.0
libtpu: 0.0.40
codegen_flags: <defaults>
</compile_context>

<pallas_src>
import jax
import jax.numpy as jnp
from jax.experimental import pallas as pl
from jax.experimental.pallas import tpu as pltpu

K_IN = 28 * 28          # 784
K_PAD = 896             # 7 * 128, lane-aligned contraction dim for fc1
H1, H2 = 1024, 256
N_OUT = 10
N_PAD = 128             # lane-dense output slab width


def _mlp_kernel(x_ref, w1_ref, b1_ref, w2_ref, b2_ref, w3_ref, b3_ref, o_ref):
    # fc1 + relu  (bf16 operands, f32 accumulation)
    h1 = jnp.dot(x_ref[...], w1_ref[...], preferred_element_type=jnp.float32)
    h1 = jnp.maximum(h1 + b1_ref[...], 0.0)
    # fc2 + relu
    h2 = jnp.dot(h1.astype(jnp.bfloat16), w2_ref[...],
                 preferred_element_type=jnp.float32)
    h2 = jnp.maximum(h2 + b2_ref[...], 0.0)
    # fc3: logits into a lane-dense 128-wide slab (padded cols stay ~0)
    out = jnp.dot(h2.astype(jnp.bfloat16), w3_ref[...],
                  preferred_element_type=jnp.float32)
    o_ref[...] = (out + b3_ref[...]).astype(o_ref.dtype)   # bf16 writeback


def _round_up(n, m):
    return ((n + m - 1) // m) * m


def _pick_batch_tile(B, max_tile):
    """Adaptive batch tile: 16-row minimum (bf16 sublane packing), capped at
    max_tile, and kept small enough that B >= 512 always yields >= 2 grid
    steps (so the parallel grid axis can use both v7x TensorCores)."""
    tile = min(max_tile, _round_up(max(B, 1), 16))
    if B >= 512:
        half = max(256, (_round_up(B, 256) // 2) // 256 * 256)
        tile = min(tile, half)
    return tile


def nnnet_forward(x, params, *, max_batch_tile=None):
    """x: any shape flattening to (B, 784) (e.g. NCHW (B,1,28,28)). Returns (B, 10) f32."""
    w1, b1, w2, b2, w3, b3 = params

    # ---- layout plumbing (single pass over x) ------------------------------
    x_bf = x.reshape(-1, K_IN).astype(jnp.bfloat16)   # direct cast, no f32 hop
    B = x_bf.shape[0]
    if max_batch_tile is None:
        max_batch_tile = 1024 if B >= 8192 else 512
    tile = _pick_batch_tile(B, max_batch_tile)
    Bp = _round_up(B, tile)
    xp = jnp.pad(x_bf, ((0, Bp - B), (0, K_PAD - K_IN)))   # fused batch+K pad

    w1p = jnp.pad(w1.astype(jnp.bfloat16), ((0, K_PAD - K_IN), (0, 0)))
    w2p = w2.astype(jnp.bfloat16)
    w3p = jnp.pad(w3.astype(jnp.bfloat16), ((0, 0), (0, N_PAD - N_OUT)))
    b1f = b1.astype(jnp.float32)
    b2f = b2.astype(jnp.float32)
    b3p = jnp.pad(b3.astype(jnp.float32), ((0, 0), (0, N_PAD - N_OUT)))

    grid = (Bp // tile,)

    out = pl.pallas_call(
        _mlp_kernel,
        out_shape=jax.ShapeDtypeStruct((Bp, N_PAD), jnp.bfloat16),
        grid_spec=pltpu.PrefetchScalarGridSpec(
            num_scalar_prefetch=0,
            grid=grid,
            in_specs=[
                pl.BlockSpec((tile, K_PAD), lambda i: (i, 0)),   # x tile (pipelined)
                pl.BlockSpec((K_PAD, H1), lambda i: (0, 0)),     # w1 (VMEM-resident)
                pl.BlockSpec((1, H1), lambda i: (0, 0)),         # b1
                pl.BlockSpec((H1, H2), lambda i: (0, 0)),        # w2
                pl.BlockSpec((1, H2), lambda i: (0, 0)),         # b2
                pl.BlockSpec((H2, N_PAD), lambda i: (0, 0)),     # w3 (padded cols)
                pl.BlockSpec((1, N_PAD), lambda i: (0, 0)),      # b3 (padded cols)
            ],
            out_specs=pl.BlockSpec((tile, N_PAD), lambda i: (i, 0)),
        ),
        compiler_params=pltpu.CompilerParams(
            dimension_semantics=("parallel",),      # megacore sharding on v7x
            vmem_limit_bytes=32 << 20,
        ),
    )(xp, w1p, b1f, w2p, b2f, w3p, b3p)

    return out[:B, :N_OUT].astype(jnp.float32)


def init_params(key):
    """Mimics torch.nn.Linear default init (U[-1/sqrt(fan_in), +1/sqrt(fan_in)]).
    Weights stored as (in_features, out_features); biases as (1, out_features)."""
    dims = [(K_IN, H1), (H1, H2), (H2, N_OUT)]
    params = []
    for (fan_in, fan_out) in dims:
        key, kw, kb = jax.random.split(key, 3)
        bound = 1.0 / (fan_in ** 0.5)
        w = jax.random.uniform(kw, (fan_in, fan_out), jnp.float32, -bound, bound)
        b = jax.random.uniform(kb, (1, fan_out), jnp.float32, -bound, bound)
        params.extend([w, b])
    return tuple(params)


def _reference_forward(x, params):
    """Plain-JAX f32 reference mirroring the PyTorch forward."""
    w1, b1, w2, b2, w3, b3 = params
    xf = x.reshape(-1, K_IN).astype(jnp.float32)
    h = jnp.maximum(xf @ w1 + b1, 0.0)
    h = jnp.maximum(h @ w2 + b2, 0.0)
    return h @ w3 + b3


def _check(x, params):
    logits = jax.block_until_ready(nnnet_forward(x, params))
    ref = _reference_forward(x, params)
    assert logits.shape == ref.shape, (logits.shape, ref.shape)
    # bf16 matmul operands / bf16 writeback with f32 accumulation: relaxed tol.
    assert jnp.allclose(logits, ref, atol=5e-2, rtol=5e-2), (
        float(jnp.max(jnp.abs(logits - ref))))


if __name__ == "__main__":
    key = jax.random.PRNGKey(0)
    kx, kx2, kp = jax.random.split(key, 3)
    params = init_params(kp)

    # Small batch of NCHW "images" (B=8, C=1, H=W=28), per the module's view(-1, 784).
    # Adaptive tiling: 16-row tile, single grid step.
    x_small = jax.random.normal(kx, (8, 1, 28, 28), jnp.float32)
    _check(x_small, params)

    # Larger, non-tile-multiple batch: exercises multi-step grid, the megacore
    # tile cap (B >= 512 -> >= 2 grid steps), and the batch-padding slice.
    x_big = jax.random.normal(kx2, (640, 1, 28, 28), jnp.float32)
    _check(x_big, params)

    print("KERNEL_OK")
</pallas_src>

<mosaic_0001>
module attributes {stable_mosaic.version = 11 : i64} {
  func.func @_mlp_kernel(%arg0: i32, %arg1: memref<16x896xbf16, #tpu.memory_space<vmem>>, %arg2: memref<896x1024xbf16, #tpu.memory_space<vmem>>, %arg3: memref<1x1024xf32, #tpu.memory_space<vmem>>, %arg4: memref<1024x256xbf16, #tpu.memory_space<vmem>>, %arg5: memref<1x256xf32, #tpu.memory_space<vmem>>, %arg6: memref<256x128xbf16, #tpu.memory_space<vmem>>, %arg7: memref<1x128xf32, #tpu.memory_space<vmem>>, %arg8: memref<16x128xbf16, #tpu.memory_space<vmem>>) attributes {dimension_semantics = [#tpu.dimension_semantics<parallel>], iteration_bounds = array<i64: 1>, scalar_prefetch = 0 : i64, scratch_operands = 0 : i64, tpu.core_type = #tpu.core_type<tc>, window_params = [{transform_indices = @transform_0, window_bounds = array<i64: 16, 896>}, {pipeline_mode = #tpu.pipeline_mode<synchronous>, transform_indices = @transform_1, window_bounds = array<i64: 896, 1024>}, {pipeline_mode = #tpu.pipeline_mode<synchronous>, transform_indices = @transform_2, window_bounds = array<i64: 1, 1024>}, {pipeline_mode = #tpu.pipeline_mode<synchronous>, transform_indices = @transform_3, window_bounds = array<i64: 1024, 256>}, {pipeline_mode = #tpu.pipeline_mode<synchronous>, transform_indices = @transform_4, window_bounds = array<i64: 1, 256>}, {pipeline_mode = #tpu.pipeline_mode<synchronous>, transform_indices = @transform_5, window_bounds = array<i64: 256, 128>}, {pipeline_mode = #tpu.pipeline_mode<synchronous>, transform_indices = @transform_6, window_bounds = array<i64: 1, 128>}, {transform_indices = @transform_7, window_bounds = array<i64: 16, 128>}]} {
    %c0 = arith.constant 0 : index
    %c0_0 = arith.constant 0 : index
    %0 = vector.load %arg1[%c0, %c0_0] : memref<16x896xbf16, #tpu.memory_space<vmem>>, vector<16x896xbf16>
    %c0_1 = arith.constant 0 : index
    %c0_2 = arith.constant 0 : index
    %1 = vector.load %arg2[%c0_1, %c0_2] : memref<896x1024xbf16, #tpu.memory_space<vmem>>, vector<896x1024xbf16>
    %cst = arith.constant dense<0.000000e+00> : vector<16x1024xf32>
    %2 = tpu.matmul %0, %1, %cst {dimension_numbers = #tpu.dot_dimension_numbers<[1], [0], [0], [1], [0, 0, 1, 1], [], []>} : vector<16x896xbf16>, vector<896x1024xbf16>, vector<16x1024xf32> -> vector<16x1024xf32>
    %c0_3 = arith.constant 0 : index
    %c0_4 = arith.constant 0 : index
    %3 = vector.load %arg3[%c0_3, %c0_4] : memref<1x1024xf32, #tpu.memory_space<vmem>>, vector<1x1024xf32>
    %4 = vector.broadcast %3 : vector<1x1024xf32> to vector<16x1024xf32>
    %5 = arith.addf %2, %4 : vector<16x1024xf32>
    %cst_5 = arith.constant 0.000000e+00 : f32
    %6 = vector.broadcast %cst_5 : f32 to vector<16x1024xf32>
    %7 = arith.maximumf %5, %6 : vector<16x1024xf32>
    %8 = arith.truncf %7 : vector<16x1024xf32> to vector<16x1024xbf16>
    %c0_6 = arith.constant 0 : index
    %c0_7 = arith.constant 0 : index
    %9 = vector.load %arg4[%c0_6, %c0_7] : memref<1024x256xbf16, #tpu.memory_space<vmem>>, vector<1024x256xbf16>
    %cst_8 = arith.constant dense<0.000000e+00> : vector<16x256xf32>
    %10 = tpu.matmul %8, %9, %cst_8 {dimension_numbers = #tpu.dot_dimension_numbers<[1], [0], [0], [1], [0, 0, 1, 1], [], []>} : vector<16x1024xbf16>, vector<1024x256xbf16>, vector<16x256xf32> -> vector<16x256xf32>
    %c0_9 = arith.constant 0 : index
    %c0_10 = arith.constant 0 : index
    %11 = vector.load %arg5[%c0_9, %c0_10] : memref<1x256xf32, #tpu.memory_space<vmem>>, vector<1x256xf32>
    %12 = vector.broadcast %11 : vector<1x256xf32> to vector<16x256xf32>
    %13 = arith.addf %10, %12 : vector<16x256xf32>
    %cst_11 = arith.constant 0.000000e+00 : f32
    %14 = vector.broadcast %cst_11 : f32 to vector<16x256xf32>
    %15 = arith.maximumf %13, %14 : vector<16x256xf32>
    %16 = arith.truncf %15 : vector<16x256xf32> to vector<16x256xbf16>
    %c0_12 = arith.constant 0 : index
    %c0_13 = arith.constant 0 : index
    %17 = vector.load %arg6[%c0_12, %c0_13] : memref<256x128xbf16, #tpu.memory_space<vmem>>, vector<256x128xbf16>
    %cst_14 = arith.constant dense<0.000000e+00> : vector<16x128xf32>
    %18 = tpu.matmul %16, %17, %cst_14 {dimension_numbers = #tpu.dot_dimension_numbers<[1], [0], [0], [1], [0, 0, 1, 1], [], []>} : vector<16x256xbf16>, vector<256x128xbf16>, vector<16x128xf32> -> vector<16x128xf32>
    %c0_15 = arith.constant 0 : index
    %c0_16 = arith.constant 0 : index
    %19 = vector.load %arg7[%c0_15, %c0_16] : memref<1x128xf32, #tpu.memory_space<vmem>>, vector<1x128xf32>
    %20 = vector.broadcast %19 : vector<1x128xf32> to vector<16x128xf32>
    %21 = arith.addf %18, %20 : vector<16x128xf32>
    %22 = arith.truncf %21 : vector<16x128xf32> to vector<16x128xbf16>
    %c0_17 = arith.constant 0 : index
    %c0_18 = arith.constant 0 : index
    %23 = vector.load %arg8[%c0_17, %c0_18] : memref<16x128xbf16, #tpu.memory_space<vmem>>, vector<16x128xbf16>
    tpu.vector_store %arg8[%c0_17, %c0_18], %22 {strides = array<i32>} : memref<16x128xbf16, #tpu.memory_space<vmem>>, vector<16x128xbf16>,
    return
  }
  func.func @transform_0(%arg0: i32) -> (i32, i32) {
    %c0_i32 = arith.constant 0 : i32
    %c0_i32_0 = arith.constant 0 : i32
    return %arg0, %c0_i32 : i32, i32
  }
  func.func @transform_1(%arg0: i32) -> (i32, i32) {
    %c0_i32 = arith.constant 0 : i32
    %c0_i32_0 = arith.constant 0 : i32
    %c0_i32_1 = arith.constant 0 : i32
    return %c0_i32, %c0_i32_0 : i32, i32
  }
  func.func @transform_2(%arg0: i32) -> (i32, i32) {
    %c0_i32 = arith.constant 0 : i32
    %c0_i32_0 = arith.constant 0 : i32
    %c0_i32_1 = arith.constant 0 : i32
    return %c0_i32, %c0_i32_0 : i32, i32
  }
  func.func @transform_3(%arg0: i32) -> (i32, i32) {
    %c0_i32 = arith.constant 0 : i32
    %c0_i32_0 = arith.constant 0 : i32
    %c0_i32_1 = arith.constant 0 : i32
    return %c0_i32, %c0_i32_0 : i32, i32
  }
  func.func @transform_4(%arg0: i32) -> (i32, i32) {
    %c0_i32 = arith.constant 0 : i32
    %c0_i32_0 = arith.constant 0 : i32
    %c0_i32_1 = arith.constant 0 : i32
    return %c0_i32, %c0_i32_0 : i32, i32
  }
  func.func @transform_5(%arg0: i32) -> (i32, i32) {
    %c0_i32 = arith.constant 0 : i32
    %c0_i32_0 = arith.constant 0 : i32
    %c0_i32_1 = arith.constant 0 : i32
    return %c0_i32, %c0_i32_0 : i32, i32
  }
  func.func @transform_6(%arg0: i32) -> (i32, i32) {
    %c0_i32 = arith.constant 0 : i32
    %c0_i32_0 = arith.constant 0 : i32
    %c0_i32_1 = arith.constant 0 : i32
    return %c0_i32, %c0_i32_0 : i32, i32
  }
  func.func @transform_7(%arg0: i32) -> (i32, i32) {
    %c0_i32 = arith.constant 0 : i32
    %c0_i32_0 = arith.constant 0 : i32
    return %arg0, %c0_i32 : i32, i32
  }
}

</mosaic_0001>

<llo_original>
// kernel: tpu_custom_call.1
$region0: #{tpu_custom_call.1}
  #allocation0 [shape = 'u32[]', space=smem, size = 0x4, offset = 0x4, fixed_abs, tag = 'smem constant byte address 0x4 - core index']
  #allocation1 [shape = 'u32[144,128]{1,0:T(1,128)}', space=vmem, size = 0x12000, scoped, tag = 'internal scratch']
  %s0 = inlined_call_operand.hbm [shape: bf16[16,896], index: 0, kind: input, shape index: {}]
  %s1 = inlined_call_operand.hbm [shape: bf16[896,1024], index: 1, kind: input, shape index: {}]
  %s2 = inlined_call_operand.hbm [shape: f32[1,1024], index: 2, kind: input, shape index: {}]
  %s3 = inlined_call_operand.hbm [shape: bf16[1024,256], index: 3, kind: input, shape index: {}]
  %s4 = inlined_call_operand.hbm [shape: f32[1,256], index: 4, kind: input, shape index: {}]
  %s5 = inlined_call_operand.hbm [shape: bf16[256,128], index: 5, kind: input, shape index: {}]
  %s6 = inlined_call_operand.hbm [shape: f32[1,128], index: 6, kind: input, shape index: {}]
  %s7 = inlined_call_operand.hbm [shape: bf16[16,128], index: 7, kind: output, shape index: {}]
  %s8 = sld [smem:[#allocation0]]
  $region66: #{tpu_custom_call.1} parent=0
    _
  %s10 = ssub.s32 1, %s8
  %s11 = scalar_select 0, %s10, %s8
  $region1: #{tpu_custom_call.1} parent=0
    #allocation2 [shape = 'u8[28672]{0}', space=vmem, size = 0x7000, scoped, tag = 'input window, operand 0, single buffered']
    #allocation3 [shape = 's32[1]{0}', space=sflag, size = 0x4, scoped, tag = 'scoped memory for tpu_custom_call.1']
    #allocation4 [shape = 's32[1]{0}', space=sflag, size = 0x4, scoped, tag = 'scoped memory for tpu_custom_call.1']
    #allocation5 [shape = 'u8[1835008]{0}', space=vmem, size = 0x1c0000, scoped, tag = 'input window, operand 1, single buffered']
    #allocation6 [shape = 's32[1]{0}', space=sflag, size = 0x4, scoped, tag = 'scoped memory for tpu_custom_call.1']
    #allocation7 [shape = 'u8[4096]{0}', space=vmem, size = 0x1000, scoped, tag = 'input window, operand 2, single buffered']
    #allocation8 [shape = 'u8[524288]{0}', space=vmem, size = 0x80000, scoped, tag = 'input window, operand 3, single buffered']
    #allocation9 [shape = 's32[1]{0}', space=sflag, size = 0x4, scoped, tag = 'scoped memory for tpu_custom_call.1']
    #allocation10 [shape = 'u8[1024]{0}', space=vmem, size = 0x400, scoped, tag = 'input window, operand 4, single buffered']
    #allocation11 [shape = 'u8[65536]{0}', space=vmem, size = 0x10000, scoped, tag = 'input window, operand 5, single buffered']
    #allocation12 [shape = 's32[1]{0}', space=sflag, size = 0x4, scoped, tag = 'scoped memory for tpu_custom_call.1']
    #allocation13 [shape = 'u8[512]{0}', space=vmem, size = 0x400, scoped, tag = 'input window, operand 6, single buffered']
    #allocation14 [shape = 'u8[4096]{0}', space=vmem, size = 0x1000, scoped, tag = 'output window, operand 0, single buffered']
    %12 = vsyncpa [#allocation3], 0
    %13 = vsyncpa [#allocation6], 0
    %14 = vsyncpa [#allocation9], 0
    %15 = vsyncpa [#allocation12], 0
    %16 = vsyncpa [#allocation4], 0
    // Predicated region
    $region2: #{tpu_custom_call.1} parent=1 // pred_check
      _
    $region3: #{tpu_custom_call.1} parent=1 // pred_check_branch
      %18 = sbr.rel (0) target = $region5
    $region4: #{tpu_custom_call.1} parent=1 // pred_region
      %s20 = ssub.s32 896, 896
      %21 = vsyncadd [#allocation3], %s20
      %s22 = sshll.u32 [#allocation2], 4
      %s23 = int_to_ptr.vmem [resolvable:$true] %s22
      %28 = dma.hbm_to_vmem [thread:$0]  %s0, 896, %s23, [#allocation3], 448, 448, 28
    $region5: #{tpu_custom_call.1} parent=1 // pred_fallthru
      _
    // Predicated region
    $region6: #{tpu_custom_call.1} parent=1 // pred_check
      _
    $region7: #{tpu_custom_call.1} parent=1 // pred_check_branch
      %30 = sbr.rel (0) target = $region9
    $region8: #{tpu_custom_call.1} parent=1 // pred_region
      %s32 = ssub.s32 57344, 57344
      %33 = vsyncadd [#allocation6], %s32
      %s34 = sshll.u32 [#allocation5], 4
      %s35 = int_to_ptr.vmem [resolvable:$true] %s34
      %40 = dma.hbm_to_vmem [thread:$0]  %s1, 57344, %s35, [#allocation6], 512, 512, 32
    $region9: #{tpu_custom_call.1} parent=1 // pred_fallthru
      _
    // Predicated region
    $region10: #{tpu_custom_call.1} parent=1 // pred_check
      _
    $region11: #{tpu_custom_call.1} parent=1 // pred_check_branch
      %42 = sbr.rel (0) target = $region13
    $region12: #{tpu_custom_call.1} parent=1 // pred_region
      %s44 = ssub.s32 128, 128
      %45 = vsyncadd [#allocation6], %s44
      %s47 = sshll.u32 [#allocation7], 4
      %s48 = int_to_ptr.vmem [resolvable:$true] %s47
      %50 = dma.hbm_to_vmem [thread:$0]  %s2, 128, %s48, [#allocation6]
    $region13: #{tpu_custom_call.1} parent=1 // pred_fallthru
      _
    // Predicated region
    $region14: #{tpu_custom_call.1} parent=1 // pred_check
      _
    $region15: #{tpu_custom_call.1} parent=1 // pred_check_branch
      %52 = sbr.rel (0) target = $region17
    $region16: #{tpu_custom_call.1} parent=1 // pred_region
      %s54 = ssub.s32 16384, 16384
      %55 = vsyncadd [#allocation9], %s54
      %s56 = sshll.u32 [#allocation8], 4
      %s57 = int_to_ptr.vmem [resolvable:$true] %s56
      %62 = dma.hbm_to_vmem [thread:$0]  %s3, 16384, %s57, [#allocation9], 128, 128, 8
    $region17: #{tpu_custom_call.1} parent=1 // pred_fallthru
      _
    // Predicated region
    $region18: #{tpu_custom_call.1} parent=1 // pred_check
      _
    $region19: #{tpu_custom_call.1} parent=1 // pred_check_branch
      %64 = sbr.rel (0) target = $region21
    $region20: #{tpu_custom_call.1} parent=1 // pred_region
      %s66 = ssub.s32 32, 32
      %67 = vsyncadd [#allocation9], %s66
      %s69 = sshll.u32 [#allocation10], 4
      %s70 = int_to_ptr.vmem [resolvable:$true] %s69
      %72 = dma.hbm_to_vmem [thread:$0]  %s4, 32, %s70, [#allocation9]
    $region21: #{tpu_custom_call.1} parent=1 // pred_fallthru
      _
    // Predicated region
    $region22: #{tpu_custom_call.1} parent=1 // pred_check
      _
    $region23: #{tpu_custom_call.1} parent=1 // pred_check_branch
      %74 = sbr.rel (0) target = $region25
    $region24: #{tpu_custom_call.1} parent=1 // pred_region
      %s76 = ssub.s32 2048, 2048
      %77 = vsyncadd [#allocation12], %s76
      %s78 = sshll.u32 [#allocation11], 4
      %s79 = int_to_ptr.vmem [resolvable:$true] %s78
      %84 = dma.hbm_to_vmem [thread:$0]  %s5, 2048, %s79, [#allocation12], 64, 64, 4
    $region25: #{tpu_custom_call.1} parent=1 // pred_fallthru
      _
    // Predicated region
    $region26: #{tpu_custom_call.1} parent=1 // pred_check
      _
    $region27: #{tpu_custom_call.1} parent=1 // pred_check_branch
      %86 = sbr.rel (0) target = $region29
    $region28: #{tpu_custom_call.1} parent=1 // pred_region
      %s88 = ssub.s32 16, 16
      %89 = vsyncadd [#allocation12], %s88
      %s91 = sshll.u32 [#allocation13], 4
      %s92 = int_to_ptr.vmem [resolvable:$true] %s91
      %94 = dma.hbm_to_vmem [thread:$0]  %s6, 16, %s92, [#allocation12]
    $region29: #{tpu_custom_call.1} parent=1 // pred_fallthru
      _
    // Predicated region
    $region30: #{tpu_custom_call.1} parent=1 // pred_check
      _
    $region31: #{tpu_custom_call.1} parent=1 // pred_check_branch
      %96 = sbr.rel (0) target = $region33
    $region32: #{tpu_custom_call.1} parent=1 // pred_region
      %97 = dma.done [#allocation3], 896
    $region33: #{tpu_custom_call.1} parent=1 // pred_fallthru
      _
    // Predicated region
    $region34: #{tpu_custom_call.1} parent=1 // pred_check
      _
    $region35: #{tpu_custom_call.1} parent=1 // pred_check_branch
      %99 = sbr.rel (0) target = $region37
    $region36: #{tpu_custom_call.1} parent=1 // pred_region
      %100 = dma.done [#allocation6], 57344
    $region37: #{tpu_custom_call.1} parent=1 // pred_fallthru
      _
    // Predicated region
    $region38: #{tpu_custom_call.1} parent=1 // pred_check
      _
    $region39: #{tpu_custom_call.1} parent=1 // pred_check_branch
      %102 = sbr.rel (0) target = $region41
    $region40: #{tpu_custom_call.1} parent=1 // pred_region
      %103 = dma.done [#allocation6], 128
    $region41: #{tpu_custom_call.1} parent=1 // pred_fallthru
      _
    // Predicated region
    $region42: #{tpu_custom_call.1} parent=1 // pred_check
      _
    $region43: #{tpu_custom_call.1} parent=1 // pred_check_branch
      %105 = sbr.rel (0) target = $region45
    $region44: #{tpu_custom_call.1} parent=1 // pred_region
      %106 = dma.done [#allocation9], 16384
    $region45: #{tpu_custom_call.1} parent=1 // pred_fallthru
      _
    // Predicated region
    $region46: #{tpu_custom_call.1} parent=1 // pred_check
      _
    $region47: #{tpu_custom_call.1} parent=1 // pred_check_branch
      %108 = sbr.rel (0) target = $region49
    $region48: #{tpu_custom_call.1} parent=1 // pred_region
      %109 = dma.done [#allocation9], 32
    $region49: #{tpu_custom_call.1} parent=1 // pred_fallthru
      _
    // Predicated region
    $region50: #{tpu_custom_call.1} parent=1 // pred_check
      _
    $region51: #{tpu_custom_call.1} parent=1 // pred_check_branch
      %111 = sbr.rel (0) target = $region53
    $region52: #{tpu_custom_call.1} parent=1 // pred_region
      %112 = dma.done [#allocation12], 2048
    $region53: #{tpu_custom_call.1} parent=1 // pred_fallthru
      _
    // Predicated region
    $region54: #{tpu_custom_call.1} parent=1 // pred_check
      _
    $region55: #{tpu_custom_call.1} parent=1 // pred_check_branch
      %114 = sbr.rel (0) target = $region57
    $region56: #{tpu_custom_call.1} parent=1 // pred_region
      %115 = dma.done [#allocation12], 16
    $region57: #{tpu_custom_call.1} parent=1 // pred_fallthru
      _
    %v117 = vld [vmem:[#allocation2] sm:$0xff]
    %v118 = vld [vmem:[#allocation2 + $0x8] sm:$0xff]
    %v119 = vld [vmem:[#allocation2 + $0x10] sm:$0xff]
    %v120 = vld [vmem:[#allocation2 + $0x18] sm:$0xf]
    %v121 = vld [vmem:[#allocation2 + $0x1c] sm:$0xff]
    %v122 = vld [vmem:[#allocation2 + $0x24] sm:$0xff]
    %v123 = vld [vmem:[#allocation2 + $0x2c] sm:$0xff]
    %v124 = vld [vmem:[#allocation2 + $0x34] sm:$0xf]
    %v125 = vld [vmem:[#allocation5] sm:$0xff]
    %v126 = vld [vmem:[#allocation5 + $0x8] sm:$0xff]
    %v127 = vld [vmem:[#allocation5 + $0x10] sm:$0xff]
    %v128 = vld [vmem:[#allocation5 + $0x18] sm:$0xff]
    %v129 = vld [vmem:[#allocation5 + $0x20] sm:$0xff]
    %v130 = vld [vmem:[#allocation5 + $0x28] sm:$0xff]
    %v131 = vld [vmem:[#allocation5 + $0x30] sm:$0xff]
    %v132 = vld [vmem:[#allocation5 + $0x38] sm:$0xff]
    %v133 = vld [vmem:[#allocation5 + $0x40] sm:$0xff]
    %v134 = vld [vmem:[#allocation5 + $0x48] sm:$0xff]
    %v135 = vld [vmem:[#allocation5 + $0x50] sm:$0xff]
    %v136 = vld [vmem:[#allocation5 + $0x58] sm:$0xff]
    %v137 = vld [vmem:[#allocation5 + $0x60] sm:$0xff]
    %v138 = vld [vmem:[#allocation5 + $0x68] sm:$0xff]
    %v139 = vld [vmem:[#allocation5 + $0x70] sm:$0xff]
    %v140 = vld [vmem:[#allocation5 + $0x78] sm:$0xff]
    %v141 = vld [vmem:[#allocation5 + $0x80] sm:$0xff]
    %v142 = vld [vmem:[#allocation5 + $0x88] sm:$0xff]
    %v143 = vld [vmem:[#allocation5 + $0x90] sm:$0xff]
    %v144 = vld [vmem:[#allocation5 + $0x98] sm:$0xff]
    %v145 = vld [vmem:[#allocation5 + $0xa0] sm:$0xff]
    %v146 = vld [vmem:[#allocation5 + $0xa8] sm:$0xff]
    %v147 = vld [vmem:[#allocation5 + $0xb0] sm:$0xff]
    %v148 = vld [vmem:[#allocation5 + $0xb8] sm:$0xff]
    %v149 = vld [vmem:[#allocation5 + $0xc0] sm:$0xff]
    %v150 = vld [vmem:[#allocation5 + $0xc8] sm:$0xff]
    %v151 = vld [vmem:[#allocation5 + $0xd0] sm:$0xff]
    %v152 = vld [vmem:[#allocation5 + $0xd8] sm:$0xff]
    %v153 = vld [vmem:[#allocation5 + $0xe0] sm:$0xff]
    %v154 = vld [vmem:[#allocation5 + $0xe8] sm:$0xff]
    %v155 = vld [vmem:[#allocation5 + $0xf0] sm:$0xff]
    %v156 = vld [vmem:[#allocation5 + $0xf8] sm:$0xff]
    %v157 = vld [vmem:[#allocation5 + $0x100] sm:$0xff]
    %v158 = vld [vmem:[#allocation5 + $0x108] sm:$0xff]
    %v159 = vld [vmem:[#allocation5 + $0x110] sm:$0xff]
    %v160 = vld [vmem:[#allocation5 + $0x118] sm:$0xff]
    %v161 = vld [vmem:[#allocation5 + $0x120] sm:$0xff]
    %v162 = vld [vmem:[#allocation5 + $0x128] sm:$0xff]
    %v163 = vld [vmem:[#allocation5 + $0x130] sm:$0xff]
    %v164 = vld [vmem:[#allocation5 + $0x138] sm:$0xff]
    %v165 = vld [vmem:[#allocation5 + $0x140] sm:$0xff]
    %v166 = vld [vmem:[#allocation5 + $0x148] sm:$0xff]
    %v167 = vld [vmem:[#allocation5 + $0x150] sm:$0xff]
    %v168 = vld [vmem:[#allocation5 + $0x158] sm:$0xff]
    %v169 = vld [vmem:[#allocation5 + $0x160] sm:$0xff]
    %v170 = vld [vmem:[#allocation5 + $0x168] sm:$0xff]
    %v171 = vld [vmem:[#allocation5 + $0x170] sm:$0xff]
    %v172 = vld [vmem:[#allocation5 + $0x178] sm:$0xff]
    %v173 = vld [vmem:[#allocation5 + $0x180] sm:$0xff]
    %v174 = vld [vmem:[#allocation5 + $0x188] sm:$0xff]
    %v175 = vld [vmem:[#allocation5 + $0x190] sm:$0xff]
    %v176 = vld [vmem:[#allocation5 + $0x198] sm:$0xff]
    %v177 = vld [vmem:[#allocation5 + $0x1a0] sm:$0xff]
    %v178 = vld [vmem:[#allocation5 + $0x1a8] sm:$0xff]
    %v179 = vld [vmem:[#allocation5 + $0x1b0] sm:$0xff]
    %v180 = vld [vmem:[#allocation5 + $0x1b8] sm:$0xff]
    %v181 = vld [vmem:[#allocation5 + $0x1c0] sm:$0xff]
    %v182 = vld [vmem:[#allocation5 + $0x1c8] sm:$0xff]
    %v183 = vld [vmem:[#allocation5 + $0x1d0] sm:$0xff]
    %v184 = vld [vmem:[#allocation5 + $0x1d8] sm:$0xff]
    %v185 = vld [vmem:[#allocation5 + $0x1e0] sm:$0xff]
    %v186 = vld [vmem:[#allocation5 + $0x1e8] sm:$0xff]
    %v187 = vld [vmem:[#allocation5 + $0x1f0] sm:$0xff]
    %v188 = vld [vmem:[#allocation5 + $0x1f8] sm:$0xff]
    %v189 = vld [vmem:[#allocation5 + $0x200] sm:$0xff]
    %v190 = vld [vmem:[#allocation5 + $0x208] sm:$0xff]
    %v191 = vld [vmem:[#allocation5 + $0x210] sm:$0xff]
    %v192 = vld [vmem:[#allocation5 + $0x218] sm:$0xff]
    %v193 = vld [vmem:[#allocation5 + $0x220] sm:$0xff]
    %v194 = vld [vmem:[#allocation5 + $0x228] sm:$0xff]
    %v195 = vld [vmem:[#allocation5 + $0x230] sm:$0xff]
    %v196 = vld [vmem:[#allocation5 + $0x238] sm:$0xff]
    %v197 = vld [vmem:[#allocation5 + $0x240] sm:$0xff]
    %v198 = vld [vmem:[#allocation5 + $0x248] sm:$0xff]
    %v199 = vld [vmem:[#allocation5 + $0x250] sm:$0xff]
    %v200 = vld [vmem:[#allocation5 + $0x258] sm:$0xff]
    %v201 = vld [vmem:[#allocation5 + $0x260] sm:$0xff]
    %v202 = vld [vmem:[#allocation5 + $0x268] sm:$0xff]
    %v203 = vld [vmem:[#allocation5 + $0x270] sm:$0xff]
    %v204 = vld [vmem:[#allocation5 + $0x278] sm:$0xff]
    %v205 = vld [vmem:[#allocation5 + $0x280] sm:$0xff]
    %v206 = vld [vmem:[#allocation5 + $0x288] sm:$0xff]
    %v207 = vld [vmem:[#allocation5 + $0x290] sm:$0xff]
    %v208 = vld [vmem:[#allocation5 + $0x298] sm:$0xff]
    %v209 = vld [vmem:[#allocation5 + $0x2a0] sm:$0xff]
    %v210 = vld [vmem:[#allocation5 + $0x2a8] sm:$0xff]
    %v211 = vld [vmem:[#allocation5 + $0x2b0] sm:$0xff]
    %v212 = vld [vmem:[#allocation5 + $0x2b8] sm:$0xff]
    %v213 = vld [vmem:[#allocation5 + $0x2c0] sm:$0xff]
    %v214 = vld [vmem:[#allocation5 + $0x2c8] sm:$0xff]
    %v215 = vld [vmem:[#allocation5 + $0x2d0] sm:$0xff]
    %v216 = vld [vmem:[#allocation5 + $0x2d8] sm:$0xff]
    %v217 = vld [vmem:[#allocation5 + $0x2e0] sm:$0xff]
    %v218 = vld [vmem:[#allocation5 + $0x2e8] sm:$0xff]
    %v219 = vld [vmem:[#allocation5 + $0x2f0] sm:$0xff]
    %v220 = vld [vmem:[#allocation5 + $0x2f8] sm:$0xff]
    %v221 = vld [vmem:[#allocation5 + $0x300] sm:$0xff]
    %v222 = vld [vmem:[#allocation5 + $0x308] sm:$0xff]
    %v223 = vld [vmem:[#allocation5 + $0x310] sm:$0xff]
    %v224 = vld [vmem:[#allocation5 + $0x318] sm:$0xff]
    %v225 = vld [vmem:[#allocation5 + $0x320] sm:$0xff]
    %v226 = vld [vmem:[#allocation5 + $0x328] sm:$0xff]
    %v227 = vld [vmem:[#allocation5 + $0x330] sm:$0xff]
    %v228 = vld [vmem:[#allocation5 + $0x338] sm:$0xff]
    %v229 = vld [vmem:[#allocation5 + $0x340] sm:$0xff]
    %v230 = vld [vmem:[#allocation5 + $0x348] sm:$0xff]
    %v231 = vld [vmem:[#allocation5 + $0x350] sm:$0xff]
    %v232 = vld [vmem:[#allocation5 + $0x358] sm:$0xff]
    %v233 = vld [vmem:[#allocation5 + $0x360] sm:$0xff]
    %v234 = vld [vmem:[#allocation5 + $0x368] sm:$0xff]
    %v235 = vld [vmem:[#allocation5 + $0x370] sm:$0xff]
    %v236 = vld [vmem:[#allocation5 + $0x378] sm:$0xff]
    %v237 = vld [vmem:[#allocation5 + $0x380] sm:$0xff]
    %v238 = vld [vmem:[#allocation5 + $0x388] sm:$0xff]
    %v239 = vld [vmem:[#allocation5 + $0x390] sm:$0xff]
    %v240 = vld [vmem:[#allocation5 + $0x398] sm:$0xff]
    %v241 = vld [vmem:[#allocation5 + $0x3a0] sm:$0xff]
    %v242 = vld [vmem:[#allocation5 + $0x3a8] sm:$0xff]
    %v243 = vld [vmem:[#allocation5 + $0x3b0] sm:$0xff]
    %v244 = vld [vmem:[#allocation5 + $0x3b8] sm:$0xff]
    %v245 = vld [vmem:[#allocation5 + $0x3c0] sm:$0xff]
    %v246 = vld [vmem:[#allocation5 + $0x3c8] sm:$0xff]
    %v247 = vld [vmem:[#allocation5 + $0x3d0] sm:$0xff]
    %v248 = vld [vmem:[#allocation5 + $0x3d8] sm:$0xff]
    %v249 = vld [vmem:[#allocation5 + $0x3e0] sm:$0xff]
    %v250 = vld [vmem:[#allocation5 + $0x3e8] sm:$0xff]
    %v251 = vld [vmem:[#allocation5 + $0x3f0] sm:$0xff]
    %v252 = vld [vmem:[#allocation5 + $0x3f8] sm:$0xff]
    %v253 = vld [vmem:[#allocation5 + $0x400] sm:$0xff]
    %v254 = vld [vmem:[#allocation5 + $0x408] sm:$0xff]
    %v255 = vld [vmem:[#allocation5 + $0x410] sm:$0xff]
    %v256 = vld [vmem:[#allocation5 + $0x418] sm:$0xff]
    %v257 = vld [vmem:[#allocation5 + $0x420] sm:$0xff]
    %v258 = vld [vmem:[#allocation5 + $0x428] sm:$0xff]
    %v259 = vld [vmem:[#allocation5 + $0x430] sm:$0xff]
    %v260 = vld [vmem:[#allocation5 + $0x438] sm:$0xff]
    %v261 = vld [vmem:[#allocation5 + $0x440] sm:$0xff]
    %v262 = vld [vmem:[#allocation5 + $0x448] sm:$0xff]
    %v263 = vld [vmem:[#allocation5 + $0x450] sm:$0xff]
    %v264 = vld [vmem:[#allocation5 + $0x458] sm:$0xff]
    %v265 = vld [vmem:[#allocation5 + $0x460] sm:$0xff]
    %v266 = vld [vmem:[#allocation5 + $0x468] sm:$0xff]
    %v267 = vld [vmem:[#allocation5 + $0x470] sm:$0xff]
    %v268 = vld [vmem:[#allocation5 + $0x478] sm:$0xff]
    %v269 = vld [vmem:[#allocation5 + $0x480] sm:$0xff]
    %v270 = vld [vmem:[#allocation5 + $0x488] sm:$0xff]
    %v271 = vld [vmem:[#allocation5 + $0x490] sm:$0xff]
    %v272 = vld [vmem:[#allocation5 + $0x498] sm:$0xff]
    %v273 = vld [vmem:[#allocation5 + $0x4a0] sm:$0xff]
    %v274 = vld [vmem:[#allocation5 + $0x4a8] sm:$0xff]
    %v275 = vld [vmem:[#allocation5 + $0x4b0] sm:$0xff]
    %v276 = vld [vmem:[#allocation5 + $0x4b8] sm:$0xff]
    %v277 = vld [vmem:[#allocation5 + $0x4c0] sm:$0xff]
    %v278 = vld [vmem:[#allocation5 + $0x4c8] sm:$0xff]
    %v279 = vld [vmem:[#allocation5 + $0x4d0] sm:$0xff]
    %v280 = vld [vmem:[#allocation5 + $0x4d8] sm:$0xff]
    %v281 = vld [vmem:[#allocation5 + $0x4e0] sm:$0xff]
    %v282 = vld [vmem:[#allocation5 + $0x4e8] sm:$0xff]
    %v283 = vld [vmem:[#allocation5 + $0x4f0] sm:$0xff]
    %v284 = vld [vmem:[#allocation5 + $0x4f8] sm:$0xff]
    %v285 = vld [vmem:[#allocation5 + $0x500] sm:$0xff]
    %v286 = vld [vmem:[#allocation5 + $0x508] sm:$0xff]
    %v287 = vld [vmem:[#allocation5 + $0x510] sm:$0xff]
    %v288 = vld [vmem:[#allocation5 + $0x518] sm:$0xff]
    %v289 = vld [vmem:[#allocation5 + $0x520] sm:$0xff]
    %v290 = vld [vmem:[#allocation5 + $0x528] sm:$0xff]
    %v291 = vld [vmem:[#allocation5 + $0x530] sm:$0xff]
    %v292 = vld [vmem:[#allocation5 + $0x538] sm:$0xff]
    %v293 = vld [vmem:[#allocation5 + $0x540] sm:$0xff]
    %v294 = vld [vmem:[#allocation5 + $0x548] sm:$0xff]
    %v295 = vld [vmem:[#allocation5 + $0x550] sm:$0xff]
    %v296 = vld [vmem:[#allocation5 + $0x558] sm:$0xff]
    %v297 = vld [vmem:[#allocation5 + $0x560] sm:$0xff]
    %v298 = vld [vmem:[#allocation5 + $0x568] sm:$0xff]
    %v299 = vld [vmem:[#allocation5 + $0x570] sm:$0xff]
    %v300 = vld [vmem:[#allocation5 + $0x578] sm:$0xff]
    %v301 = vld [vmem:[#allocation5 + $0x580] sm:$0xff]
    %v302 = vld [vmem:[#allocation5 + $0x588] sm:$0xff]
    %v303 = vld [vmem:[#allocation5 + $0x590] sm:$0xff]
    %v304 = vld [vmem:[#allocation5 + $0x598] sm:$0xff]
    %v305 = vld [vmem:[#allocation5 + $0x5a0] sm:$0xff]
    %v306 = vld [vmem:[#allocation5 + $0x5a8] sm:$0xff]
    %v307 = vld [vmem:[#allocation5 + $0x5b0] sm:$0xff]
    %v308 = vld [vmem:[#allocation5 + $0x5b8] sm:$0xff]
    %v309 = vld [vmem:[#allocation5 + $0x5c0] sm:$0xff]
    %v310 = vld [vmem:[#allocation5 + $0x5c8] sm:$0xff]
    %v311 = vld [vmem:[#allocation5 + $0x5d0] sm:$0xff]
    %v312 = vld [vmem:[#allocation5 + $0x5d8] sm:$0xff]
    %v313 = vld [vmem:[#allocation5 + $0x5e0] sm:$0xff]
    %v314 = vld [vmem:[#allocation5 + $0x5e8] sm:$0xff]
    %v315 = vld [vmem:[#allocation5 + $0x5f0] sm:$0xff]
    %v316 = vld [vmem:[#allocation5 + $0x5f8] sm:$0xff]
    %v317 = vld [vmem:[#allocation5 + $0x600] sm:$0xff]
    %v318 = vld [vmem:[#allocation5 + $0x608] sm:$0xff]
    %v319 = vld [vmem:[#allocation5 + $0x610] sm:$0xff]
    %v320 = vld [vmem:[#allocation5 + $0x618] sm:$0xff]
    %v321 = vld [vmem:[#allocation5 + $0x620] sm:$0xff]
    %v322 = vld [vmem:[#allocation5 + $0x628] sm:$0xff]
    %v323 = vld [vmem:[#allocation5 + $0x630] sm:$0xff]
    %v324 = vld [vmem:[#allocation5 + $0x638] sm:$0xff]
    %v325 = vld [vmem:[#allocation5 + $0x640] sm:$0xff]
    %v326 = vld [vmem:[#allocation5 + $0x648] sm:$0xff]
    %v327 = vld [vmem:[#allocation5 + $0x650] sm:$0xff]
    %v328 = vld [vmem:[#allocation5 + $0x658] sm:$0xff]
    %v329 = vld [vmem:[#allocation5 + $0x660] sm:$0xff]
    %v330 = vld [vmem:[#allocation5 + $0x668] sm:$0xff]
    %v331 = vld [vmem:[#allocation5 + $0x670] sm:$0xff]
    %v332 = vld [vmem:[#allocation5 + $0x678] sm:$0xff]
    %v333 = vld [vmem:[#allocation5 + $0x680] sm:$0xff]
    %v334 = vld [vmem:[#allocation5 + $0x688] sm:$0xff]
    %v335 = vld [vmem:[#allocation5 + $0x690] sm:$0xff]
    %v336 = vld [vmem:[#allocation5 + $0x698] sm:$0xff]
    %v337 = vld [vmem:[#allocation5 + $0x6a0] sm:$0xff]
    %v338 = vld [vmem:[#allocation5 + $0x6a8] sm:$0xff]
    %v339 = vld [vmem:[#allocation5 + $0x6b0] sm:$0xff]
    %v340 = vld [vmem:[#allocation5 + $0x6b8] sm:$0xff]
    %v341 = vld [vmem:[#allocation5 + $0x6c0] sm:$0xff]
    %v342 = vld [vmem:[#allocation5 + $0x6c8] sm:$0xff]
    %v343 = vld [vmem:[#allocation5 + $0x6d0] sm:$0xff]
    %v344 = vld [vmem:[#allocation5 + $0x6d8] sm:$0xff]
    %v345 = vld [vmem:[#allocation5 + $0x6e0] sm:$0xff]
    %v346 = vld [vmem:[#allocation5 + $0x6e8] sm:$0xff]
    %v347 = vld [vmem:[#allocation5 + $0x6f0] sm:$0xff]
    %v348 = vld [vmem:[#allocation5 + $0x6f8] sm:$0xff]
    %v349 = vld [vmem:[#allocation5 + $0x700] sm:$0xff]
    %v350 = vld [vmem:[#allocation5 + $0x708] sm:$0xff]
    %v351 = vld [vmem:[#allocation5 + $0x710] sm:$0xff]
    %v352 = vld [vmem:[#allocation5 + $0x718] sm:$0xff]
    %v353 = vld [vmem:[#allocation5 + $0x720] sm:$0xff]
    %v354 = vld [vmem:[#allocation5 + $0x728] sm:$0xff]
    %v355 = vld [vmem:[#allocation5 + $0x730] sm:$0xff]
    %v356 = vld [vmem:[#allocation5 + $0x738] sm:$0xff]
    %v357 = vld [vmem:[#allocation5 + $0x740] sm:$0xff]
    %v358 = vld [vmem:[#allocation5 + $0x748] sm:$0xff]
    %v359 = vld [vmem:[#allocation5 + $0x750] sm:$0xff]
    %v360 = vld [vmem:[#allocation5 + $0x758] sm:$0xff]
    %v361 = vld [vmem:[#allocation5 + $0x760] sm:$0xff]
    %v362 = vld [vmem:[#allocation5 + $0x768] sm:$0xff]
    %v363 = vld [vmem:[#allocation5 + $0x770] sm:$0xff]
    %v364 = vld [vmem:[#allocation5 + $0x778] sm:$0xff]
    %v365 = vld [vmem:[#allocation5 + $0x780] sm:$0xff]
    %v366 = vld [vmem:[#allocation5 + $0x788] sm:$0xff]
    %v367 = vld [vmem:[#allocation5 + $0x790] sm:$0xff]
    %v368 = vld [vmem:[#allocation5 + $0x798] sm:$0xff]
    %v369 = vld [vmem:[#allocation5 + $0x7a0] sm:$0xff]
    %v370 = vld [vmem:[#allocation5 + $0x7a8] sm:$0xff]
    %v371 = vld [vmem:[#allocation5 + $0x7b0] sm:$0xff]
    %v372 = vld [vmem:[#allocation5 + $0x7b8] sm:$0xff]
    %v373 = vld [vmem:[#allocation5 + $0x7c0] sm:$0xff]
    %v374 = vld [vmem:[#allocation5 + $0x7c8] sm:$0xff]
    %v375 = vld [vmem:[#allocation5 + $0x7d0] sm:$0xff]
    %v376 = vld [vmem:[#allocation5 + $0x7d8] sm:$0xff]
    %v377 = vld [vmem:[#allocation5 + $0x7e0] sm:$0xff]
    %v378 = vld [vmem:[#allocation5 + $0x7e8] sm:$0xff]
    %v379 = vld [vmem:[#allocation5 + $0x7f0] sm:$0xff]
    %v380 = vld [vmem:[#allocation5 + $0x7f8] sm:$0xff]
    %v381 = vld [vmem:[#allocation5 + $0x800] sm:$0xff]
    %v382 = vld [vmem:[#allocation5 + $0x808] sm:$0xff]
    %v383 = vld [vmem:[#allocation5 + $0x810] sm:$0xff]
    %v384 = vld [vmem:[#allocation5 + $0x818] sm:$0xff]
    %v385 = vld [vmem:[#allocation5 + $0x820] sm:$0xff]
    %v386 = vld [vmem:[#allocation5 + $0x828] sm:$0xff]
    %v387 = vld [vmem:[#allocation5 + $0x830] sm:$0xff]
    %v388 = vld [vmem:[#allocation5 + $0x838] sm:$0xff]
    %v389 = vld [vmem:[#allocation5 + $0x840] sm:$0xff]
    %v390 = vld [vmem:[#allocation5 + $0x848] sm:$0xff]
    %v391 = vld [vmem:[#allocation5 + $0x850] sm:$0xff]
    %v392 = vld [vmem:[#allocation5 + $0x858] sm:$0xff]
    %v393 = vld [vmem:[#allocation5 + $0x860] sm:$0xff]
    %v394 = vld [vmem:[#allocation5 + $0x868] sm:$0xff]
    %v395 = vld [vmem:[#allocation5 + $0x870] sm:$0xff]
    %v396 = vld [vmem:[#allocation5 + $0x878] sm:$0xff]
    %v397 = vld [vmem:[#allocation5 + $0x880] sm:$0xff]
    %v398 = vld [vmem:[#allocation5 + $0x888] sm:$0xff]
    %v399 = vld [vmem:[#allocation5 + $0x890] sm:$0xff]
    %v400 = vld [vmem:[#allocation5 + $0x898] sm:$0xff]
    %v401 = vld [vmem:[#allocation5 + $0x8a0] sm:$0xff]
    %v402 = vld [vmem:[#allocation5 + $0x8a8] sm:$0xff]
    %v403 = vld [vmem:[#allocation5 + $0x8b0] sm:$0xff]
    %v404 = vld [vmem:[#allocation5 + $0x8b8] sm:$0xff]
    %v405 = vld [vmem:[#allocation5 + $0x8c0] sm:$0xff]
    %v406 = vld [vmem:[#allocation5 + $0x8c8] sm:$0xff]
    %v407 = vld [vmem:[#allocation5 + $0x8d0] sm:$0xff]
    %v408 = vld [vmem:[#allocation5 + $0x8d8] sm:$0xff]
    %v409 = vld [vmem:[#allocation5 + $0x8e0] sm:$0xff]
    %v410 = vld [vmem:[#allocation5 + $0x8e8] sm:$0xff]
    %v411 = vld [vmem:[#allocation5 + $0x8f0] sm:$0xff]
    %v412 = vld [vmem:[#allocation5 + $0x8f8] sm:$0xff]
    %v413 = vld [vmem:[#allocation5 + $0x900] sm:$0xff]
    %v414 = vld [vmem:[#allocation5 + $0x908] sm:$0xff]
    %v415 = vld [vmem:[#allocation5 + $0x910] sm:$0xff]
    %v416 = vld [vmem:[#allocation5 + $0x918] sm:$0xff]
    %v417 = vld [vmem:[#allocation5 + $0x920] sm:$0xff]
    %v418 = vld [vmem:[#allocation5 + $0x928] sm:$0xff]
    %v419 = vld [vmem:[#allocation5 + $0x930] sm:$0xff]
    %v420 = vld [vmem:[#allocation5 + $0x938] sm:$0xff]
    %v421 = vld [vmem:[#allocation5 + $0x940] sm:$0xff]
    %v422 = vld [vmem:[#allocation5 + $0x948] sm:$0xff]
    %v423 = vld [vmem:[#allocation5 + $0x950] sm:$0xff]
    %v424 = vld [vmem:[#allocation5 + $0x958] sm:$0xff]
    %v425 = vld [vmem:[#allocation5 + $0x960] sm:$0xff]
    %v426 = vld [vmem:[#allocation5 + $0x968] sm:$0xff]
    %v427 = vld [vmem:[#allocation5 + $0x970] sm:$0xff]
    %v428 = vld [vmem:[#allocation5 + $0x978] sm:$0xff]
    %v429 = vld [vmem:[#allocation5 + $0x980] sm:$0xff]
    %v430 = vld [vmem:[#allocation5 + $0x988] sm:$0xff]
    %v431 = vld [vmem:[#allocation5 + $0x990] sm:$0xff]
    %v432 = vld [vmem:[#allocation5 + $0x998] sm:$0xff]
    %v433 = vld [vmem:[#allocation5 + $0x9a0] sm:$0xff]
    %v434 = vld [vmem:[#allocation5 + $0x9a8] sm:$0xff]
    %v435 = vld [vmem:[#allocation5 + $0x9b0] sm:$0xff]
    %v436 = vld [vmem:[#allocation5 + $0x9b8] sm:$0xff]
    %v437 = vld [vmem:[#allocation5 + $0x9c0] sm:$0xff]
    %v438 = vld [vmem:[#allocation5 + $0x9c8] sm:$0xff]
    %v439 = vld [vmem:[#allocation5 + $0x9d0] sm:$0xff]
    %v440 = vld [vmem:[#allocation5 + $0x9d8] sm:$0xff]
    %v441 = vld [vmem:[#allocation5 + $0x9e0] sm:$0xff]
    %v442 = vld [vmem:[#allocation5 + $0x9e8] sm:$0xff]
    %v443 = vld [vmem:[#allocation5 + $0x9f0] sm:$0xff]
    %v444 = vld [vmem:[#allocation5 + $0x9f8] sm:$0xff]
    %v445 = vld [vmem:[#allocation5 + $0xa00] sm:$0xff]
    %v446 = vld [vmem:[#allocation5 + $0xa08] sm:$0xff]
    %v447 = vld [vmem:[#allocation5 + $0xa10] sm:$0xff]
    %v448 = vld [vmem:[#allocation5 + $0xa18] sm:$0xff]
    %v449 = vld [vmem:[#allocation5 + $0xa20] sm:$0xff]
    %v450 = vld [vmem:[#allocation5 + $0xa28] sm:$0xff]
    %v451 = vld [vmem:[#allocation5 + $0xa30] sm:$0xff]
    %v452 = vld [vmem:[#allocation5 + $0xa38] sm:$0xff]
    %v453 = vld [vmem:[#allocation5 + $0xa40] sm:$0xff]
    %v454 = vld [vmem:[#allocation5 + $0xa48] sm:$0xff]
    %v455 = vld [vmem:[#allocation5 + $0xa50] sm:$0xff]
    %v456 = vld [vmem:[#allocation5 + $0xa58] sm:$0xff]
    %v457 = vld [vmem:[#allocation5 + $0xa60] sm:$0xff]
    %v458 = vld [vmem:[#allocation5 + $0xa68] sm:$0xff]
    %v459 = vld [vmem:[#allocation5 + $0xa70] sm:$0xff]
    %v460 = vld [vmem:[#allocation5 + $0xa78] sm:$0xff]
    %v461 = vld [vmem:[#allocation5 + $0xa80] sm:$0xff]
    %v462 = vld [vmem:[#allocation5 + $0xa88] sm:$0xff]
    %v463 = vld [vmem:[#allocation5 + $0xa90] sm:$0xff]
    %v464 = vld [vmem:[#allocation5 + $0xa98] sm:$0xff]
    %v465 = vld [vmem:[#allocation5 + $0xaa0] sm:$0xff]
    %v466 = vld [vmem:[#allocation5 + $0xaa8] sm:$0xff]
    %v467 = vld [vmem:[#allocation5 + $0xab0] sm:$0xff]
    %v468 = vld [vmem:[#allocation5 + $0xab8] sm:$0xff]
    %v469 = vld [vmem:[#allocation5 + $0xac0] sm:$0xff]
    %v470 = vld [vmem:[#allocation5 + $0xac8] sm:$0xff]
    %v471 = vld [vmem:[#allocation5 + $0xad0] sm:$0xff]
    %v472 = vld [vmem:[#allocation5 + $0xad8] sm:$0xff]
    %v473 = vld [vmem:[#allocation5 + $0xae0] sm:$0xff]
    %v474 = vld [vmem:[#allocation5 + $0xae8] sm:$0xff]
    %v475 = vld [vmem:[#allocation5 + $0xaf0] sm:$0xff]
    %v476 = vld [vmem:[#allocation5 + $0xaf8] sm:$0xff]
    %v477 = vld [vmem:[#allocation5 + $0xb00] sm:$0xff]
    %v478 = vld [vmem:[#allocation5 + $0xb08] sm:$0xff]
    %v479 = vld [vmem:[#allocation5 + $0xb10] sm:$0xff]
    %v480 = vld [vmem:[#allocation5 + $0xb18] sm:$0xff]
    %v481 = vld [vmem:[#allocation5 + $0xb20] sm:$0xff]
    %v482 = vld [vmem:[#allocation5 + $0xb28] sm:$0xff]
    %v483 = vld [vmem:[#allocation5 + $0xb30] sm:$0xff]
    %v484 = vld [vmem:[#allocation5 + $0xb38] sm:$0xff]
    %v485 = vld [vmem:[#allocation5 + $0xb40] sm:$0xff]
    %v486 = vld [vmem:[#allocation5 + $0xb48] sm:$0xff]
    %v487 = vld [vmem:[#allocation5 + $0xb50] sm:$0xff]
    %v488 = vld [vmem:[#allocation5 + $0xb58] sm:$0xff]
    %v489 = vld [vmem:[#allocation5 + $0xb60] sm:$0xff]
    %v490 = vld [vmem:[#allocation5 + $0xb68] sm:$0xff]
    %v491 = vld [vmem:[#allocation5 + $0xb70] sm:$0xff]
    %v492 = vld [vmem:[#allocation5 + $0xb78] sm:$0xff]
    %v493 = vld [vmem:[#allocation5 + $0xb80] sm:$0xff]
    %v494 = vld [vmem:[#allocation5 + $0xb88] sm:$0xff]
    %v495 = vld [vmem:[#allocation5 + $0xb90] sm:$0xff]
    %v496 = vld [vmem:[#allocation5 + $0xb98] sm:$0xff]
    %v497 = vld [vmem:[#allocation5 + $0xba0] sm:$0xff]
    %v498 = vld [vmem:[#allocation5 + $0xba8] sm:$0xff]
    %v499 = vld [vmem:[#allocation5 + $0xbb0] sm:$0xff]
    %v500 = vld [vmem:[#allocation5 + $0xbb8] sm:$0xff]
    %v501 = vld [vmem:[#allocation5 + $0xbc0] sm:$0xff]
    %v502 = vld [vmem:[#allocation5 + $0xbc8] sm:$0xff]
    %v503 = vld [vmem:[#allocation5 + $0xbd0] sm:$0xff]
    %v504 = vld [vmem:[#allocation5 + $0xbd8] sm:$0xff]
    %v505 = vld [vmem:[#allocation5 + $0xbe0] sm:$0xff]
    %v506 = vld [vmem:[#allocation5 + $0xbe8] sm:$0xff]
    %v507 = vld [vmem:[#allocation5 + $0xbf0] sm:$0xff]
    %v508 = vld [vmem:[#allocation5 + $0xbf8] sm:$0xff]
    %v509 = vld [vmem:[#allocation5 + $0xc00] sm:$0xff]
    %v510 = vld [vmem:[#allocation5 + $0xc08] sm:$0xff]
    %v511 = vld [vmem:[#allocation5 + $0xc10] sm:$0xff]
    %v512 = vld [vmem:[#allocation5 + $0xc18] sm:$0xff]
    %v513 = vld [vmem:[#allocation5 + $0xc20] sm:$0xff]
    %v514 = vld [vmem:[#allocation5 + $0xc28] sm:$0xff]
    %v515 = vld [vmem:[#allocation5 + $0xc30] sm:$0xff]
    %v516 = vld [vmem:[#allocation5 + $0xc38] sm:$0xff]
    %v517 = vld [vmem:[#allocation5 + $0xc40] sm:$0xff]
    %v518 = vld [vmem:[#allocation5 + $0xc48] sm:$0xff]
    %v519 = vld [vmem:[#allocation5 + $0xc50] sm:$0xff]
    %v520 = vld [vmem:[#allocation5 + $0xc58] sm:$0xff]
    %v521 = vld [vmem:[#allocation5 + $0xc60] sm:$0xff]
    %v522 = vld [vmem:[#allocation5 + $0xc68] sm:$0xff]
    %v523 = vld [vmem:[#allocation5 + $0xc70] sm:$0xff]
    %v524 = vld [vmem:[#allocation5 + $0xc78] sm:$0xff]
    %v525 = vld [vmem:[#allocation5 + $0xc80] sm:$0xff]
    %v526 = vld [vmem:[#allocation5 + $0xc88] sm:$0xff]
    %v527 = vld [vmem:[#allocation5 + $0xc90] sm:$0xff]
    %v528 = vld [vmem:[#allocation5 + $0xc98] sm:$0xff]
    %v529 = vld [vmem:[#allocation5 + $0xca0] sm:$0xff]
    %v530 = vld [vmem:[#allocation5 + $0xca8] sm:$0xff]
    %v531 = vld [vmem:[#allocation5 + $0xcb0] sm:$0xff]
    %v532 = vld [vmem:[#allocation5 + $0xcb8] sm:$0xff]
    %v533 = vld [vmem:[#allocation5 + $0xcc0] sm:$0xff]
    %v534 = vld [vmem:[#allocation5 + $0xcc8] sm:$0xff]
    %v535 = vld [vmem:[#allocation5 + $0xcd0] sm:$0xff]
    %v536 = vld [vmem:[#allocation5 + $0xcd8] sm:$0xff]
    %v537 = vld [vmem:[#allocation5 + $0xce0] sm:$0xff]
    %v538 = vld [vmem:[#allocation5 + $0xce8] sm:$0xff]
    %v539 = vld [vmem:[#allocation5 + $0xcf0] sm:$0xff]
    %v540 = vld [vmem:[#allocation5 + $0xcf8] sm:$0xff]
    %v541 = vld [vmem:[#allocation5 + $0xd00] sm:$0xff]
    %v542 = vld [vmem:[#allocation5 + $0xd08] sm:$0xff]
    %v543 = vld [vmem:[#allocation5 + $0xd10] sm:$0xff]
    %v544 = vld [vmem:[#allocation5 + $0xd18] sm:$0xff]
    %v545 = vld [vmem:[#allocation5 + $0xd20] sm:$0xff]
    %v546 = vld [vmem:[#allocation5 + $0xd28] sm:$0xff]
    %v547 = vld [vmem:[#allocation5 + $0xd30] sm:$0xff]
    %v548 = vld [vmem:[#allocation5 + $0xd38] sm:$0xff]
    %v549 = vld [vmem:[#allocation5 + $0xd40] sm:$0xff]
    %v550 = vld [vmem:[#allocation5 + $0xd48] sm:$0xff]
    %v551 = vld [vmem:[#allocation5 + $0xd50] sm:$0xff]
    %v552 = vld [vmem:[#allocation5 + $0xd58] sm:$0xff]
    %v553 = vld [vmem:[#allocation5 + $0xd60] sm:$0xff]
    %v554 = vld [vmem:[#allocation5 + $0xd68] sm:$0xff]
    %v555 = vld [vmem:[#allocation5 + $0xd70] sm:$0xff]
    %v556 = vld [vmem:[#allocation5 + $0xd78] sm:$0xff]
    %v557 = vld [vmem:[#allocation5 + $0xd80] sm:$0xff]
    %v558 = vld [vmem:[#allocation5 + $0xd88] sm:$0xff]
    %v559 = vld [vmem:[#allocation5 + $0xd90] sm:$0xff]
    %v560 = vld [vmem:[#allocation5 + $0xd98] sm:$0xff]
    %v561 = vld [vmem:[#allocation5 + $0xda0] sm:$0xff]
    %v562 = vld [vmem:[#allocation5 + $0xda8] sm:$0xff]
    %v563 = vld [vmem:[#allocation5 + $0xdb0] sm:$0xff]
    %v564 = vld [vmem:[#allocation5 + $0xdb8] sm:$0xff]
    %v565 = vld [vmem:[#allocation5 + $0xdc0] sm:$0xff]
    %v566 = vld [vmem:[#allocation5 + $0xdc8] sm:$0xff]
    %v567 = vld [vmem:[#allocation5 + $0xdd0] sm:$0xff]
    %v568 = vld [vmem:[#allocation5 + $0xdd8] sm:$0xff]
    %v569 = vld [vmem:[#allocation5 + $0xde0] sm:$0xff]
    %v570 = vld [vmem:[#allocation5 + $0xde8] sm:$0xff]
    %v571 = vld [vmem:[#allocation5 + $0xdf0] sm:$0xff]
    %v572 = vld [vmem:[#allocation5 + $0xdf8] sm:$0xff]
    %v573 = vld [vmem:[#allocation7] sm:$0xff]
    %v575 = vlaneseq
    %v576 = vshrl.u32 %v575, 7
    %v577 = vsub.s32 0, %v576
    %v578 = vrot.slane %v573, %v577
    %v579 = vlaneseq
    %v580 = vshrl.u32 %v579, 7
    %v581 = vsub.s32 1, %v580
    %v582 = vrot.slane %v573, %v581
    %v583 = vlaneseq
    %v584 = vshrl.u32 %v583, 7
    %v585 = vsub.s32 2, %v584
    %v586 = vrot.slane %v573, %v585
    %v587 = vlaneseq
    %v588 = vshrl.u32 %v587, 7
    %v589 = vsub.s32 3, %v588
    %v590 = vrot.slane %v573, %v589
    %v591 = vlaneseq
    %v592 = vshrl.u32 %v591, 7
    %v593 = vsub.s32 4, %v592
    %v594 = vrot.slane %v573, %v593
    %v595 = vlaneseq
    %v596 = vshrl.u32 %v595, 7
    %v597 = vsub.s32 5, %v596
    %v598 = vrot.slane %v573, %v597
    %v599 = vlaneseq
    %v600 = vshrl.u32 %v599, 7
    %v601 = vsub.s32 6, %v600
    %v602 = vrot.slane %v573, %v601
    %v603 = vlaneseq
    %v604 = vshrl.u32 %v603, 7
    %v605 = vsub.s32 7, %v604
    %v606 = vrot.slane %v573, %v605
    %v623 = vunpack.c.l.b16 %v117
    %v624 = vunpack.c.h.b16 %v117
    %v625 = vunpack.c.l.b16 %v118
    %v626 = vunpack.c.h.b16 %v118
    %v627 = vunpack.c.l.b16 %v119
    %v628 = vunpack.c.h.b16 %v119
    %v629 = vunpack.c.l.b16 %v120
    %v630 = vunpack.c.l.b16 %v121
    %v631 = vunpack.c.h.b16 %v121
    %v632 = vunpack.c.l.b16 %v122
    %v633 = vunpack.c.h.b16 %v122
    %v634 = vunpack.c.l.b16 %v123
    %v635 = vunpack.c.h.b16 %v123
    %v636 = vunpack.c.l.b16 %v124
    %v637 = vpack.c.b16 %v630, %v623
    %v638 = vpack.c.b16 %v631, %v624
    %v639 = vpack.c.b16 %v632, %v625
    %v640 = vpack.c.b16 %v633, %v626
    %v641 = vpack.c.b16 %v634, %v627
    %v642 = vpack.c.b16 %v635, %v628
    %v643 = vpack.c.b16 %v636, %v629
    %v1099 = vunpack.c.l.b16 %v125
    %v1100 = vunpack.c.h.b16 %v125
    %v1101 = vunpack.c.l.b16 %v126
    %v1102 = vunpack.c.h.b16 %v126
    %v1103 = vunpack.c.l.b16 %v127
    %v1104 = vunpack.c.h.b16 %v127
    %v1105 = vunpack.c.l.b16 %v128
    %v1106 = vunpack.c.h.b16 %v128
    %v1107 = vunpack.c.l.b16 %v129
    %v1108 = vunpack.c.h.b16 %v129
    %v1109 = vunpack.c.l.b16 %v130
    %v1110 = vunpack.c.h.b16 %v130
    %v1111 = vunpack.c.l.b16 %v131
    %v1112 = vunpack.c.h.b16 %v131
    %v1113 = vunpack.c.l.b16 %v132
    %v1114 = vunpack.c.h.b16 %v132
    %v1115 = vunpack.c.l.b16 %v133
    %v1116 = vunpack.c.h.b16 %v133
    %v1117 = vunpack.c.l.b16 %v134
    %v1118 = vunpack.c.h.b16 %v134
    %v1119 = vunpack.c.l.b16 %v135
    %v1120 = vunpack.c.h.b16 %v135
    %v1121 = vunpack.c.l.b16 %v136
    %v1122 = vunpack.c.h.b16 %v136
    %v1123 = vunpack.c.l.b16 %v137
    %v1124 = vunpack.c.h.b16 %v137
    %v1125 = vunpack.c.l.b16 %v138
    %v1126 = vunpack.c.h.b16 %v138
    %v1127 = vunpack.c.l.b16 %v139
    %v1128 = vunpack.c.h.b16 %v139
    %v1129 = vunpack.c.l.b16 %v140
    %v1130 = vunpack.c.h.b16 %v140
    %v1131 = vunpack.c.l.b16 %v141
    %v1132 = vunpack.c.h.b16 %v141
    %v1133 = vunpack.c.l.b16 %v142
    %v1134 = vunpack.c.h.b16 %v142
    %v1135 = vunpack.c.l.b16 %v143
    %v1136 = vunpack.c.h.b16 %v143
    %v1137 = vunpack.c.l.b16 %v144
    %v1138 = vunpack.c.h.b16 %v144
    %v1139 = vunpack.c.l.b16 %v145
    %v1140 = vunpack.c.h.b16 %v145
    %v1141 = vunpack.c.l.b16 %v146
    %v1142 = vunpack.c.h.b16 %v146
    %v1143 = vunpack.c.l.b16 %v147
    %v1144 = vunpack.c.h.b16 %v147
    %v1145 = vunpack.c.l.b16 %v148
    %v1146 = vunpack.c.h.b16 %v148
    %v1147 = vunpack.c.l.b16 %v149
    %v1148 = vunpack.c.h.b16 %v149
    %v1149 = vunpack.c.l.b16 %v150
    %v1150 = vunpack.c.h.b16 %v150
    %v1151 = vunpack.c.l.b16 %v151
    %v1152 = vunpack.c.h.b16 %v151
    %v1153 = vunpack.c.l.b16 %v152
    %v1154 = vunpack.c.h.b16 %v152
    %v1155 = vunpack.c.l.b16 %v153
    %v1156 = vunpack.c.h.b16 %v153
    %v1157 = vunpack.c.l.b16 %v154
    %v1158 = vunpack.c.h.b16 %v154
    %v1159 = vunpack.c.l.b16 %v155
    %v1160 = vunpack.c.h.b16 %v155
    %v1161 = vunpack.c.l.b16 %v156
    %v1162 = vunpack.c.h.b16 %v156
    %v1163 = vunpack.c.l.b16 %v157
    %v1164 = vunpack.c.h.b16 %v157
    %v1165 = vunpack.c.l.b16 %v158
    %v1166 = vunpack.c.h.b16 %v158
    %v1167 = vunpack.c.l.b16 %v159
    %v1168 = vunpack.c.h.b16 %v159
    %v1169 = vunpack.c.l.b16 %v160
    %v1170 = vunpack.c.h.b16 %v160
    %v1171 = vunpack.c.l.b16 %v161
    %v1172 = vunpack.c.h.b16 %v161
    %v1173 = vunpack.c.l.b16 %v162
    %v1174 = vunpack.c.h.b16 %v162
    %v1175 = vunpack.c.l.b16 %v163
    %v1176 = vunpack.c.h.b16 %v163
    %v1177 = vunpack.c.l.b16 %v164
    %v1178 = vunpack.c.h.b16 %v164
    %v1179 = vunpack.c.l.b16 %v165
    %v1180 = vunpack.c.h.b16 %v165
    %v1181 = vunpack.c.l.b16 %v166
    %v1182 = vunpack.c.h.b16 %v166
    %v1183 = vunpack.c.l.b16 %v167
    %v1184 = vunpack.c.h.b16 %v167
    %v1185 = vunpack.c.l.b16 %v168
    %v1186 = vunpack.c.h.b16 %v168
    %v1187 = vunpack.c.l.b16 %v169
    %v1188 = vunpack.c.h.b16 %v169
    %v1189 = vunpack.c.l.b16 %v170
    %v1190 = vunpack.c.h.b16 %v170
    %v1191 = vunpack.c.l.b16 %v171
    %v1192 = vunpack.c.h.b16 %v171
    %v1193 = vunpack.c.l.b16 %v172
    %v1194 = vunpack.c.h.b16 %v172
    %v1195 = vunpack.c.l.b16 %v173
    %v1196 = vunpack.c.h.b16 %v173
    %v1197 = vunpack.c.l.b16 %v174
    %v1198 = vunpack.c.h.b16 %v174
    %v1199 = vunpack.c.l.b16 %v175
    %v1200 = vunpack.c.h.b16 %v175
    %v1201 = vunpack.c.l.b16 %v176
    %v1202 = vunpack.c.h.b16 %v176
    %v1203 = vunpack.c.l.b16 %v177
    %v1204 = vunpack.c.h.b16 %v177
    %v1205 = vunpack.c.l.b16 %v178
    %v1206 = vunpack.c.h.b16 %v178
    %v1207 = vunpack.c.l.b16 %v179
    %v1208 = vunpack.c.h.b16 %v179
    %v1209 = vunpack.c.l.b16 %v180
    %v1210 = vunpack.c.h.b16 %v180
    %v1211 = vunpack.c.l.b16 %v181
    %v1212 = vunpack.c.h.b16 %v181
    %v1213 = vunpack.c.l.b16 %v182
    %v1214 = vunpack.c.h.b16 %v182
    %v1215 = vunpack.c.l.b16 %v183
    %v1216 = vunpack.c.h.b16 %v183
    %v1217 = vunpack.c.l.b16 %v184
    %v1218 = vunpack.c.h.b16 %v184
    %v1219 = vunpack.c.l.b16 %v185
    %v1220 = vunpack.c.h.b16 %v185
    %v1221 = vunpack.c.l.b16 %v186
    %v1222 = vunpack.c.h.b16 %v186
    %v1223 = vunpack.c.l.b16 %v187
    %v1224 = vunpack.c.h.b16 %v187
    %v1225 = vunpack.c.l.b16 %v188
    %v1226 = vunpack.c.h.b16 %v188
    %v1227 = vunpack.c.l.b16 %v189
    %v1228 = vunpack.c.h.b16 %v189
    %v1229 = vunpack.c.l.b16 %v190
    %v1230 = vunpack.c.h.b16 %v190
    %v1231 = vunpack.c.l.b16 %v191
    %v1232 = vunpack.c.h.b16 %v191
    %v1233 = vunpack.c.l.b16 %v192
    %v1234 = vunpack.c.h.b16 %v192
    %v1235 = vunpack.c.l.b16 %v193
    %v1236 = vunpack.c.h.b16 %v193
    %v1237 = vunpack.c.l.b16 %v194
    %v1238 = vunpack.c.h.b16 %v194
    %v1239 = vunpack.c.l.b16 %v195
    %v1240 = vunpack.c.h.b16 %v195
    %v1241 = vunpack.c.l.b16 %v196
    %v1242 = vunpack.c.h.b16 %v196
    %v1243 = vunpack.c.l.b16 %v197
    %v1244 = vunpack.c.h.b16 %v197
    %v1245 = vunpack.c.l.b16 %v198
    %v1246 = vunpack.c.h.b16 %v198
    %v1247 = vunpack.c.l.b16 %v199
    %v1248 = vunpack.c.h.b16 %v199
    %v1249 = vunpack.c.l.b16 %v200
    %v1250 = vunpack.c.h.b16 %v200
    %v1251 = vunpack.c.l.b16 %v201
    %v1252 = vunpack.c.h.b16 %v201
    %v1253 = vunpack.c.l.b16 %v202
    %v1254 = vunpack.c.h.b16 %v202
    %v1255 = vunpack.c.l.b16 %v203
    %v1256 = vunpack.c.h.b16 %v203
    %v1257 = vunpack.c.l.b16 %v204
    %v1258 = vunpack.c.h.b16 %v204
    %v1259 = vunpack.c.l.b16 %v205
    %v1260 = vunpack.c.h.b16 %v205
    %v1261 = vunpack.c.l.b16 %v206
    %v1262 = vunpack.c.h.b16 %v206
    %v1263 = vunpack.c.l.b16 %v207
    %v1264 = vunpack.c.h.b16 %v207
    %v1265 = vunpack.c.l.b16 %v208
    %v1266 = vunpack.c.h.b16 %v208
    %v1267 = vunpack.c.l.b16 %v209
    %v1268 = vunpack.c.h.b16 %v209
    %v1269 = vunpack.c.l.b16 %v210
    %v1270 = vunpack.c.h.b16 %v210
    %v1271 = vunpack.c.l.b16 %v211
    %v1272 = vunpack.c.h.b16 %v211
    %v1273 = vunpack.c.l.b16 %v212
    %v1274 = vunpack.c.h.b16 %v212
    %v1275 = vunpack.c.l.b16 %v213
    %v1276 = vunpack.c.h.b16 %v213
    %v1277 = vunpack.c.l.b16 %v214
    %v1278 = vunpack.c.h.b16 %v214
    %v1279 = vunpack.c.l.b16 %v215
    %v1280 = vunpack.c.h.b16 %v215
    %v1281 = vunpack.c.l.b16 %v216
    %v1282 = vunpack.c.h.b16 %v216
    %v1283 = vunpack.c.l.b16 %v217
    %v1284 = vunpack.c.h.b16 %v217
    %v1285 = vunpack.c.l.b16 %v218
    %v1286 = vunpack.c.h.b16 %v218
    %v1287 = vunpack.c.l.b16 %v219
    %v1288 = vunpack.c.h.b16 %v219
    %v1289 = vunpack.c.l.b16 %v220
    %v1290 = vunpack.c.h.b16 %v220
    %v1291 = vunpack.c.l.b16 %v221
    %v1292 = vunpack.c.h.b16 %v221
    %v1293 = vunpack.c.l.b16 %v222
    %v1294 = vunpack.c.h.b16 %v222
    %v1295 = vunpack.c.l.b16 %v223
    %v1296 = vunpack.c.h.b16 %v223
    %v1297 = vunpack.c.l.b16 %v224
    %v1298 = vunpack.c.h.b16 %v224
    %v1299 = vunpack.c.l.b16 %v225
    %v1300 = vunpack.c.h.b16 %v225
    %v1301 = vunpack.c.l.b16 %v226
    %v1302 = vunpack.c.h.b16 %v226
    %v1303 = vunpack.c.l.b16 %v227
    %v1304 = vunpack.c.h.b16 %v227
    %v1305 = vunpack.c.l.b16 %v228
    %v1306 = vunpack.c.h.b16 %v228
    %v1307 = vunpack.c.l.b16 %v229
    %v1308 = vunpack.c.h.b16 %v229
    %v1309 = vunpack.c.l.b16 %v230
    %v1310 = vunpack.c.h.b16 %v230
    %v1311 = vunpack.c.l.b16 %v231
    %v1312 = vunpack.c.h.b16 %v231
    %v1313 = vunpack.c.l.b16 %v232
    %v1314 = vunpack.c.h.b16 %v232
    %v1315 = vunpack.c.l.b16 %v233
    %v1316 = vunpack.c.h.b16 %v233
    %v1317 = vunpack.c.l.b16 %v234
    %v1318 = vunpack.c.h.b16 %v234
    %v1319 = vunpack.c.l.b16 %v235
    %v1320 = vunpack.c.h.b16 %v235
    %v1321 = vunpack.c.l.b16 %v236
    %v1322 = vunpack.c.h.b16 %v236
    %v1323 = vunpack.c.l.b16 %v237
    %v1324 = vunpack.c.h.b16 %v237
    %v1325 = vunpack.c.l.b16 %v238
    %v1326 = vunpack.c.h.b16 %v238
    %v1327 = vunpack.c.l.b16 %v239
    %v1328 = vunpack.c.h.b16 %v239
    %v1329 = vunpack.c.l.b16 %v240
    %v1330 = vunpack.c.h.b16 %v240
    %v1331 = vunpack.c.l.b16 %v241
    %v1332 = vunpack.c.h.b16 %v241
    %v1333 = vunpack.c.l.b16 %v242
    %v1334 = vunpack.c.h.b16 %v242
    %v1335 = vunpack.c.l.b16 %v243
    %v1336 = vunpack.c.h.b16 %v243
    %v1337 = vunpack.c.l.b16 %v244
    %v1338 = vunpack.c.h.b16 %v244
    %v1339 = vunpack.c.l.b16 %v245
    %v1340 = vunpack.c.h.b16 %v245
    %v1341 = vunpack.c.l.b16 %v246
    %v1342 = vunpack.c.h.b16 %v246
    %v1343 = vunpack.c.l.b16 %v247
    %v1344 = vunpack.c.h.b16 %v247
    %v1345 = vunpack.c.l.b16 %v248
    %v1346 = vunpack.c.h.b16 %v248
    %v1347 = vunpack.c.l.b16 %v249
    %v1348 = vunpack.c.h.b16 %v249
    %v1349 = vunpack.c.l.b16 %v250
    %v1350 = vunpack.c.h.b16 %v250
    %v1351 = vunpack.c.l.b16 %v251
    %v1352 = vunpack.c.h.b16 %v251
    %v1353 = vunpack.c.l.b16 %v252
    %v1354 = vunpack.c.h.b16 %v252
    %v1355 = vunpack.c.l.b16 %v253
    %v1356 = vunpack.c.h.b16 %v253
    %v1357 = vunpack.c.l.b16 %v254
    %v1358 = vunpack.c.h.b16 %v254
    %v1359 = vunpack.c.l.b16 %v255
    %v1360 = vunpack.c.h.b16 %v255
    %v1361 = vunpack.c.l.b16 %v256
    %v1362 = vunpack.c.h.b16 %v256
    %v1363 = vunpack.c.l.b16 %v257
    %v1364 = vunpack.c.h.b16 %v257
    %v1365 = vunpack.c.l.b16 %v258
    %v1366 = vunpack.c.h.b16 %v258
    %v1367 = vunpack.c.l.b16 %v259
    %v1368 = vunpack.c.h.b16 %v259
    %v1369 = vunpack.c.l.b16 %v260
    %v1370 = vunpack.c.h.b16 %v260
    %v1371 = vunpack.c.l.b16 %v261
    %v1372 = vunpack.c.h.b16 %v261
    %v1373 = vunpack.c.l.b16 %v262
    %v1374 = vunpack.c.h.b16 %v262
    %v1375 = vunpack.c.l.b16 %v263
    %v1376 = vunpack.c.h.b16 %v263
    %v1377 = vunpack.c.l.b16 %v264
    %v1378 = vunpack.c.h.b16 %v264
    %v1379 = vunpack.c.l.b16 %v265
    %v1380 = vunpack.c.h.b16 %v265
    %v1381 = vunpack.c.l.b16 %v266
    %v1382 = vunpack.c.h.b16 %v266
    %v1383 = vunpack.c.l.b16 %v267
    %v1384 = vunpack.c.h.b16 %v267
    %v1385 = vunpack.c.l.b16 %v268
    %v1386 = vunpack.c.h.b16 %v268
    %v1387 = vunpack.c.l.b16 %v269
    %v1388 = vunpack.c.h.b16 %v269
    %v1389 = vunpack.c.l.b16 %v270
    %v1390 = vunpack.c.h.b16 %v270
    %v1391 = vunpack.c.l.b16 %v271
    %v1392 = vunpack.c.h.b16 %v271
    %v1393 = vunpack.c.l.b16 %v272
    %v1394 = vunpack.c.h.b16 %v272
    %v1395 = vunpack.c.l.b16 %v273
    %v1396 = vunpack.c.h.b16 %v273
    %v1397 = vunpack.c.l.b16 %v274
    %v1398 = vunpack.c.h.b16 %v274
    %v1399 = vunpack.c.l.b16 %v275
    %v1400 = vunpack.c.h.b16 %v275
    %v1401 = vunpack.c.l.b16 %v276
    %v1402 = vunpack.c.h.b16 %v276
    %v1403 = vunpack.c.l.b16 %v277
    %v1404 = vunpack.c.h.b16 %v277
    %v1405 = vunpack.c.l.b16 %v278
    %v1406 = vunpack.c.h.b16 %v278
    %v1407 = vunpack.c.l.b16 %v279
    %v1408 = vunpack.c.h.b16 %v279
    %v1409 = vunpack.c.l.b16 %v280
    %v1410 = vunpack.c.h.b16 %v280
    %v1411 = vunpack.c.l.b16 %v281
    %v1412 = vunpack.c.h.b16 %v281
    %v1413 = vunpack.c.l.b16 %v282
    %v1414 = vunpack.c.h.b16 %v282
    %v1415 = vunpack.c.l.b16 %v283
    %v1416 = vunpack.c.h.b16 %v283
    %v1417 = vunpack.c.l.b16 %v284
    %v1418 = vunpack.c.h.b16 %v284
    %v1419 = vunpack.c.l.b16 %v285
    %v1420 = vunpack.c.h.b16 %v285
    %v1421 = vunpack.c.l.b16 %v286
    %v1422 = vunpack.c.h.b16 %v286
    %v1423 = vunpack.c.l.b16 %v287
    %v1424 = vunpack.c.h.b16 %v287
    %v1425 = vunpack.c.l.b16 %v288
    %v1426 = vunpack.c.h.b16 %v288
    %v1427 = vunpack.c.l.b16 %v289
    %v1428 = vunpack.c.h.b16 %v289
    %v1429 = vunpack.c.l.b16 %v290
    %v1430 = vunpack.c.h.b16 %v290
    %v1431 = vunpack.c.l.b16 %v291
    %v1432 = vunpack.c.h.b16 %v291
    %v1433 = vunpack.c.l.b16 %v292
    %v1434 = vunpack.c.h.b16 %v292
    %v1435 = vunpack.c.l.b16 %v293
    %v1436 = vunpack.c.h.b16 %v293
    %v1437 = vunpack.c.l.b16 %v294
    %v1438 = vunpack.c.h.b16 %v294
    %v1439 = vunpack.c.l.b16 %v295
    %v1440 = vunpack.c.h.b16 %v295
    %v1441 = vunpack.c.l.b16 %v296
    %v1442 = vunpack.c.h.b16 %v296
    %v1443 = vunpack.c.l.b16 %v297
    %v1444 = vunpack.c.h.b16 %v297
    %v1445 = vunpack.c.l.b16 %v298
    %v1446 = vunpack.c.h.b16 %v298
    %v1447 = vunpack.c.l.b16 %v299
    %v1448 = vunpack.c.h.b16 %v299
    %v1449 = vunpack.c.l.b16 %v300
    %v1450 = vunpack.c.h.b16 %v300
    %v1451 = vunpack.c.l.b16 %v301
    %v1452 = vunpack.c.h.b16 %v301
    %v1453 = vunpack.c.l.b16 %v302
    %v1454 = vunpack.c.h.b16 %v302
    %v1455 = vunpack.c.l.b16 %v303
    %v1456 = vunpack.c.h.b16 %v303
    %v1457 = vunpack.c.l.b16 %v304
    %v1458 = vunpack.c.h.b16 %v304
    %v1459 = vunpack.c.l.b16 %v305
    %v1460 = vunpack.c.h.b16 %v305
    %v1461 = vunpack.c.l.b16 %v306
    %v1462 = vunpack.c.h.b16 %v306
    %v1463 = vunpack.c.l.b16 %v307
    %v1464 = vunpack.c.h.b16 %v307
    %v1465 = vunpack.c.l.b16 %v308
    %v1466 = vunpack.c.h.b16 %v308
    %v1467 = vunpack.c.l.b16 %v309
    %v1468 = vunpack.c.h.b16 %v309
    %v1469 = vunpack.c.l.b16 %v310
    %v1470 = vunpack.c.h.b16 %v310
    %v1471 = vunpack.c.l.b16 %v311
    %v1472 = vunpack.c.h.b16 %v311
    %v1473 = vunpack.c.l.b16 %v312
    %v1474 = vunpack.c.h.b16 %v312
    %v1475 = vunpack.c.l.b16 %v313
    %v1476 = vunpack.c.h.b16 %v313
    %v1477 = vunpack.c.l.b16 %v314
    %v1478 = vunpack.c.h.b16 %v314
    %v1479 = vunpack.c.l.b16 %v315
    %v1480 = vunpack.c.h.b16 %v315
    %v1481 = vunpack.c.l.b16 %v316
    %v1482 = vunpack.c.h.b16 %v316
    %v1483 = vunpack.c.l.b16 %v317
    %v1484 = vunpack.c.h.b16 %v317
    %v1485 = vunpack.c.l.b16 %v318
    %v1486 = vunpack.c.h.b16 %v318
    %v1487 = vunpack.c.l.b16 %v319
    %v1488 = vunpack.c.h.b16 %v319
    %v1489 = vunpack.c.l.b16 %v320
    %v1490 = vunpack.c.h.b16 %v320
    %v1491 = vunpack.c.l.b16 %v321
    %v1492 = vunpack.c.h.b16 %v321
    %v1493 = vunpack.c.l.b16 %v322
    %v1494 = vunpack.c.h.b16 %v322
    %v1495 = vunpack.c.l.b16 %v323
    %v1496 = vunpack.c.h.b16 %v323
    %v1497 = vunpack.c.l.b16 %v324
    %v1498 = vunpack.c.h.b16 %v324
    %v1499 = vunpack.c.l.b16 %v325
    %v1500 = vunpack.c.h.b16 %v325
    %v1501 = vunpack.c.l.b16 %v326
    %v1502 = vunpack.c.h.b16 %v326
    %v1503 = vunpack.c.l.b16 %v327
    %v1504 = vunpack.c.h.b16 %v327
    %v1505 = vunpack.c.l.b16 %v328
    %v1506 = vunpack.c.h.b16 %v328
    %v1507 = vunpack.c.l.b16 %v329
    %v1508 = vunpack.c.h.b16 %v329
    %v1509 = vunpack.c.l.b16 %v330
    %v1510 = vunpack.c.h.b16 %v330
    %v1511 = vunpack.c.l.b16 %v331
    %v1512 = vunpack.c.h.b16 %v331
    %v1513 = vunpack.c.l.b16 %v332
    %v1514 = vunpack.c.h.b16 %v332
    %v1515 = vunpack.c.l.b16 %v333
    %v1516 = vunpack.c.h.b16 %v333
    %v1517 = vunpack.c.l.b16 %v334
    %v1518 = vunpack.c.h.b16 %v334
    %v1519 = vunpack.c.l.b16 %v335
    %v1520 = vunpack.c.h.b16 %v335
    %v1521 = vunpack.c.l.b16 %v336
    %v1522 = vunpack.c.h.b16 %v336
    %v1523 = vunpack.c.l.b16 %v337
    %v1524 = vunpack.c.h.b16 %v337
    %v1525 = vunpack.c.l.b16 %v338
    %v1526 = vunpack.c.h.b16 %v338
    %v1527 = vunpack.c.l.b16 %v339
    %v1528 = vunpack.c.h.b16 %v339
    %v1529 = vunpack.c.l.b16 %v340
    %v1530 = vunpack.c.h.b16 %v340
    %v1531 = vunpack.c.l.b16 %v341
    %v1532 = vunpack.c.h.b16 %v341
    %v1533 = vunpack.c.l.b16 %v342
    %v1534 = vunpack.c.h.b16 %v342
    %v1535 = vunpack.c.l.b16 %v343
    %v1536 = vunpack.c.h.b16 %v343
    %v1537 = vunpack.c.l.b16 %v344
    %v1538 = vunpack.c.h.b16 %v344
    %v1539 = vunpack.c.l.b16 %v345
    %v1540 = vunpack.c.h.b16 %v345
    %v1541 = vunpack.c.l.b16 %v346
    %v1542 = vunpack.c.h.b16 %v346
    %v1543 = vunpack.c.l.b16 %v347
    %v1544 = vunpack.c.h.b16 %v347
    %v1545 = vunpack.c.l.b16 %v348
    %v1546 = vunpack.c.h.b16 %v348
    %v1547 = vunpack.c.l.b16 %v349
    %v1548 = vunpack.c.h.b16 %v349
    %v1549 = vunpack.c.l.b16 %v350
    %v1550 = vunpack.c.h.b16 %v350
    %v1551 = vunpack.c.l.b16 %v351
    %v1552 = vunpack.c.h.b16 %v351
    %v1553 = vunpack.c.l.b16 %v352
    %v1554 = vunpack.c.h.b16 %v352
    %v1555 = vunpack.c.l.b16 %v353
    %v1556 = vunpack.c.h.b16 %v353
    %v1557 = vunpack.c.l.b16 %v354
    %v1558 = vunpack.c.h.b16 %v354
    %v1559 = vunpack.c.l.b16 %v355
    %v1560 = vunpack.c.h.b16 %v355
    %v1561 = vunpack.c.l.b16 %v356
    %v1562 = vunpack.c.h.b16 %v356
    %v1563 = vunpack.c.l.b16 %v357
    %v1564 = vunpack.c.h.b16 %v357
    %v1565 = vunpack.c.l.b16 %v358
    %v1566 = vunpack.c.h.b16 %v358
    %v1567 = vunpack.c.l.b16 %v359
    %v1568 = vunpack.c.h.b16 %v359
    %v1569 = vunpack.c.l.b16 %v360
    %v1570 = vunpack.c.h.b16 %v360
    %v1571 = vunpack.c.l.b16 %v361
    %v1572 = vunpack.c.h.b16 %v361
    %v1573 = vunpack.c.l.b16 %v362
    %v1574 = vunpack.c.h.b16 %v362
    %v1575 = vunpack.c.l.b16 %v363
    %v1576 = vunpack.c.h.b16 %v363
    %v1577 = vunpack.c.l.b16 %v364
    %v1578 = vunpack.c.h.b16 %v364
    %v1579 = vunpack.c.l.b16 %v365
    %v1580 = vunpack.c.h.b16 %v365
    %v1581 = vunpack.c.l.b16 %v366
    %v1582 = vunpack.c.h.b16 %v366
    %v1583 = vunpack.c.l.b16 %v367
    %v1584 = vunpack.c.h.b16 %v367
    %v1585 = vunpack.c.l.b16 %v368
    %v1586 = vunpack.c.h.b16 %v368
    %v1587 = vunpack.c.l.b16 %v369
    %v1588 = vunpack.c.h.b16 %v369
    %v1589 = vunpack.c.l.b16 %v370
    %v1590 = vunpack.c.h.b16 %v370
    %v1591 = vunpack.c.l.b16 %v371
    %v1592 = vunpack.c.h.b16 %v371
    %v1593 = vunpack.c.l.b16 %v372
    %v1594 = vunpack.c.h.b16 %v372
    %v1595 = vunpack.c.l.b16 %v373
    %v1596 = vunpack.c.h.b16 %v373
    %v1597 = vunpack.c.l.b16 %v374
    %v1598 = vunpack.c.h.b16 %v374
    %v1599 = vunpack.c.l.b16 %v375
    %v1600 = vunpack.c.h.b16 %v375
    %v1601 = vunpack.c.l.b16 %v376
    %v1602 = vunpack.c.h.b16 %v376
    %v1603 = vunpack.c.l.b16 %v377
    %v1604 = vunpack.c.h.b16 %v377
    %v1605 = vunpack.c.l.b16 %v378
    %v1606 = vunpack.c.h.b16 %v378
    %v1607 = vunpack.c.l.b16 %v379
    %v1608 = vunpack.c.h.b16 %v379
    %v1609 = vunpack.c.l.b16 %v380
    %v1610 = vunpack.c.h.b16 %v380
    %v1611 = vunpack.c.l.b16 %v381
    %v1612 = vunpack.c.h.b16 %v381
    %v1613 = vunpack.c.l.b16 %v382
    %v1614 = vunpack.c.h.b16 %v382
    %v1615 = vunpack.c.l.b16 %v383
    %v1616 = vunpack.c.h.b16 %v383
    %v1617 = vunpack.c.l.b16 %v384
    %v1618 = vunpack.c.h.b16 %v384
    %v1619 = vunpack.c.l.b16 %v385
    %v1620 = vunpack.c.h.b16 %v385
    %v1621 = vunpack.c.l.b16 %v386
    %v1622 = vunpack.c.h.b16 %v386
    %v1623 = vunpack.c.l.b16 %v387
    %v1624 = vunpack.c.h.b16 %v387
    %v1625 = vunpack.c.l.b16 %v388
    %v1626 = vunpack.c.h.b16 %v388
    %v1627 = vunpack.c.l.b16 %v389
    %v1628 = vunpack.c.h.b16 %v389
    %v1629 = vunpack.c.l.b16 %v390
    %v1630 = vunpack.c.h.b16 %v390
    %v1631 = vunpack.c.l.b16 %v391
    %v1632 = vunpack.c.h.b16 %v391
    %v1633 = vunpack.c.l.b16 %v392
    %v1634 = vunpack.c.h.b16 %v392
    %v1635 = vunpack.c.l.b16 %v393
    %v1636 = vunpack.c.h.b16 %v393
    %v1637 = vunpack.c.l.b16 %v394
    %v1638 = vunpack.c.h.b16 %v394
    %v1639 = vunpack.c.l.b16 %v395
    %v1640 = vunpack.c.h.b16 %v395
    %v1641 = vunpack.c.l.b16 %v396
    %v1642 = vunpack.c.h.b16 %v396
    %v1643 = vunpack.c.l.b16 %v397
    %v1644 = vunpack.c.h.b16 %v397
    %v1645 = vunpack.c.l.b16 %v398
    %v1646 = vunpack.c.h.b16 %v398
    %v1647 = vunpack.c.l.b16 %v399
    %v1648 = vunpack.c.h.b16 %v399
    %v1649 = vunpack.c.l.b16 %v400
    %v1650 = vunpack.c.h.b16 %v400
    %v1651 = vunpack.c.l.b16 %v401
    %v1652 = vunpack.c.h.b16 %v401
    %v1653 = vunpack.c.l.b16 %v402
    %v1654 = vunpack.c.h.b16 %v402
    %v1655 = vunpack.c.l.b16 %v403
    %v1656 = vunpack.c.h.b16 %v403
    %v1657 = vunpack.c.l.b16 %v404
    %v1658 = vunpack.c.h.b16 %v404
    %v1659 = vunpack.c.l.b16 %v405
    %v1660 = vunpack.c.h.b16 %v405
    %v1661 = vunpack.c.l.b16 %v406
    %v1662 = vunpack.c.h.b16 %v406
    %v1663 = vunpack.c.l.b16 %v407
    %v1664 = vunpack.c.h.b16 %v407
    %v1665 = vunpack.c.l.b16 %v408
    %v1666 = vunpack.c.h.b16 %v408
    %v1667 = vunpack.c.l.b16 %v409
    %v1668 = vunpack.c.h.b16 %v409
    %v1669 = vunpack.c.l.b16 %v410
    %v1670 = vunpack.c.h.b16 %v410
    %v1671 = vunpack.c.l.b16 %v411
    %v1672 = vunpack.c.h.b16 %v411
    %v1673 = vunpack.c.l.b16 %v412
    %v1674 = vunpack.c.h.b16 %v412
    %v1675 = vunpack.c.l.b16 %v413
    %v1676 = vunpack.c.h.b16 %v413
    %v1677 = vunpack.c.l.b16 %v414
    %v1678 = vunpack.c.h.b16 %v414
    %v1679 = vunpack.c.l.b16 %v415
    %v1680 = vunpack.c.h.b16 %v415
    %v1681 = vunpack.c.l.b16 %v416
    %v1682 = vunpack.c.h.b16 %v416
    %v1683 = vunpack.c.l.b16 %v417
    %v1684 = vunpack.c.h.b16 %v417
    %v1685 = vunpack.c.l.b16 %v418
    %v1686 = vunpack.c.h.b16 %v418
    %v1687 = vunpack.c.l.b16 %v419
    %v1688 = vunpack.c.h.b16 %v419
    %v1689 = vunpack.c.l.b16 %v420
    %v1690 = vunpack.c.h.b16 %v420
    %v1691 = vunpack.c.l.b16 %v421
    %v1692 = vunpack.c.h.b16 %v421
    %v1693 = vunpack.c.l.b16 %v422
    %v1694 = vunpack.c.h.b16 %v422
    %v1695 = vunpack.c.l.b16 %v423
    %v1696 = vunpack.c.h.b16 %v423
    %v1697 = vunpack.c.l.b16 %v424
    %v1698 = vunpack.c.h.b16 %v424
    %v1699 = vunpack.c.l.b16 %v425
    %v1700 = vunpack.c.h.b16 %v425
    %v1701 = vunpack.c.l.b16 %v426
    %v1702 = vunpack.c.h.b16 %v426
    %v1703 = vunpack.c.l.b16 %v427
    %v1704 = vunpack.c.h.b16 %v427
    %v1705 = vunpack.c.l.b16 %v428
    %v1706 = vunpack.c.h.b16 %v428
    %v1707 = vunpack.c.l.b16 %v429
    %v1708 = vunpack.c.h.b16 %v429
    %v1709 = vunpack.c.l.b16 %v430
    %v1710 = vunpack.c.h.b16 %v430
    %v1711 = vunpack.c.l.b16 %v431
    %v1712 = vunpack.c.h.b16 %v431
    %v1713 = vunpack.c.l.b16 %v432
    %v1714 = vunpack.c.h.b16 %v432
    %v1715 = vunpack.c.l.b16 %v433
    %v1716 = vunpack.c.h.b16 %v433
    %v1717 = vunpack.c.l.b16 %v434
    %v1718 = vunpack.c.h.b16 %v434
    %v1719 = vunpack.c.l.b16 %v435
    %v1720 = vunpack.c.h.b16 %v435
    %v1721 = vunpack.c.l.b16 %v436
    %v1722 = vunpack.c.h.b16 %v436
    %v1723 = vunpack.c.l.b16 %v437
    %v1724 = vunpack.c.h.b16 %v437
    %v1725 = vunpack.c.l.b16 %v438
    %v1726 = vunpack.c.h.b16 %v438
    %v1727 = vunpack.c.l.b16 %v439
    %v1728 = vunpack.c.h.b16 %v439
    %v1729 = vunpack.c.l.b16 %v440
    %v1730 = vunpack.c.h.b16 %v440
    %v1731 = vunpack.c.l.b16 %v441
    %v1732 = vunpack.c.h.b16 %v441
    %v1733 = vunpack.c.l.b16 %v442
    %v1734 = vunpack.c.h.b16 %v442
    %v1735 = vunpack.c.l.b16 %v443
    %v1736 = vunpack.c.h.b16 %v443
    %v1737 = vunpack.c.l.b16 %v444
    %v1738 = vunpack.c.h.b16 %v444
    %v1739 = vunpack.c.l.b16 %v445
    %v1740 = vunpack.c.h.b16 %v445
    %v1741 = vunpack.c.l.b16 %v446
    %v1742 = vunpack.c.h.b16 %v446
    %v1743 = vunpack.c.l.b16 %v447
    %v1744 = vunpack.c.h.b16 %v447
    %v1745 = vunpack.c.l.b16 %v448
    %v1746 = vunpack.c.h.b16 %v448
    %v1747 = vunpack.c.l.b16 %v449
    %v1748 = vunpack.c.h.b16 %v449
    %v1749 = vunpack.c.l.b16 %v450
    %v1750 = vunpack.c.h.b16 %v450
    %v1751 = vunpack.c.l.b16 %v451
    %v1752 = vunpack.c.h.b16 %v451
    %v1753 = vunpack.c.l.b16 %v452
    %v1754 = vunpack.c.h.b16 %v452
    %v1755 = vunpack.c.l.b16 %v453
    %v1756 = vunpack.c.h.b16 %v453
    %v1757 = vunpack.c.l.b16 %v454
    %v1758 = vunpack.c.h.b16 %v454
    %v1759 = vunpack.c.l.b16 %v455
    %v1760 = vunpack.c.h.b16 %v455
    %v1761 = vunpack.c.l.b16 %v456
    %v1762 = vunpack.c.h.b16 %v456
    %v1763 = vunpack.c.l.b16 %v457
    %v1764 = vunpack.c.h.b16 %v457
    %v1765 = vunpack.c.l.b16 %v458
    %v1766 = vunpack.c.h.b16 %v458
    %v1767 = vunpack.c.l.b16 %v459
    %v1768 = vunpack.c.h.b16 %v459
    %v1769 = vunpack.c.l.b16 %v460
    %v1770 = vunpack.c.h.b16 %v460
    %v1771 = vunpack.c.l.b16 %v461
    %v1772 = vunpack.c.h.b16 %v461
    %v1773 = vunpack.c.l.b16 %v462
    %v1774 = vunpack.c.h.b16 %v462
    %v1775 = vunpack.c.l.b16 %v463
    %v1776 = vunpack.c.h.b16 %v463
    %v1777 = vunpack.c.l.b16 %v464
    %v1778 = vunpack.c.h.b16 %v464
    %v1779 = vunpack.c.l.b16 %v465
    %v1780 = vunpack.c.h.b16 %v465
    %v1781 = vunpack.c.l.b16 %v466
    %v1782 = vunpack.c.h.b16 %v466
    %v1783 = vunpack.c.l.b16 %v467
    %v1784 = vunpack.c.h.b16 %v467
    %v1785 = vunpack.c.l.b16 %v468
    %v1786 = vunpack.c.h.b16 %v468
    %v1787 = vunpack.c.l.b16 %v469
    %v1788 = vunpack.c.h.b16 %v469
    %v1789 = vunpack.c.l.b16 %v470
    %v1790 = vunpack.c.h.b16 %v470
    %v1791 = vunpack.c.l.b16 %v471
    %v1792 = vunpack.c.h.b16 %v471
    %v1793 = vunpack.c.l.b16 %v472
    %v1794 = vunpack.c.h.b16 %v472
    %v1795 = vunpack.c.l.b16 %v473
    %v1796 = vunpack.c.h.b16 %v473
    %v1797 = vunpack.c.l.b16 %v474
    %v1798 = vunpack.c.h.b16 %v474
    %v1799 = vunpack.c.l.b16 %v475
    %v1800 = vunpack.c.h.b16 %v475
    %v1801 = vunpack.c.l.b16 %v476
    %v1802 = vunpack.c.h.b16 %v476
    %v1803 = vunpack.c.l.b16 %v477
    %v1804 = vunpack.c.h.b16 %v477
    %v1805 = vunpack.c.l.b16 %v478
    %v1806 = vunpack.c.h.b16 %v478
    %v1807 = vunpack.c.l.b16 %v479
    %v1808 = vunpack.c.h.b16 %v479
    %v1809 = vunpack.c.l.b16 %v480
    %v1810 = vunpack.c.h.b16 %v480
    %v1811 = vunpack.c.l.b16 %v481
    %v1812 = vunpack.c.h.b16 %v481
    %v1813 = vunpack.c.l.b16 %v482
    %v1814 = vunpack.c.h.b16 %v482
    %v1815 = vunpack.c.l.b16 %v483
    %v1816 = vunpack.c.h.b16 %v483
    %v1817 = vunpack.c.l.b16 %v484
    %v1818 = vunpack.c.h.b16 %v484
    %v1819 = vunpack.c.l.b16 %v485
    %v1820 = vunpack.c.h.b16 %v485
    %v1821 = vunpack.c.l.b16 %v486
    %v1822 = vunpack.c.h.b16 %v486
    %v1823 = vunpack.c.l.b16 %v487
    %v1824 = vunpack.c.h.b16 %v487
    %v1825 = vunpack.c.l.b16 %v488
    %v1826 = vunpack.c.h.b16 %v488
    %v1827 = vunpack.c.l.b16 %v489
    %v1828 = vunpack.c.h.b16 %v489
    %v1829 = vunpack.c.l.b16 %v490
    %v1830 = vunpack.c.h.b16 %v490
    %v1831 = vunpack.c.l.b16 %v491
    %v1832 = vunpack.c.h.b16 %v491
    %v1833 = vunpack.c.l.b16 %v492
    %v1834 = vunpack.c.h.b16 %v492
    %v1835 = vunpack.c.l.b16 %v493
    %v1836 = vunpack.c.h.b16 %v493
    %v1837 = vunpack.c.l.b16 %v494
    %v1838 = vunpack.c.h.b16 %v494
    %v1839 = vunpack.c.l.b16 %v495
    %v1840 = vunpack.c.h.b16 %v495
    %v1841 = vunpack.c.l.b16 %v496
    %v1842 = vunpack.c.h.b16 %v496
    %v1843 = vunpack.c.l.b16 %v497
    %v1844 = vunpack.c.h.b16 %v497
    %v1845 = vunpack.c.l.b16 %v498
    %v1846 = vunpack.c.h.b16 %v498
    %v1847 = vunpack.c.l.b16 %v499
    %v1848 = vunpack.c.h.b16 %v499
    %v1849 = vunpack.c.l.b16 %v500
    %v1850 = vunpack.c.h.b16 %v500
    %v1851 = vunpack.c.l.b16 %v501
    %v1852 = vunpack.c.h.b16 %v501
    %v1853 = vunpack.c.l.b16 %v502
    %v1854 = vunpack.c.h.b16 %v502
    %v1855 = vunpack.c.l.b16 %v503
    %v1856 = vunpack.c.h.b16 %v503
    %v1857 = vunpack.c.l.b16 %v504
    %v1858 = vunpack.c.h.b16 %v504
    %v1859 = vunpack.c.l.b16 %v505
    %v1860 = vunpack.c.h.b16 %v505
    %v1861 = vunpack.c.l.b16 %v506
    %v1862 = vunpack.c.h.b16 %v506
    %v1863 = vunpack.c.l.b16 %v507
    %v1864 = vunpack.c.h.b16 %v507
    %v1865 = vunpack.c.l.b16 %v508
    %v1866 = vunpack.c.h.b16 %v508
    %v1867 = vunpack.c.l.b16 %v509
    %v1868 = vunpack.c.h.b16 %v509
    %v1869 = vunpack.c.l.b16 %v510
    %v1870 = vunpack.c.h.b16 %v510
    %v1871 = vunpack.c.l.b16 %v511
    %v1872 = vunpack.c.h.b16 %v511
    %v1873 = vunpack.c.l.b16 %v512
    %v1874 = vunpack.c.h.b16 %v512
    %v1875 = vunpack.c.l.b16 %v513
    %v1876 = vunpack.c.h.b16 %v513
    %v1877 = vunpack.c.l.b16 %v514
    %v1878 = vunpack.c.h.b16 %v514
    %v1879 = vunpack.c.l.b16 %v515
    %v1880 = vunpack.c.h.b16 %v515
    %v1881 = vunpack.c.l.b16 %v516
    %v1882 = vunpack.c.h.b16 %v516
    %v1883 = vunpack.c.l.b16 %v517
    %v1884 = vunpack.c.h.b16 %v517
    %v1885 = vunpack.c.l.b16 %v518
    %v1886 = vunpack.c.h.b16 %v518
    %v1887 = vunpack.c.l.b16 %v519
    %v1888 = vunpack.c.h.b16 %v519
    %v1889 = vunpack.c.l.b16 %v520
    %v1890 = vunpack.c.h.b16 %v520
    %v1891 = vunpack.c.l.b16 %v521
    %v1892 = vunpack.c.h.b16 %v521
    %v1893 = vunpack.c.l.b16 %v522
    %v1894 = vunpack.c.h.b16 %v522
    %v1895 = vunpack.c.l.b16 %v523
    %v1896 = vunpack.c.h.b16 %v523
    %v1897 = vunpack.c.l.b16 %v524
    %v1898 = vunpack.c.h.b16 %v524
    %v1899 = vunpack.c.l.b16 %v525
    %v1900 = vunpack.c.h.b16 %v525
    %v1901 = vunpack.c.l.b16 %v526
    %v1902 = vunpack.c.h.b16 %v526
    %v1903 = vunpack.c.l.b16 %v527
    %v1904 = vunpack.c.h.b16 %v527
    %v1905 = vunpack.c.l.b16 %v528
    %v1906 = vunpack.c.h.b16 %v528
    %v1907 = vunpack.c.l.b16 %v529
    %v1908 = vunpack.c.h.b16 %v529
    %v1909 = vunpack.c.l.b16 %v530
    %v1910 = vunpack.c.h.b16 %v530
    %v1911 = vunpack.c.l.b16 %v531
    %v1912 = vunpack.c.h.b16 %v531
    %v1913 = vunpack.c.l.b16 %v532
    %v1914 = vunpack.c.h.b16 %v532
    %v1915 = vunpack.c.l.b16 %v533
    %v1916 = vunpack.c.h.b16 %v533
    %v1917 = vunpack.c.l.b16 %v534
    %v1918 = vunpack.c.h.b16 %v534
    %v1919 = vunpack.c.l.b16 %v535
    %v1920 = vunpack.c.h.b16 %v535
    %v1921 = vunpack.c.l.b16 %v536
    %v1922 = vunpack.c.h.b16 %v536
    %v1923 = vunpack.c.l.b16 %v537
    %v1924 = vunpack.c.h.b16 %v537
    %v1925 = vunpack.c.l.b16 %v538
    %v1926 = vunpack.c.h.b16 %v538
    %v1927 = vunpack.c.l.b16 %v539
    %v1928 = vunpack.c.h.b16 %v539
    %v1929 = vunpack.c.l.b16 %v540
    %v1930 = vunpack.c.h.b16 %v540
    %v1931 = vunpack.c.l.b16 %v541
    %v1932 = vunpack.c.h.b16 %v541
    %v1933 = vunpack.c.l.b16 %v542
    %v1934 = vunpack.c.h.b16 %v542
    %v1935 = vunpack.c.l.b16 %v543
    %v1936 = vunpack.c.h.b16 %v543
    %v1937 = vunpack.c.l.b16 %v544
    %v1938 = vunpack.c.h.b16 %v544
    %v1939 = vunpack.c.l.b16 %v545
    %v1940 = vunpack.c.h.b16 %v545
    %v1941 = vunpack.c.l.b16 %v546
    %v1942 = vunpack.c.h.b16 %v546
    %v1943 = vunpack.c.l.b16 %v547
    %v1944 = vunpack.c.h.b16 %v547
    %v1945 = vunpack.c.l.b16 %v548
    %v1946 = vunpack.c.h.b16 %v548
    %v1947 = vunpack.c.l.b16 %v549
    %v1948 = vunpack.c.h.b16 %v549
    %v1949 = vunpack.c.l.b16 %v550
    %v1950 = vunpack.c.h.b16 %v550
    %v1951 = vunpack.c.l.b16 %v551
    %v1952 = vunpack.c.h.b16 %v551
    %v1953 = vunpack.c.l.b16 %v552
    %v1954 = vunpack.c.h.b16 %v552
    %v1955 = vunpack.c.l.b16 %v553
    %v1956 = vunpack.c.h.b16 %v553
    %v1957 = vunpack.c.l.b16 %v554
    %v1958 = vunpack.c.h.b16 %v554
    %v1959 = vunpack.c.l.b16 %v555
    %v1960 = vunpack.c.h.b16 %v555
    %v1961 = vunpack.c.l.b16 %v556
    %v1962 = vunpack.c.h.b16 %v556
    %v1963 = vunpack.c.l.b16 %v557
    %v1964 = vunpack.c.h.b16 %v557
    %v1965 = vunpack.c.l.b16 %v558
    %v1966 = vunpack.c.h.b16 %v558
    %v1967 = vunpack.c.l.b16 %v559
    %v1968 = vunpack.c.h.b16 %v559
    %v1969 = vunpack.c.l.b16 %v560
    %v1970 = vunpack.c.h.b16 %v560
    %v1971 = vunpack.c.l.b16 %v561
    %v1972 = vunpack.c.h.b16 %v561
    %v1973 = vunpack.c.l.b16 %v562
    %v1974 = vunpack.c.h.b16 %v562
    %v1975 = vunpack.c.l.b16 %v563
    %v1976 = vunpack.c.h.b16 %v563
    %v1977 = vunpack.c.l.b16 %v564
    %v1978 = vunpack.c.h.b16 %v564
    %v1979 = vunpack.c.l.b16 %v565
    %v1980 = vunpack.c.h.b16 %v565
    %v1981 = vunpack.c.l.b16 %v566
    %v1982 = vunpack.c.h.b16 %v566
    %v1983 = vunpack.c.l.b16 %v567
    %v1984 = vunpack.c.h.b16 %v567
    %v1985 = vunpack.c.l.b16 %v568
    %v1986 = vunpack.c.h.b16 %v568
    %v1987 = vunpack.c.l.b16 %v569
    %v1988 = vunpack.c.h.b16 %v569
    %v1989 = vunpack.c.l.b16 %v570
    %v1990 = vunpack.c.h.b16 %v570
    %v1991 = vunpack.c.l.b16 %v571
    %v1992 = vunpack.c.h.b16 %v571
    %v1993 = vunpack.c.l.b16 %v572
    %v1994 = vunpack.c.h.b16 %v572
    %v1995 = vpack.c.b16 %v1107, %v1099
    %v1996 = vpack.c.b16 %v1108, %v1100
    %v1997 = vpack.c.b16 %v1109, %v1101
    %v1998 = vpack.c.b16 %v1110, %v1102
    %v1999 = vpack.c.b16 %v1111, %v1103
    %v2000 = vpack.c.b16 %v1112, %v1104
    %v2001 = vpack.c.b16 %v1113, %v1105
    %v2002 = vpack.c.b16 %v1114, %v1106
    %v2003 = vpack.c.b16 %v1123, %v1115
    %v2004 = vpack.c.b16 %v1124, %v1116
    %v2005 = vpack.c.b16 %v1125, %v1117
    %v2006 = vpack.c.b16 %v1126, %v1118
    %v2007 = vpack.c.b16 %v1127, %v1119
    %v2008 = vpack.c.b16 %v1128, %v1120
    %v2009 = vpack.c.b16 %v1129, %v1121
    %v2010 = vpack.c.b16 %v1130, %v1122
    %v2011 = vpack.c.b16 %v1139, %v1131
    %v2012 = vpack.c.b16 %v1140, %v1132
    %v2013 = vpack.c.b16 %v1141, %v1133
    %v2014 = vpack.c.b16 %v1142, %v1134
    %v2015 = vpack.c.b16 %v1143, %v1135
    %v2016 = vpack.c.b16 %v1144, %v1136
    %v2017 = vpack.c.b16 %v1145, %v1137
    %v2018 = vpack.c.b16 %v1146, %v1138
    %v2019 = vpack.c.b16 %v1155, %v1147
    %v2020 = vpack.c.b16 %v1156, %v1148
    %v2021 = vpack.c.b16 %v1157, %v1149
    %v2022 = vpack.c.b16 %v1158, %v1150
    %v2023 = vpack.c.b16 %v1159, %v1151
    %v2024 = vpack.c.b16 %v1160, %v1152
    %v2025 = vpack.c.b16 %v1161, %v1153
    %v2026 = vpack.c.b16 %v1162, %v1154
    %v2027 = vpack.c.b16 %v1171, %v1163
    %v2028 = vpack.c.b16 %v1172, %v1164
    %v2029 = vpack.c.b16 %v1173, %v1165
    %v2030 = vpack.c.b16 %v1174, %v1166
    %v2031 = vpack.c.b16 %v1175, %v1167
    %v2032 = vpack.c.b16 %v1176, %v1168
    %v2033 = vpack.c.b16 %v1177, %v1169
    %v2034 = vpack.c.b16 %v1178, %v1170
    %v2035 = vpack.c.b16 %v1187, %v1179
    %v2036 = vpack.c.b16 %v1188, %v1180
    %v2037 = vpack.c.b16 %v1189, %v1181
    %v2038 = vpack.c.b16 %v1190, %v1182
    %v2039 = vpack.c.b16 %v1191, %v1183
    %v2040 = vpack.c.b16 %v1192, %v1184
    %v2041 = vpack.c.b16 %v1193, %v1185
    %v2042 = vpack.c.b16 %v1194, %v1186
    %v2043 = vpack.c.b16 %v1203, %v1195
    %v2044 = vpack.c.b16 %v1204, %v1196
    %v2045 = vpack.c.b16 %v1205, %v1197
    %v2046 = vpack.c.b16 %v1206, %v1198
    %v2047 = vpack.c.b16 %v1207, %v1199
    %v2048 = vpack.c.b16 %v1208, %v1200
    %v2049 = vpack.c.b16 %v1209, %v1201
    %v2050 = vpack.c.b16 %v1210, %v1202
    %v2051 = vpack.c.b16 %v1219, %v1211
    %v2052 = vpack.c.b16 %v1220, %v1212
    %v2053 = vpack.c.b16 %v1221, %v1213
    %v2054 = vpack.c.b16 %v1222, %v1214
    %v2055 = vpack.c.b16 %v1223, %v1215
    %v2056 = vpack.c.b16 %v1224, %v1216
    %v2057 = vpack.c.b16 %v1225, %v1217
    %v2058 = vpack.c.b16 %v1226, %v1218
    %v2059 = vpack.c.b16 %v1235, %v1227
    %v2060 = vpack.c.b16 %v1236, %v1228
    %v2061 = vpack.c.b16 %v1237, %v1229
    %v2062 = vpack.c.b16 %v1238, %v1230
    %v2063 = vpack.c.b16 %v1239, %v1231
    %v2064 = vpack.c.b16 %v1240, %v1232
    %v2065 = vpack.c.b16 %v1241, %v1233
    %v2066 = vpack.c.b16 %v1242, %v1234
    %v2067 = vpack.c.b16 %v1251, %v1243
    %v2068 = vpack.c.b16 %v1252, %v1244
    %v2069 = vpack.c.b16 %v1253, %v1245
    %v2070 = vpack.c.b16 %v1254, %v1246
    %v2071 = vpack.c.b16 %v1255, %v1247
    %v2072 = vpack.c.b16 %v1256, %v1248
    %v2073 = vpack.c.b16 %v1257, %v1249
    %v2074 = vpack.c.b16 %v1258, %v1250
    %v2075 = vpack.c.b16 %v1267, %v1259
    %v2076 = vpack.c.b16 %v1268, %v1260
    %v2077 = vpack.c.b16 %v1269, %v1261
    %v2078 = vpack.c.b16 %v1270, %v1262
    %v2079 = vpack.c.b16 %v1271, %v1263
    %v2080 = vpack.c.b16 %v1272, %v1264
    %v2081 = vpack.c.b16 %v1273, %v1265
    %v2082 = vpack.c.b16 %v1274, %v1266
    %v2083 = vpack.c.b16 %v1283, %v1275
    %v2084 = vpack.c.b16 %v1284, %v1276
    %v2085 = vpack.c.b16 %v1285, %v1277
    %v2086 = vpack.c.b16 %v1286, %v1278
    %v2087 = vpack.c.b16 %v1287, %v1279
    %v2088 = vpack.c.b16 %v1288, %v1280
    %v2089 = vpack.c.b16 %v1289, %v1281
    %v2090 = vpack.c.b16 %v1290, %v1282
    %v2091 = vpack.c.b16 %v1299, %v1291
    %v2092 = vpack.c.b16 %v1300, %v1292
    %v2093 = vpack.c.b16 %v1301, %v1293
    %v2094 = vpack.c.b16 %v1302, %v1294
    %v2095 = vpack.c.b16 %v1303, %v1295
    %v2096 = vpack.c.b16 %v1304, %v1296
    %v2097 = vpack.c.b16 %v1305, %v1297
    %v2098 = vpack.c.b16 %v1306, %v1298
    %v2099 = vpack.c.b16 %v1315, %v1307
    %v2100 = vpack.c.b16 %v1316, %v1308
    %v2101 = vpack.c.b16 %v1317, %v1309
    %v2102 = vpack.c.b16 %v1318, %v1310
    %v2103 = vpack.c.b16 %v1319, %v1311
    %v2104 = vpack.c.b16 %v1320, %v1312
    %v2105 = vpack.c.b16 %v1321, %v1313
    %v2106 = vpack.c.b16 %v1322, %v1314
    %v2107 = vpack.c.b16 %v1331, %v1323
    %v2108 = vpack.c.b16 %v1332, %v1324
    %v2109 = vpack.c.b16 %v1333, %v1325
    %v2110 = vpack.c.b16 %v1334, %v1326
    %v2111 = vpack.c.b16 %v1335, %v1327
    %v2112 = vpack.c.b16 %v1336, %v1328
    %v2113 = vpack.c.b16 %v1337, %v1329
    %v2114 = vpack.c.b16 %v1338, %v1330
    %v2115 = vpack.c.b16 %v1347, %v1339
    %v2116 = vpack.c.b16 %v1348, %v1340
    %v2117 = vpack.c.b16 %v1349, %v1341
    %v2118 = vpack.c.b16 %v1350, %v1342
    %v2119 = vpack.c.b16 %v1351, %v1343
    %v2120 = vpack.c.b16 %v1352, %v1344
    %v2121 = vpack.c.b16 %v1353, %v1345
    %v2122 = vpack.c.b16 %v1354, %v1346
    %v2123 = vpack.c.b16 %v1363, %v1355
    %v2124 = vpack.c.b16 %v1364, %v1356
    %v2125 = vpack.c.b16 %v1365, %v1357
    %v2126 = vpack.c.b16 %v1366, %v1358
    %v2127 = vpack.c.b16 %v1367, %v1359
    %v2128 = vpack.c.b16 %v1368, %v1360
    %v2129 = vpack.c.b16 %v1369, %v1361
    %v2130 = vpack.c.b16 %v1370, %v1362
    %v2131 = vpack.c.b16 %v1379, %v1371
    %v2132 = vpack.c.b16 %v1380, %v1372
    %v2133 = vpack.c.b16 %v1381, %v1373
    %v2134 = vpack.c.b16 %v1382, %v1374
    %v2135 = vpack.c.b16 %v1383, %v1375
    %v2136 = vpack.c.b16 %v1384, %v1376
    %v2137 = vpack.c.b16 %v1385, %v1377
    %v2138 = vpack.c.b16 %v1386, %v1378
    %v2139 = vpack.c.b16 %v1395, %v1387
    %v2140 = vpack.c.b16 %v1396, %v1388
    %v2141 = vpack.c.b16 %v1397, %v1389
    %v2142 = vpack.c.b16 %v1398, %v1390
    %v2143 = vpack.c.b16 %v1399, %v1391
    %v2144 = vpack.c.b16 %v1400, %v1392
    %v2145 = vpack.c.b16 %v1401, %v1393
    %v2146 = vpack.c.b16 %v1402, %v1394
    %v2147 = vpack.c.b16 %v1411, %v1403
    %v2148 = vpack.c.b16 %v1412, %v1404
    %v2149 = vpack.c.b16 %v1413, %v1405
    %v2150 = vpack.c.b16 %v1414, %v1406
    %v2151 = vpack.c.b16 %v1415, %v1407
    %v2152 = vpack.c.b16 %v1416, %v1408
    %v2153 = vpack.c.b16 %v1417, %v1409
    %v2154 = vpack.c.b16 %v1418, %v1410
    %v2155 = vpack.c.b16 %v1427, %v1419
    %v2156 = vpack.c.b16 %v1428, %v1420
    %v2157 = vpack.c.b16 %v1429, %v1421
    %v2158 = vpack.c.b16 %v1430, %v1422
    %v2159 = vpack.c.b16 %v1431, %v1423
    %v2160 = vpack.c.b16 %v1432, %v1424
    %v2161 = vpack.c.b16 %v1433, %v1425
    %v2162 = vpack.c.b16 %v1434, %v1426
    %v2163 = vpack.c.b16 %v1443, %v1435
    %v2164 = vpack.c.b16 %v1444, %v1436
    %v2165 = vpack.c.b16 %v1445, %v1437
    %v2166 = vpack.c.b16 %v1446, %v1438
    %v2167 = vpack.c.b16 %v1447, %v1439
    %v2168 = vpack.c.b16 %v1448, %v1440
    %v2169 = vpack.c.b16 %v1449, %v1441
    %v2170 = vpack.c.b16 %v1450, %v1442
    %v2171 = vpack.c.b16 %v1459, %v1451
    %v2172 = vpack.c.b16 %v1460, %v1452
    %v2173 = vpack.c.b16 %v1461, %v1453
    %v2174 = vpack.c.b16 %v1462, %v1454
    %v2175 = vpack.c.b16 %v1463, %v1455
    %v2176 = vpack.c.b16 %v1464, %v1456
    %v2177 = vpack.c.b16 %v1465, %v1457
    %v2178 = vpack.c.b16 %v1466, %v1458
    %v2179 = vpack.c.b16 %v1475, %v1467
    %v2180 = vpack.c.b16 %v1476, %v1468
    %v2181 = vpack.c.b16 %v1477, %v1469
    %v2182 = vpack.c.b16 %v1478, %v1470
    %v2183 = vpack.c.b16 %v1479, %v1471
    %v2184 = vpack.c.b16 %v1480, %v1472
    %v2185 = vpack.c.b16 %v1481, %v1473
    %v2186 = vpack.c.b16 %v1482, %v1474
    %v2187 = vpack.c.b16 %v1491, %v1483
    %v2188 = vpack.c.b16 %v1492, %v1484
    %v2189 = vpack.c.b16 %v1493, %v1485
    %v2190 = vpack.c.b16 %v1494, %v1486
    %v2191 = vpack.c.b16 %v1495, %v1487
    %v2192 = vpack.c.b16 %v1496, %v1488
    %v2193 = vpack.c.b16 %v1497, %v1489
    %v2194 = vpack.c.b16 %v1498, %v1490
    %v2195 = vpack.c.b16 %v1507, %v1499
    %v2196 = vpack.c.b16 %v1508, %v1500
    %v2197 = vpack.c.b16 %v1509, %v1501
    %v2198 = vpack.c.b16 %v1510, %v1502
    %v2199 = vpack.c.b16 %v1511, %v1503
    %v2200 = vpack.c.b16 %v1512, %v1504
    %v2201 = vpack.c.b16 %v1513, %v1505
    %v2202 = vpack.c.b16 %v1514, %v1506
    %v2203 = vpack.c.b16 %v1523, %v1515
    %v2204 = vpack.c.b16 %v1524, %v1516
    %v2205 = vpack.c.b16 %v1525, %v1517
    %v2206 = vpack.c.b16 %v1526, %v1518
    %v2207 = vpack.c.b16 %v1527, %v1519
    %v2208 = vpack.c.b16 %v1528, %v1520
    %v2209 = vpack.c.b16 %v1529, %v1521
    %v2210 = vpack.c.b16 %v1530, %v1522
    %v2211 = vpack.c.b16 %v1539, %v1531
    %v2212 = vpack.c.b16 %v1540, %v1532
    %v2213 = vpack.c.b16 %v1541, %v1533
    %v2214 = vpack.c.b16 %v1542, %v1534
    %v2215 = vpack.c.b16 %v1543, %v1535
    %v2216 = vpack.c.b16 %v1544, %v1536
    %v2217 = vpack.c.b16 %v1545, %v1537
    %v2218 = vpack.c.b16 %v1546, %v1538
    %v2219 = vpack.c.b16 %v1555, %v1547
    %v2220 = vpack.c.b16 %v1556, %v1548
    %v2221 = vpack.c.b16 %v1557, %v1549
    %v2222 = vpack.c.b16 %v1558, %v1550
    %v2223 = vpack.c.b16 %v1559, %v1551
    %v2224 = vpack.c.b16 %v1560, %v1552
    %v2225 = vpack.c.b16 %v1561, %v1553
    %v2226 = vpack.c.b16 %v1562, %v1554
    %v2227 = vpack.c.b16 %v1571, %v1563
    %v2228 = vpack.c.b16 %v1572, %v1564
    %v2229 = vpack.c.b16 %v1573, %v1565
    %v2230 = vpack.c.b16 %v1574, %v1566
    %v2231 = vpack.c.b16 %v1575, %v1567
    %v2232 = vpack.c.b16 %v1576, %v1568
    %v2233 = vpack.c.b16 %v1577, %v1569
    %v2234 = vpack.c.b16 %v1578, %v1570
    %v2235 = vpack.c.b16 %v1587, %v1579
    %v2236 = vpack.c.b16 %v1588, %v1580
    %v2237 = vpack.c.b16 %v1589, %v1581
    %v2238 = vpack.c.b16 %v1590, %v1582
    %v2239 = vpack.c.b16 %v1591, %v1583
    %v2240 = vpack.c.b16 %v1592, %v1584
    %v2241 = vpack.c.b16 %v1593, %v1585
    %v2242 = vpack.c.b16 %v1594, %v1586
    %v2243 = vpack.c.b16 %v1603, %v1595
    %v2244 = vpack.c.b16 %v1604, %v1596
    %v2245 = vpack.c.b16 %v1605, %v1597
    %v2246 = vpack.c.b16 %v1606, %v1598
    %v2247 = vpack.c.b16 %v1607, %v1599
    %v2248 = vpack.c.b16 %v1608, %v1600
    %v2249 = vpack.c.b16 %v1609, %v1601
    %v2250 = vpack.c.b16 %v1610, %v1602
    %v2251 = vpack.c.b16 %v1619, %v1611
    %v2252 = vpack.c.b16 %v1620, %v1612
    %v2253 = vpack.c.b16 %v1621, %v1613
    %v2254 = vpack.c.b16 %v1622, %v1614
    %v2255 = vpack.c.b16 %v1623, %v1615
    %v2256 = vpack.c.b16 %v1624, %v1616
    %v2257 = vpack.c.b16 %v1625, %v1617
    %v2258 = vpack.c.b16 %v1626, %v1618
    %v2259 = vpack.c.b16 %v1635, %v1627
    %v2260 = vpack.c.b16 %v1636, %v1628
    %v2261 = vpack.c.b16 %v1637, %v1629
    %v2262 = vpack.c.b16 %v1638, %v1630
    %v2263 = vpack.c.b16 %v1639, %v1631
    %v2264 = vpack.c.b16 %v1640, %v1632
    %v2265 = vpack.c.b16 %v1641, %v1633
    %v2266 = vpack.c.b16 %v1642, %v1634
    %v2267 = vpack.c.b16 %v1651, %v1643
    %v2268 = vpack.c.b16 %v1652, %v1644
    %v2269 = vpack.c.b16 %v1653, %v1645
    %v2270 = vpack.c.b16 %v1654, %v1646
    %v2271 = vpack.c.b16 %v1655, %v1647
    %v2272 = vpack.c.b16 %v1656, %v1648
    %v2273 = vpack.c.b16 %v1657, %v1649
    %v2274 = vpack.c.b16 %v1658, %v1650
    %v2275 = vpack.c.b16 %v1667, %v1659
    %v2276 = vpack.c.b16 %v1668, %v1660
    %v2277 = vpack.c.b16 %v1669, %v1661
    %v2278 = vpack.c.b16 %v1670, %v1662
    %v2279 = vpack.c.b16 %v1671, %v1663
    %v2280 = vpack.c.b16 %v1672, %v1664
    %v2281 = vpack.c.b16 %v1673, %v1665
    %v2282 = vpack.c.b16 %v1674, %v1666
    %v2283 = vpack.c.b16 %v1683, %v1675
    %v2284 = vpack.c.b16 %v1684, %v1676
    %v2285 = vpack.c.b16 %v1685, %v1677
    %v2286 = vpack.c.b16 %v1686, %v1678
    %v2287 = vpack.c.b16 %v1687, %v1679
    %v2288 = vpack.c.b16 %v1688, %v1680
    %v2289 = vpack.c.b16 %v1689, %v1681
    %v2290 = vpack.c.b16 %v1690, %v1682
    %v2291 = vpack.c.b16 %v1699, %v1691
    %v2292 = vpack.c.b16 %v1700, %v1692
    %v2293 = vpack.c.b16 %v1701, %v1693
    %v2294 = vpack.c.b16 %v1702, %v1694
    %v2295 = vpack.c.b16 %v1703, %v1695
    %v2296 = vpack.c.b16 %v1704, %v1696
    %v2297 = vpack.c.b16 %v1705, %v1697
    %v2298 = vpack.c.b16 %v1706, %v1698
    %v2299 = vpack.c.b16 %v1715, %v1707
    %v2300 = vpack.c.b16 %v1716, %v1708
    %v2301 = vpack.c.b16 %v1717, %v1709
    %v2302 = vpack.c.b16 %v1718, %v1710
    %v2303 = vpack.c.b16 %v1719, %v1711
    %v2304 = vpack.c.b16 %v1720, %v1712
    %v2305 = vpack.c.b16 %v1721, %v1713
    %v2306 = vpack.c.b16 %v1722, %v1714
    %v2307 = vpack.c.b16 %v1731, %v1723
    %v2308 = vpack.c.b16 %v1732, %v1724
    %v2309 = vpack.c.b16 %v1733, %v1725
    %v2310 = vpack.c.b16 %v1734, %v1726
    %v2311 = vpack.c.b16 %v1735, %v1727
    %v2312 = vpack.c.b16 %v1736, %v1728
    %v2313 = vpack.c.b16 %v1737, %v1729
    %v2314 = vpack.c.b16 %v1738, %v1730
    %v2315 = vpack.c.b16 %v1747, %v1739
    %v2316 = vpack.c.b16 %v1748, %v1740
    %v2317 = vpack.c.b16 %v1749, %v1741
    %v2318 = vpack.c.b16 %v1750, %v1742
    %v2319 = vpack.c.b16 %v1751, %v1743
    %v2320 = vpack.c.b16 %v1752, %v1744
    %v2321 = vpack.c.b16 %v1753, %v1745
    %v2322 = vpack.c.b16 %v1754, %v1746
    %v2323 = vpack.c.b16 %v1763, %v1755
    %v2324 = vpack.c.b16 %v1764, %v1756
    %v2325 = vpack.c.b16 %v1765, %v1757
    %v2326 = vpack.c.b16 %v1766, %v1758
    %v2327 = vpack.c.b16 %v1767, %v1759
    %v2328 = vpack.c.b16 %v1768, %v1760
    %v2329 = vpack.c.b16 %v1769, %v1761
    %v2330 = vpack.c.b16 %v1770, %v1762
    %v2331 = vpack.c.b16 %v1779, %v1771
    %v2332 = vpack.c.b16 %v1780, %v1772
    %v2333 = vpack.c.b16 %v1781, %v1773
    %v2334 = vpack.c.b16 %v1782, %v1774
    %v2335 = vpack.c.b16 %v1783, %v1775
    %v2336 = vpack.c.b16 %v1784, %v1776
    %v2337 = vpack.c.b16 %v1785, %v1777
    %v2338 = vpack.c.b16 %v1786, %v1778
    %v2339 = vpack.c.b16 %v1795, %v1787
    %v2340 = vpack.c.b16 %v1796, %v1788
    %v2341 = vpack.c.b16 %v1797, %v1789
    %v2342 = vpack.c.b16 %v1798, %v1790
    %v2343 = vpack.c.b16 %v1799, %v1791
    %v2344 = vpack.c.b16 %v1800, %v1792
    %v2345 = vpack.c.b16 %v1801, %v1793
    %v2346 = vpack.c.b16 %v1802, %v1794
    %v2347 = vpack.c.b16 %v1811, %v1803
    %v2348 = vpack.c.b16 %v1812, %v1804
    %v2349 = vpack.c.b16 %v1813, %v1805
    %v2350 = vpack.c.b16 %v1814, %v1806
    %v2351 = vpack.c.b16 %v1815, %v1807
    %v2352 = vpack.c.b16 %v1816, %v1808
    %v2353 = vpack.c.b16 %v1817, %v1809
    %v2354 = vpack.c.b16 %v1818, %v1810
    %v2355 = vpack.c.b16 %v1827, %v1819
    %v2356 = vpack.c.b16 %v1828, %v1820
    %v2357 = vpack.c.b16 %v1829, %v1821
    %v2358 = vpack.c.b16 %v1830, %v1822
    %v2359 = vpack.c.b16 %v1831, %v1823
    %v2360 = vpack.c.b16 %v1832, %v1824
    %v2361 = vpack.c.b16 %v1833, %v1825
    %v2362 = vpack.c.b16 %v1834, %v1826
    %v2363 = vpack.c.b16 %v1843, %v1835
    %v2364 = vpack.c.b16 %v1844, %v1836
    %v2365 = vpack.c.b16 %v1845, %v1837
    %v2366 = vpack.c.b16 %v1846, %v1838
    %v2367 = vpack.c.b16 %v1847, %v1839
    %v2368 = vpack.c.b16 %v1848, %v1840
    %v2369 = vpack.c.b16 %v1849, %v1841
    %v2370 = vpack.c.b16 %v1850, %v1842
    %v2371 = vpack.c.b16 %v1859, %v1851
    %v2372 = vpack.c.b16 %v1860, %v1852
    %v2373 = vpack.c.b16 %v1861, %v1853
    %v2374 = vpack.c.b16 %v1862, %v1854
    %v2375 = vpack.c.b16 %v1863, %v1855
    %v2376 = vpack.c.b16 %v1864, %v1856
    %v2377 = vpack.c.b16 %v1865, %v1857
    %v2378 = vpack.c.b16 %v1866, %v1858
    %v2379 = vpack.c.b16 %v1875, %v1867
    %v2380 = vpack.c.b16 %v1876, %v1868
    %v2381 = vpack.c.b16 %v1877, %v1869
    %v2382 = vpack.c.b16 %v1878, %v1870
    %v2383 = vpack.c.b16 %v1879, %v1871
    %v2384 = vpack.c.b16 %v1880, %v1872
    %v2385 = vpack.c.b16 %v1881, %v1873
    %v2386 = vpack.c.b16 %v1882, %v1874
    %v2387 = vpack.c.b16 %v1891, %v1883
    %v2388 = vpack.c.b16 %v1892, %v1884
    %v2389 = vpack.c.b16 %v1893, %v1885
    %v2390 = vpack.c.b16 %v1894, %v1886
    %v2391 = vpack.c.b16 %v1895, %v1887
    %v2392 = vpack.c.b16 %v1896, %v1888
    %v2393 = vpack.c.b16 %v1897, %v1889
    %v2394 = vpack.c.b16 %v1898, %v1890
    %v2395 = vpack.c.b16 %v1907, %v1899
    %v2396 = vpack.c.b16 %v1908, %v1900
    %v2397 = vpack.c.b16 %v1909, %v1901
    %v2398 = vpack.c.b16 %v1910, %v1902
    %v2399 = vpack.c.b16 %v1911, %v1903
    %v2400 = vpack.c.b16 %v1912, %v1904
    %v2401 = vpack.c.b16 %v1913, %v1905
    %v2402 = vpack.c.b16 %v1914, %v1906
    %v2403 = vpack.c.b16 %v1923, %v1915
    %v2404 = vpack.c.b16 %v1924, %v1916
    %v2405 = vpack.c.b16 %v1925, %v1917
    %v2406 = vpack.c.b16 %v1926, %v1918
    %v2407 = vpack.c.b16 %v1927, %v1919
    %v2408 = vpack.c.b16 %v1928, %v1920
    %v2409 = vpack.c.b16 %v1929, %v1921
    %v2410 = vpack.c.b16 %v1930, %v1922
    %v2411 = vpack.c.b16 %v1939, %v1931
    %v2412 = vpack.c.b16 %v1940, %v1932
    %v2413 = vpack.c.b16 %v1941, %v1933
    %v2414 = vpack.c.b16 %v1942, %v1934
    %v2415 = vpack.c.b16 %v1943, %v1935
    %v2416 = vpack.c.b16 %v1944, %v1936
    %v2417 = vpack.c.b16 %v1945, %v1937
    %v2418 = vpack.c.b16 %v1946, %v1938
    %v2419 = vpack.c.b16 %v1955, %v1947
    %v2420 = vpack.c.b16 %v1956, %v1948
    %v2421 = vpack.c.b16 %v1957, %v1949
    %v2422 = vpack.c.b16 %v1958, %v1950
    %v2423 = vpack.c.b16 %v1959, %v1951
    %v2424 = vpack.c.b16 %v1960, %v1952
    %v2425 = vpack.c.b16 %v1961, %v1953
    %v2426 = vpack.c.b16 %v1962, %v1954
    %v2427 = vpack.c.b16 %v1971, %v1963
    %v2428 = vpack.c.b16 %v1972, %v1964
    %v2429 = vpack.c.b16 %v1973, %v1965
    %v2430 = vpack.c.b16 %v1974, %v1966
    %v2431 = vpack.c.b16 %v1975, %v1967
    %v2432 = vpack.c.b16 %v1976, %v1968
    %v2433 = vpack.c.b16 %v1977, %v1969
    %v2434 = vpack.c.b16 %v1978, %v1970
    %v2435 = vpack.c.b16 %v1987, %v1979
    %v2436 = vpack.c.b16 %v1988, %v1980
    %v2437 = vpack.c.b16 %v1989, %v1981
    %v2438 = vpack.c.b16 %v1990, %v1982
    %v2439 = vpack.c.b16 %v1991, %v1983
    %v2440 = vpack.c.b16 %v1992, %v1984
    %v2441 = vpack.c.b16 %v1993, %v1985
    %v2442 = vpack.c.b16 %v1994, %v1986
    %2891 = vmatprep.subr.bf16.mxu0 %v1996
    %2892 = vmatpush1.bf16.msra.mxu0 %v1995
    %2893 = vmatprep.subr.bf16.mxu0 %v2004
    %2894 = vmatpush1.bf16.msra.mxu0 %v2003
    %2895 = vmatprep.subr.bf16.mxu0 %v2012
    %2896 = vmatpush1.bf16.msra.mxu0 %v2011
    %2897 = vmatprep.subr.bf16.mxu0 %v2020
    %2898 = vmatpush1.bf16.msra.mxu0 %v2019
    %2899 = vmatprep.subr.bf16.mxu0 %v2028
    %2900 = vmatpush1.bf16.msra.mxu0 %v2027
    %2901 = vmatprep.subr.bf16.mxu0 %v2036
    %2902 = vmatpush1.bf16.msra.mxu0 %v2035
    %2903 = vmatprep.subr.bf16.mxu0 %v2044
    %2904 = vmatpush1.bf16.msra.mxu0 %v2043
    %2905 = vmatprep.subr.bf16.mxu0 %v2052
    %2906 = vmatpush1.bf16.msra.mxu0 %v2051
    %2907 = vmatprep.subr.bf16.mxu0 %v2060
    %2908 = vmatpush1.bf16.msra.mxu0 %v2059
    %2909 = vmatprep.subr.bf16.mxu0 %v2068
    %2910 = vmatpush1.bf16.msra.mxu0 %v2067
    %2911 = vmatprep.subr.bf16.mxu0 %v2076
    %2912 = vmatpush1.bf16.msra.mxu0 %v2075
    %2913 = vmatprep.subr.bf16.mxu0 %v2084
    %2914 = vmatpush1.bf16.msra.mxu0 %v2083
    %2915 = vmatprep.subr.bf16.mxu0 %v2092
    %2916 = vmatpush1.bf16.msra.mxu0 %v2091
    %2917 = vmatprep.subr.bf16.mxu0 %v2100
    %2918 = vmatpush1.bf16.msra.mxu0 %v2099
    %2919 = vmatprep.subr.bf16.mxu0 %v2108
    %2920 = vmatpush1.bf16.msra.mxu0 %v2107
    %2921 = vmatprep.subr.bf16.mxu0 %v2116
    %2922 = vmatpush1.bf16.msra.mxu0 %v2115
    %2923 = vmatprep.mubr.bf16.mxu0 %v638
    %2924 = vmatmul.mubr.bf16.gmra.mrb[0].mxu0 %v637
    %v2925 = vpop.f32.mrb[0].mxu0
    %v2926 = vadd.f32 %v578, %v2925
    %v2927 = vpop.f32.mrb[0].mxu0
    %v2928 = vadd.f32 %v582, %v2927
    %v2929 = vpop.f32.mrb[0].mxu0
    %v2930 = vadd.f32 %v578, %v2929
    %v2931 = vpop.f32.mrb[0].mxu0
    %v2932 = vadd.f32 %v582, %v2931
    %2933 = vdwg.mxu0
    %2934 = vmatprep.subr.bf16.mxu0 %v2124
    %2935 = vmatpush1.bf16.msra.mxu0 %v2123
    %2936 = vmatprep.subr.bf16.mxu0 %v2132
    %2937 = vmatpush1.bf16.msra.mxu0 %v2131
    %2938 = vmatprep.subr.bf16.mxu0 %v2140
    %2939 = vmatpush1.bf16.msra.mxu0 %v2139
    %2940 = vmatprep.subr.bf16.mxu0 %v2148
    %2941 = vmatpush1.bf16.msra.mxu0 %v2147
    %2942 = vmatprep.subr.bf16.mxu0 %v2156
    %2943 = vmatpush1.bf16.msra.mxu0 %v2155
    %2944 = vmatprep.subr.bf16.mxu0 %v2164
    %2945 = vmatpush1.bf16.msra.mxu0 %v2163
    %2946 = vmatprep.subr.bf16.mxu0 %v2172
    %2947 = vmatpush1.bf16.msra.mxu0 %v2171
    %2948 = vmatprep.subr.bf16.mxu0 %v2180
    %2949 = vmatpush1.bf16.msra.mxu0 %v2179
    %2950 = vmatprep.subr.bf16.mxu0 %v2188
    %2951 = vmatpush1.bf16.msra.mxu0 %v2187
    %2952 = vmatprep.subr.bf16.mxu0 %v2196
    %2953 = vmatpush1.bf16.msra.mxu0 %v2195
    %2954 = vmatprep.subr.bf16.mxu0 %v2204
    %2955 = vmatpush1.bf16.msra.mxu0 %v2203
    %2956 = vmatprep.subr.bf16.mxu0 %v2212
    %2957 = vmatpush1.bf16.msra.mxu0 %v2211
    %2958 = vmatprep.subr.bf16.mxu0 %v2220
    %2959 = vmatpush1.bf16.msra.mxu0 %v2219
    %2960 = vmatprep.subr.bf16.mxu0 %v2228
    %2961 = vmatpush1.bf16.msra.mxu0 %v2227
    %2962 = vmatprep.subr.bf16.mxu0 %v2236
    %2963 = vmatpush1.bf16.msra.mxu0 %v2235
    %2964 = vmatprep.subr.bf16.mxu0 %v2244
    %2965 = vmatpush1.bf16.msra.mxu0 %v2243
    %2966 = vmatprep.mubr.bf16.mxu0 %v640
    %2967 = vmatmul.mubr.bf16.gmra.mrb[0].mxu0 %v639
    %v2968 = vpop.f32.mrb[0].mxu0
    %v2969 = vadd.f32 %v2926, %v2968
    %v2970 = vpop.f32.mrb[0].mxu0
    %v2971 = vadd.f32 %v2928, %v2970
    %v2972 = vpop.f32.mrb[0].mxu0
    %v2973 = vadd.f32 %v2930, %v2972
    %v2974 = vpop.f32.mrb[0].mxu0
    %v2975 = vadd.f32 %v2932, %v2974
    %2976 = vdwg.mxu0
    %2977 = vmatprep.subr.bf16.mxu0 %v2252
    %2978 = vmatpush1.bf16.msra.mxu0 %v2251
    %2979 = vmatprep.subr.bf16.mxu0 %v2260
    %2980 = vmatpush1.bf16.msra.mxu0 %v2259
    %2981 = vmatprep.subr.bf16.mxu0 %v2268
    %2982 = vmatpush1.bf16.msra.mxu0 %v2267
    %2983 = vmatprep.subr.bf16.mxu0 %v2276
    %2984 = vmatpush1.bf16.msra.mxu0 %v2275
    %2985 = vmatprep.subr.bf16.mxu0 %v2284
    %2986 = vmatpush1.bf16.msra.mxu0 %v2283
    %2987 = vmatprep.subr.bf16.mxu0 %v2292
    %2988 = vmatpush1.bf16.msra.mxu0 %v2291
    %2989 = vmatprep.subr.bf16.mxu0 %v2300
    %2990 = vmatpush1.bf16.msra.mxu0 %v2299
    %2991 = vmatprep.subr.bf16.mxu0 %v2308
    %2992 = vmatpush1.bf16.msra.mxu0 %v2307
    %2993 = vmatprep.subr.bf16.mxu0 %v2316
    %2994 = vmatpush1.bf16.msra.mxu0 %v2315
    %2995 = vmatprep.subr.bf16.mxu0 %v2324
    %2996 = vmatpush1.bf16.msra.mxu0 %v2323
    %2997 = vmatprep.subr.bf16.mxu0 %v2332
    %2998 = vmatpush1.bf16.msra.mxu0 %v2331
    %2999 = vmatprep.subr.bf16.mxu0 %v2340
    %3000 = vmatpush1.bf16.msra.mxu0 %v2339
    %3001 = vmatprep.subr.bf16.mxu0 %v2348
    %3002 = vmatpush1.bf16.msra.mxu0 %v2347
    %3003 = vmatprep.subr.bf16.mxu0 %v2356
    %3004 = vmatpush1.bf16.msra.mxu0 %v2355
    %3005 = vmatprep.subr.bf16.mxu0 %v2364
    %3006 = vmatpush1.bf16.msra.mxu0 %v2363
    %3007 = vmatprep.subr.bf16.mxu0 %v2372
    %3008 = vmatpush1.bf16.msra.mxu0 %v2371
    %3009 = vmatprep.mubr.bf16.mxu0 %v642
    %3010 = vmatmul.mubr.bf16.gmra.mrb[0].mxu0 %v641
    %v3011 = vpop.f32.mrb[0].mxu0
    %v3012 = vadd.f32 %v2969, %v3011
    %v3013 = vpop.f32.mrb[0].mxu0
    %v3014 = vadd.f32 %v2971, %v3013
    %v3015 = vpop.f32.mrb[0].mxu0
    %v3016 = vadd.f32 %v2973, %v3015
    %v3017 = vpop.f32.mrb[0].mxu0
    %v3018 = vadd.f32 %v2975, %v3017
    %3019 = vdwg.mxu0
    %3020 = vmatprep.subr.bf16.mxu0 %v2380
    %3021 = vmatpush1.bf16.msra.mxu0 %v2379
    %3022 = vmatprep.subr.bf16.mxu0 %v2388
    %3023 = vmatpush1.bf16.msra.mxu0 %v2387
    %3024 = vmatprep.subr.bf16.mxu0 %v2396
    %3025 = vmatpush1.bf16.msra.mxu0 %v2395
    %3026 = vmatprep.subr.bf16.mxu0 %v2404
    %3027 = vmatpush1.bf16.msra.mxu0 %v2403
    %3028 = vmatprep.subr.bf16.mxu0 %v2412
    %3029 = vmatpush1.bf16.msra.mxu0 %v2411
    %3030 = vmatprep.subr.bf16.mxu0 %v2420
    %3031 = vmatpush1.bf16.msra.mxu0 %v2419
    %3032 = vmatprep.subr.bf16.mxu0 %v2428
    %3033 = vmatpush1.bf16.msra.mxu0 %v2427
    %3034 = vmatprep.subr.bf16.mxu0 %v2436
    %3035 = vmatpush1.bf16.msra.mxu0 %v2435
    %3036 = vmatprep.subr.bf16.mxu0 0
    %3037 = vmatpush1.bf16.msra.mxu0 0
    %3038 = vmatprep.subr.bf16.mxu0 0
    %3039 = vmatpush1.bf16.msra.mxu0 0
    %3040 = vmatprep.subr.bf16.mxu0 0
    %3041 = vmatpush1.bf16.msra.mxu0 0
    %3042 = vmatprep.subr.bf16.mxu0 0
    %3043 = vmatpush1.bf16.msra.mxu0 0
    %3044 = vmatprep.subr.bf16.mxu0 0
    %3045 = vmatpush1.bf16.msra.mxu0 0
    %3046 = vmatprep.subr.bf16.mxu0 0
    %3047 = vmatpush1.bf16.msra.mxu0 0
    %3048 = vmatprep.subr.bf16.mxu0 0
    %3049 = vmatpush1.bf16.msra.mxu0 0
    %3050 = vmatprep.subr.bf16.mxu0 0
    %3051 = vmatpush1.bf16.msra.mxu0 0
    %3052 = vmatprep.mubr.bf16.mxu0 0
    %3053 = vmatmul.mubr.bf16.gmra.mrb[0].mxu0 %v643
    %v3054 = vpop.f32.mrb[0].mxu0
    %v3055 = vadd.f32 %v3012, %v3054
    %v3056 = vpop.f32.mrb[0].mxu0
    %v3057 = vadd.f32 %v3014, %v3056
    %v3058 = vpop.f32.mrb[0].mxu0
    %v3059 = vadd.f32 %v3016, %v3058
    %v3060 = vpop.f32.mrb[0].mxu0
    %v3061 = vadd.f32 %v3018, %v3060
    %3062 = vdwg.mxu0
    %3063 = vmatprep.subr.bf16.mxu0 %v1998
    %3064 = vmatpush1.bf16.msra.mxu0 %v1997
    %3065 = vmatprep.subr.bf16.mxu0 %v2006
    %3066 = vmatpush1.bf16.msra.mxu0 %v2005
    %3067 = vmatprep.subr.bf16.mxu0 %v2014
    %3068 = vmatpush1.bf16.msra.mxu0 %v2013
    %3069 = vmatprep.subr.bf16.mxu0 %v2022
    %3070 = vmatpush1.bf16.msra.mxu0 %v2021
    %3071 = vmatprep.subr.bf16.mxu0 %v2030
    %3072 = vmatpush1.bf16.msra.mxu0 %v2029
    %3073 = vmatprep.subr.bf16.mxu0 %v2038
    %3074 = vmatpush1.bf16.msra.mxu0 %v2037
    %3075 = vmatprep.subr.bf16.mxu0 %v2046
    %3076 = vmatpush1.bf16.msra.mxu0 %v2045
    %3077 = vmatprep.subr.bf16.mxu0 %v2054
    %3078 = vmatpush1.bf16.msra.mxu0 %v2053
    %3079 = vmatprep.subr.bf16.mxu0 %v2062
    %3080 = vmatpush1.bf16.msra.mxu0 %v2061
    %3081 = vmatprep.subr.bf16.mxu0 %v2070
    %3082 = vmatpush1.bf16.msra.mxu0 %v2069
    %3083 = vmatprep.subr.bf16.mxu0 %v2078
    %3084 = vmatpush1.bf16.msra.mxu0 %v2077
    %3085 = vmatprep.subr.bf16.mxu0 %v2086
    %3086 = vmatpush1.bf16.msra.mxu0 %v2085
    %3087 = vmatprep.subr.bf16.mxu0 %v2094
    %3088 = vmatpush1.bf16.msra.mxu0 %v2093
    %3089 = vmatprep.subr.bf16.mxu0 %v2102
    %3090 = vmatpush1.bf16.msra.mxu0 %v2101
    %3091 = vmatprep.subr.bf16.mxu0 %v2110
    %3092 = vmatpush1.bf16.msra.mxu0 %v2109
    %3093 = vmatprep.subr.bf16.mxu0 %v2118
    %3094 = vmatpush1.bf16.msra.mxu0 %v2117
    %3095 = vmatprep.mubr.bf16.mxu0 %v638
    %3096 = vmatmul.mubr.bf16.gmra.mrb[0].mxu0 %v637
    %v3097 = vpop.f32.mrb[0].mxu0
    %v3098 = vadd.f32 %v586, %v3097
    %v3099 = vpop.f32.mrb[0].mxu0
    %v3100 = vadd.f32 %v590, %v3099
    %v3101 = vpop.f32.mrb[0].mxu0
    %v3102 = vadd.f32 %v586, %v3101
    %v3103 = vpop.f32.mrb[0].mxu0
    %v3104 = vadd.f32 %v590, %v3103
    %3105 = vdwg.mxu0
    %3106 = vmatprep.subr.bf16.mxu0 %v2126
    %3107 = vmatpush1.bf16.msra.mxu0 %v2125
    %3108 = vmatprep.subr.bf16.mxu0 %v2134
    %3109 = vmatpush1.bf16.msra.mxu0 %v2133
    %3110 = vmatprep.subr.bf16.mxu0 %v2142
    %3111 = vmatpush1.bf16.msra.mxu0 %v2141
    %3112 = vmatprep.subr.bf16.mxu0 %v2150
    %3113 = vmatpush1.bf16.msra.mxu0 %v2149
    %3114 = vmatprep.subr.bf16.mxu0 %v2158
    %3115 = vmatpush1.bf16.msra.mxu0 %v2157
    %3116 = vmatprep.subr.bf16.mxu0 %v2166
    %3117 = vmatpush1.bf16.msra.mxu0 %v2165
    %3118 = vmatprep.subr.bf16.mxu0 %v2174
    %3119 = vmatpush1.bf16.msra.mxu0 %v2173
    %3120 = vmatprep.subr.bf16.mxu0 %v2182
    %3121 = vmatpush1.bf16.msra.mxu0 %v2181
    %3122 = vmatprep.subr.bf16.mxu0 %v2190
    %3123 = vmatpush1.bf16.msra.mxu0 %v2189
    %3124 = vmatprep.subr.bf16.mxu0 %v2198
    %3125 = vmatpush1.bf16.msra.mxu0 %v2197
    %3126 = vmatprep.subr.bf16.mxu0 %v2206
    %3127 = vmatpush1.bf16.msra.mxu0 %v2205
    %3128 = vmatprep.subr.bf16.mxu0 %v2214
    %3129 = vmatpush1.bf16.msra.mxu0 %v2213
    %3130 = vmatprep.subr.bf16.mxu0 %v2222
    %3131 = vmatpush1.bf16.msra.mxu0 %v2221
    %3132 = vmatprep.subr.bf16.mxu0 %v2230
    %3133 = vmatpush1.bf16.msra.mxu0 %v2229
    %3134 = vmatprep.subr.bf16.mxu0 %v2238
    %3135 = vmatpush1.bf16.msra.mxu0 %v2237
    %3136 = vmatprep.subr.bf16.mxu0 %v2246
    %3137 = vmatpush1.bf16.msra.mxu0 %v2245
    %3138 = vmatprep.mubr.bf16.mxu0 %v640
    %3139 = vmatmul.mubr.bf16.gmra.mrb[0].mxu0 %v639
    %v3140 = vpop.f32.mrb[0].mxu0
    %v3141 = vadd.f32 %v3098, %v3140
    %v3142 = vpop.f32.mrb[0].mxu0
    %v3143 = vadd.f32 %v3100, %v3142
    %v3144 = vpop.f32.mrb[0].mxu0
    %v3145 = vadd.f32 %v3102, %v3144
    %v3146 = vpop.f32.mrb[0].mxu0
    %v3147 = vadd.f32 %v3104, %v3146
    %3148 = vdwg.mxu0
    %3149 = vmatprep.subr.bf16.mxu0 %v2254
    %3150 = vmatpush1.bf16.msra.mxu0 %v2253
    %3151 = vmatprep.subr.bf16.mxu0 %v2262
    %3152 = vmatpush1.bf16.msra.mxu0 %v2261
    %3153 = vmatprep.subr.bf16.mxu0 %v2270
    %3154 = vmatpush1.bf16.msra.mxu0 %v2269
    %3155 = vmatprep.subr.bf16.mxu0 %v2278
    %3156 = vmatpush1.bf16.msra.mxu0 %v2277
    %3157 = vmatprep.subr.bf16.mxu0 %v2286
    %3158 = vmatpush1.bf16.msra.mxu0 %v2285
    %3159 = vmatprep.subr.bf16.mxu0 %v2294
    %3160 = vmatpush1.bf16.msra.mxu0 %v2293
    %3161 = vmatprep.subr.bf16.mxu0 %v2302
    %3162 = vmatpush1.bf16.msra.mxu0 %v2301
    %3163 = vmatprep.subr.bf16.mxu0 %v2310
    %3164 = vmatpush1.bf16.msra.mxu0 %v2309
    %3165 = vmatprep.subr.bf16.mxu0 %v2318
    %3166 = vmatpush1.bf16.msra.mxu0 %v2317
    %3167 = vmatprep.subr.bf16.mxu0 %v2326
    %3168 = vmatpush1.bf16.msra.mxu0 %v2325
    %3169 = vmatprep.subr.bf16.mxu0 %v2334
    %3170 = vmatpush1.bf16.msra.mxu0 %v2333
    %3171 = vmatprep.subr.bf16.mxu0 %v2342
    %3172 = vmatpush1.bf16.msra.mxu0 %v2341
    %3173 = vmatprep.subr.bf16.mxu0 %v2350
    %3174 = vmatpush1.bf16.msra.mxu0 %v2349
    %3175 = vmatprep.subr.bf16.mxu0 %v2358
    %3176 = vmatpush1.bf16.msra.mxu0 %v2357
    %3177 = vmatprep.subr.bf16.mxu0 %v2366
    %3178 = vmatpush1.bf16.msra.mxu0 %v2365
    %3179 = vmatprep.subr.bf16.mxu0 %v2374
    %3180 = vmatpush1.bf16.msra.mxu0 %v2373
    %3181 = vmatprep.mubr.bf16.mxu0 %v642
    %3182 = vmatmul.mubr.bf16.gmra.mrb[0].mxu0 %v641
    %v3183 = vpop.f32.mrb[0].mxu0
    %v3184 = vadd.f32 %v3141, %v3183
    %v3185 = vpop.f32.mrb[0].mxu0
    %v3186 = vadd.f32 %v3143, %v3185
    %v3187 = vpop.f32.mrb[0].mxu0
    %v3188 = vadd.f32 %v3145, %v3187
    %v3189 = vpop.f32.mrb[0].mxu0
    %v3190 = vadd.f32 %v3147, %v3189
    %3191 = vdwg.mxu0
    %3192 = vmatprep.subr.bf16.mxu0 %v2382
    %3193 = vmatpush1.bf16.msra.mxu0 %v2381
    %3194 = vmatprep.subr.bf16.mxu0 %v2390
    %3195 = vmatpush1.bf16.msra.mxu0 %v2389
    %3196 = vmatprep.subr.bf16.mxu0 %v2398
    %3197 = vmatpush1.bf16.msra.mxu0 %v2397
    %3198 = vmatprep.subr.bf16.mxu0 %v2406
    %3199 = vmatpush1.bf16.msra.mxu0 %v2405
    %3200 = vmatprep.subr.bf16.mxu0 %v2414
    %3201 = vmatpush1.bf16.msra.mxu0 %v2413
    %3202 = vmatprep.subr.bf16.mxu0 %v2422
    %3203 = vmatpush1.bf16.msra.mxu0 %v2421
    %3204 = vmatprep.subr.bf16.mxu0 %v2430
    %3205 = vmatpush1.bf16.msra.mxu0 %v2429
    %3206 = vmatprep.subr.bf16.mxu0 %v2438
    %3207 = vmatpush1.bf16.msra.mxu0 %v2437
    %3208 = vmatprep.subr.bf16.mxu0 0
    %3209 = vmatpush1.bf16.msra.mxu0 0
    %3210 = vmatprep.subr.bf16.mxu0 0
    %3211 = vmatpush1.bf16.msra.mxu0 0
    %3212 = vmatprep.subr.bf16.mxu0 0
    %3213 = vmatpush1.bf16.msra.mxu0 0
    %3214 = vmatprep.subr.bf16.mxu0 0
    %3215 = vmatpush1.bf16.msra.mxu0 0
    %3216 = vmatprep.subr.bf16.mxu0 0
    %3217 = vmatpush1.bf16.msra.mxu0 0
    %3218 = vmatprep.subr.bf16.mxu0 0
    %3219 = vmatpush1.bf16.msra.mxu0 0
    %3220 = vmatprep.subr.bf16.mxu0 0
    %3221 = vmatpush1.bf16.msra.mxu0 0
    %3222 = vmatprep.subr.bf16.mxu0 0
    %3223 = vmatpush1.bf16.msra.mxu0 0
    %3224 = vmatprep.mubr.bf16.mxu0 0
    %3225 = vmatmul.mubr.bf16.gmra.mrb[0].mxu0 %v643
    %v3226 = vpop.f32.mrb[0].mxu0
    %v3227 = vadd.f32 %v3184, %v3226
    %v3228 = vpop.f32.mrb[0].mxu0
    %v3229 = vadd.f32 %v3186, %v3228
    %v3230 = vpop.f32.mrb[0].mxu0
    %v3231 = vadd.f32 %v3188, %v3230
    %v3232 = vpop.f32.mrb[0].mxu0
    %v3233 = vadd.f32 %v3190, %v3232
    %3234 = vdwg.mxu0
    %3235 = vmatprep.subr.bf16.mxu0 %v2000
    %3236 = vmatpush1.bf16.msra.mxu0 %v1999
    %3237 = vmatprep.subr.bf16.mxu0 %v2008
    %3238 = vmatpush1.bf16.msra.mxu0 %v2007
    %3239 = vmatprep.subr.bf16.mxu0 %v2016
    %3240 = vmatpush1.bf16.msra.mxu0 %v2015
    %3241 = vmatprep.subr.bf16.mxu0 %v2024
    %3242 = vmatpush1.bf16.msra.mxu0 %v2023
    %3243 = vmatprep.subr.bf16.mxu0 %v2032
    %3244 = vmatpush1.bf16.msra.mxu0 %v2031
    %3245 = vmatprep.subr.bf16.mxu0 %v2040
    %3246 = vmatpush1.bf16.msra.mxu0 %v2039
    %3247 = vmatprep.subr.bf16.mxu0 %v2048
    %3248 = vmatpush1.bf16.msra.mxu0 %v2047
    %3249 = vmatprep.subr.bf16.mxu0 %v2056
    %3250 = vmatpush1.bf16.msra.mxu0 %v2055
    %3251 = vmatprep.subr.bf16.mxu0 %v2064
    %3252 = vmatpush1.bf16.msra.mxu0 %v2063
    %3253 = vmatprep.subr.bf16.mxu0 %v2072
    %3254 = vmatpush1.bf16.msra.mxu0 %v2071
    %3255 = vmatprep.subr.bf16.mxu0 %v2080
    %3256 = vmatpush1.bf16.msra.mxu0 %v2079
    %3257 = vmatprep.subr.bf16.mxu0 %v2088
    %3258 = vmatpush1.bf16.msra.mxu0 %v2087
    %3259 = vmatprep.subr.bf16.mxu0 %v2096
    %3260 = vmatpush1.bf16.msra.mxu0 %v2095
    %3261 = vmatprep.subr.bf16.mxu0 %v2104
    %3262 = vmatpush1.bf16.msra.mxu0 %v2103
    %3263 = vmatprep.subr.bf16.mxu0 %v2112
    %3264 = vmatpush1.bf16.msra.mxu0 %v2111
    %3265 = vmatprep.subr.bf16.mxu0 %v2120
    %3266 = vmatpush1.bf16.msra.mxu0 %v2119
    %3267 = vmatprep.mubr.bf16.mxu0 %v638
    %3268 = vmatmul.mubr.bf16.gmra.mrb[0].mxu0 %v637
    %v3269 = vpop.f32.mrb[0].mxu0
    %v3270 = vadd.f32 %v594, %v3269
    %v3271 = vpop.f32.mrb[0].mxu0
    %v3272 = vadd.f32 %v598, %v3271
    %v3273 = vpop.f32.mrb[0].mxu0
    %v3274 = vadd.f32 %v594, %v3273
    %v3275 = vpop.f32.mrb[0].mxu0
    %v3276 = vadd.f32 %v598, %v3275
    %3277 = vdwg.mxu0
    %3278 = vmatprep.subr.bf16.mxu0 %v2128
    %3279 = vmatpush1.bf16.msra.mxu0 %v2127
    %3280 = vmatprep.subr.bf16.mxu0 %v2136
    %3281 = vmatpush1.bf16.msra.mxu0 %v2135
    %3282 = vmatprep.subr.bf16.mxu0 %v2144
    %3283 = vmatpush1.bf16.msra.mxu0 %v2143
    %3284 = vmatprep.subr.bf16.mxu0 %v2152
    %3285 = vmatpush1.bf16.msra.mxu0 %v2151
    %3286 = vmatprep.subr.bf16.mxu0 %v2160
    %3287 = vmatpush1.bf16.msra.mxu0 %v2159
    %3288 = vmatprep.subr.bf16.mxu0 %v2168
    %3289 = vmatpush1.bf16.msra.mxu0 %v2167
    %3290 = vmatprep.subr.bf16.mxu0 %v2176
    %3291 = vmatpush1.bf16.msra.mxu0 %v2175
    %3292 = vmatprep.subr.bf16.mxu0 %v2184
    %3293 = vmatpush1.bf16.msra.mxu0 %v2183
    %3294 = vmatprep.subr.bf16.mxu0 %v2192
    %3295 = vmatpush1.bf16.msra.mxu0 %v2191
    %3296 = vmatprep.subr.bf16.mxu0 %v2200
    %3297 = vmatpush1.bf16.msra.mxu0 %v2199
    %3298 = vmatprep.subr.bf16.mxu0 %v2208
    %3299 = vmatpush1.bf16.msra.mxu0 %v2207
    %3300 = vmatprep.subr.bf16.mxu0 %v2216
    %3301 = vmatpush1.bf16.msra.mxu0 %v2215
    %3302 = vmatprep.subr.bf16.mxu0 %v2224
    %3303 = vmatpush1.bf16.msra.mxu0 %v2223
    %3304 = vmatprep.subr.bf16.mxu0 %v2232
    %3305 = vmatpush1.bf16.msra.mxu0 %v2231
    %3306 = vmatprep.subr.bf16.mxu0 %v2240
    %3307 = vmatpush1.bf16.msra.mxu0 %v2239
    %3308 = vmatprep.subr.bf16.mxu0 %v2248
    %3309 = vmatpush1.bf16.msra.mxu0 %v2247
    %3310 = vmatprep.mubr.bf16.mxu0 %v640
    %3311 = vmatmul.mubr.bf16.gmra.mrb[0].mxu0 %v639
    %v3312 = vpop.f32.mrb[0].mxu0
    %v3313 = vadd.f32 %v3270, %v3312
    %v3314 = vpop.f32.mrb[0].mxu0
    %v3315 = vadd.f32 %v3272, %v3314
    %v3316 = vpop.f32.mrb[0].mxu0
    %v3317 = vadd.f32 %v3274, %v3316
    %v3318 = vpop.f32.mrb[0].mxu0
    %v3319 = vadd.f32 %v3276, %v3318
    %3320 = vdwg.mxu0
    %3321 = vmatprep.subr.bf16.mxu0 %v2256
    %3322 = vmatpush1.bf16.msra.mxu0 %v2255
    %3323 = vmatprep.subr.bf16.mxu0 %v2264
    %3324 = vmatpush1.bf16.msra.mxu0 %v2263
    %3325 = vmatprep.subr.bf16.mxu0 %v2272
    %3326 = vmatpush1.bf16.msra.mxu0 %v2271
    %3327 = vmatprep.subr.bf16.mxu0 %v2280
    %3328 = vmatpush1.bf16.msra.mxu0 %v2279
    %3329 = vmatprep.subr.bf16.mxu0 %v2288
    %3330 = vmatpush1.bf16.msra.mxu0 %v2287
    %3331 = vmatprep.subr.bf16.mxu0 %v2296
    %3332 = vmatpush1.bf16.msra.mxu0 %v2295
    %3333 = vmatprep.subr.bf16.mxu0 %v2304
    %3334 = vmatpush1.bf16.msra.mxu0 %v2303
    %3335 = vmatprep.subr.bf16.mxu0 %v2312
    %3336 = vmatpush1.bf16.msra.mxu0 %v2311
    %3337 = vmatprep.subr.bf16.mxu0 %v2320
    %3338 = vmatpush1.bf16.msra.mxu0 %v2319
    %3339 = vmatprep.subr.bf16.mxu0 %v2328
    %3340 = vmatpush1.bf16.msra.mxu0 %v2327
    %3341 = vmatprep.subr.bf16.mxu0 %v2336
    %3342 = vmatpush1.bf16.msra.mxu0 %v2335
    %3343 = vmatprep.subr.bf16.mxu0 %v2344
    %3344 = vmatpush1.bf16.msra.mxu0 %v2343
    %3345 = vmatprep.subr.bf16.mxu0 %v2352
    %3346 = vmatpush1.bf16.msra.mxu0 %v2351
    %3347 = vmatprep.subr.bf16.mxu0 %v2360
    %3348 = vmatpush1.bf16.msra.mxu0 %v2359
    %3349 = vmatprep.subr.bf16.mxu0 %v2368
    %3350 = vmatpush1.bf16.msra.mxu0 %v2367
    %3351 = vmatprep.subr.bf16.mxu0 %v2376
    %3352 = vmatpush1.bf16.msra.mxu0 %v2375
    %3353 = vmatprep.mubr.bf16.mxu0 %v642
    %3354 = vmatmul.mubr.bf16.gmra.mrb[0].mxu0 %v641
    %v3355 = vpop.f32.mrb[0].mxu0
    %v3356 = vadd.f32 %v3313, %v3355
    %v3357 = vpop.f32.mrb[0].mxu0
    %v3358 = vadd.f32 %v3315, %v3357
    %v3359 = vpop.f32.mrb[0].mxu0
    %v3360 = vadd.f32 %v3317, %v3359
    %v3361 = vpop.f32.mrb[0].mxu0
    %v3362 = vadd.f32 %v3319, %v3361
    %3363 = vdwg.mxu0
    %3364 = vmatprep.subr.bf16.mxu0 %v2384
    %3365 = vmatpush1.bf16.msra.mxu0 %v2383
    %3366 = vmatprep.subr.bf16.mxu0 %v2392
    %3367 = vmatpush1.bf16.msra.mxu0 %v2391
    %3368 = vmatprep.subr.bf16.mxu0 %v2400
    %3369 = vmatpush1.bf16.msra.mxu0 %v2399
    %3370 = vmatprep.subr.bf16.mxu0 %v2408
    %3371 = vmatpush1.bf16.msra.mxu0 %v2407
    %3372 = vmatprep.subr.bf16.mxu0 %v2416
    %3373 = vmatpush1.bf16.msra.mxu0 %v2415
    %3374 = vmatprep.subr.bf16.mxu0 %v2424
    %3375 = vmatpush1.bf16.msra.mxu0 %v2423
    %3376 = vmatprep.subr.bf16.mxu0 %v2432
    %3377 = vmatpush1.bf16.msra.mxu0 %v2431
    %3378 = vmatprep.subr.bf16.mxu0 %v2440
    %3379 = vmatpush1.bf16.msra.mxu0 %v2439
    %3380 = vmatprep.subr.bf16.mxu0 0
    %3381 = vmatpush1.bf16.msra.mxu0 0
    %3382 = vmatprep.subr.bf16.mxu0 0
    %3383 = vmatpush1.bf16.msra.mxu0 0
    %3384 = vmatprep.subr.bf16.mxu0 0
    %3385 = vmatpush1.bf16.msra.mxu0 0
    %3386 = vmatprep.subr.bf16.mxu0 0
    %3387 = vmatpush1.bf16.msra.mxu0 0
    %3388 = vmatprep.subr.bf16.mxu0 0
    %3389 = vmatpush1.bf16.msra.mxu0 0
    %3390 = vmatprep.subr.bf16.mxu0 0
    %3391 = vmatpush1.bf16.msra.mxu0 0
    %3392 = vmatprep.subr.bf16.mxu0 0
    %3393 = vmatpush1.bf16.msra.mxu0 0
    %3394 = vmatprep.subr.bf16.mxu0 0
    %3395 = vmatpush1.bf16.msra.mxu0 0
    %3396 = vmatprep.mubr.bf16.mxu0 0
    %3397 = vmatmul.mubr.bf16.gmra.mrb[0].mxu0 %v643
    %v3398 = vpop.f32.mrb[0].mxu0
    %v3399 = vadd.f32 %v3356, %v3398
    %v3400 = vpop.f32.mrb[0].mxu0
    %v3401 = vadd.f32 %v3358, %v3400
    %v3402 = vpop.f32.mrb[0].mxu0
    %v3403 = vadd.f32 %v3360, %v3402
    %v3404 = vpop.f32.mrb[0].mxu0
    %v3405 = vadd.f32 %v3362, %v3404
    %3406 = vdwg.mxu0
    %3407 = vmatprep.subr.bf16.mxu0 %v2002
    %3408 = vmatpush1.bf16.msra.mxu0 %v2001
    %3409 = vmatprep.subr.bf16.mxu0 %v2010
    %3410 = vmatpush1.bf16.msra.mxu0 %v2009
    %3411 = vmatprep.subr.bf16.mxu0 %v2018
    %3412 = vmatpush1.bf16.msra.mxu0 %v2017
    %3413 = vmatprep.subr.bf16.mxu0 %v2026
    %3414 = vmatpush1.bf16.msra.mxu0 %v2025
    %3415 = vmatprep.subr.bf16.mxu0 %v2034
    %3416 = vmatpush1.bf16.msra.mxu0 %v2033
    %3417 = vmatprep.subr.bf16.mxu0 %v2042
    %3418 = vmatpush1.bf16.msra.mxu0 %v2041
    %3419 = vmatprep.subr.bf16.mxu0 %v2050
    %3420 = vmatpush1.bf16.msra.mxu0 %v2049
    %3421 = vmatprep.subr.bf16.mxu0 %v2058
    %3422 = vmatpush1.bf16.msra.mxu0 %v2057
    %3423 = vmatprep.subr.bf16.mxu0 %v2066
    %3424 = vmatpush1.bf16.msra.mxu0 %v2065
    %3425 = vmatprep.subr.bf16.mxu0 %v2074
    %3426 = vmatpush1.bf16.msra.mxu0 %v2073
    %3427 = vmatprep.subr.bf16.mxu0 %v2082
    %3428 = vmatpush1.bf16.msra.mxu0 %v2081
    %3429 = vmatprep.subr.bf16.mxu0 %v2090
    %3430 = vmatpush1.bf16.msra.mxu0 %v2089
    %3431 = vmatprep.subr.bf16.mxu0 %v2098
    %3432 = vmatpush1.bf16.msra.mxu0 %v2097
    %3433 = vmatprep.subr.bf16.mxu0 %v2106
    %3434 = vmatpush1.bf16.msra.mxu0 %v2105
    %3435 = vmatprep.subr.bf16.mxu0 %v2114
    %3436 = vmatpush1.bf16.msra.mxu0 %v2113
    %3437 = vmatprep.subr.bf16.mxu0 %v2122
    %3438 = vmatpush1.bf16.msra.mxu0 %v2121
    %3439 = vmatprep.mubr.bf16.mxu0 %v638
    %3440 = vmatmul.mubr.bf16.gmra.mrb[0].mxu0 %v637
    %v3441 = vpop.f32.mrb[0].mxu0
    %v3442 = vadd.f32 %v602, %v3441
    %v3443 = vpop.f32.mrb[0].mxu0
    %v3444 = vadd.f32 %v606, %v3443
    %v3445 = vpop.f32.mrb[0].mxu0
    %v3446 = vadd.f32 %v602, %v3445
    %v3447 = vpop.f32.mrb[0].mxu0
    %v3448 = vadd.f32 %v606, %v3447
    %3449 = vdwg.mxu0
    %3450 = vmatprep.subr.bf16.mxu0 %v2130
    %3451 = vmatpush1.bf16.msra.mxu0 %v2129
    %3452 = vmatprep.subr.bf16.mxu0 %v2138
    %3453 = vmatpush1.bf16.msra.mxu0 %v2137
    %3454 = vmatprep.subr.bf16.mxu0 %v2146
    %3455 = vmatpush1.bf16.msra.mxu0 %v2145
    %3456 = vmatprep.subr.bf16.mxu0 %v2154
    %3457 = vmatpush1.bf16.msra.mxu0 %v2153
    %3458 = vmatprep.subr.bf16.mxu0 %v2162
    %3459 = vmatpush1.bf16.msra.mxu0 %v2161
    %3460 = vmatprep.subr.bf16.mxu0 %v2170
    %3461 = vmatpush1.bf16.msra.mxu0 %v2169
    %3462 = vmatprep.subr.bf16.mxu0 %v2178
    %3463 = vmatpush1.bf16.msra.mxu0 %v2177
    %3464 = vmatprep.subr.bf16.mxu0 %v2186
    %3465 = vmatpush1.bf16.msra.mxu0 %v2185
    %3466 = vmatprep.subr.bf16.mxu0 %v2194
    %3467 = vmatpush1.bf16.msra.mxu0 %v2193
    %3468 = vmatprep.subr.bf16.mxu0 %v2202
    %3469 = vmatpush1.bf16.msra.mxu0 %v2201
    %3470 = vmatprep.subr.bf16.mxu0 %v2210
    %3471 = vmatpush1.bf16.msra.mxu0 %v2209
    %3472 = vmatprep.subr.bf16.mxu0 %v2218
    %3473 = vmatpush1.bf16.msra.mxu0 %v2217
    %3474 = vmatprep.subr.bf16.mxu0 %v2226
    %3475 = vmatpush1.bf16.msra.mxu0 %v2225
    %3476 = vmatprep.subr.bf16.mxu0 %v2234
    %3477 = vmatpush1.bf16.msra.mxu0 %v2233
    %3478 = vmatprep.subr.bf16.mxu0 %v2242
    %3479 = vmatpush1.bf16.msra.mxu0 %v2241
    %3480 = vmatprep.subr.bf16.mxu0 %v2250
    %3481 = vmatpush1.bf16.msra.mxu0 %v2249
    %3482 = vmatprep.mubr.bf16.mxu0 %v640
    %3483 = vmatmul.mubr.bf16.gmra.mrb[0].mxu0 %v639
    %v3484 = vpop.f32.mrb[0].mxu0
    %v3485 = vadd.f32 %v3442, %v3484
    %v3486 = vpop.f32.mrb[0].mxu0
    %v3487 = vadd.f32 %v3444, %v3486
    %v3488 = vpop.f32.mrb[0].mxu0
    %v3489 = vadd.f32 %v3446, %v3488
    %v3490 = vpop.f32.mrb[0].mxu0
    %v3491 = vadd.f32 %v3448, %v3490
    %3492 = vdwg.mxu0
    %3493 = vmatprep.subr.bf16.mxu0 %v2258
    %3494 = vmatpush1.bf16.msra.mxu0 %v2257
    %3495 = vmatprep.subr.bf16.mxu0 %v2266
    %3496 = vmatpush1.bf16.msra.mxu0 %v2265
    %3497 = vmatprep.subr.bf16.mxu0 %v2274
    %3498 = vmatpush1.bf16.msra.mxu0 %v2273
    %3499 = vmatprep.subr.bf16.mxu0 %v2282
    %3500 = vmatpush1.bf16.msra.mxu0 %v2281
    %3501 = vmatprep.subr.bf16.mxu0 %v2290
    %3502 = vmatpush1.bf16.msra.mxu0 %v2289
    %3503 = vmatprep.subr.bf16.mxu0 %v2298
    %3504 = vmatpush1.bf16.msra.mxu0 %v2297
    %3505 = vmatprep.subr.bf16.mxu0 %v2306
    %3506 = vmatpush1.bf16.msra.mxu0 %v2305
    %3507 = vmatprep.subr.bf16.mxu0 %v2314
    %3508 = vmatpush1.bf16.msra.mxu0 %v2313
    %3509 = vmatprep.subr.bf16.mxu0 %v2322
    %3510 = vmatpush1.bf16.msra.mxu0 %v2321
    %3511 = vmatprep.subr.bf16.mxu0 %v2330
    %3512 = vmatpush1.bf16.msra.mxu0 %v2329
    %3513 = vmatprep.subr.bf16.mxu0 %v2338
    %3514 = vmatpush1.bf16.msra.mxu0 %v2337
    %3515 = vmatprep.subr.bf16.mxu0 %v2346
    %3516 = vmatpush1.bf16.msra.mxu0 %v2345
    %3517 = vmatprep.subr.bf16.mxu0 %v2354
    %3518 = vmatpush1.bf16.msra.mxu0 %v2353
    %3519 = vmatprep.subr.bf16.mxu0 %v2362
    %3520 = vmatpush1.bf16.msra.mxu0 %v2361
    %3521 = vmatprep.subr.bf16.mxu0 %v2370
    %3522 = vmatpush1.bf16.msra.mxu0 %v2369
    %3523 = vmatprep.subr.bf16.mxu0 %v2378
    %3524 = vmatpush1.bf16.msra.mxu0 %v2377
    %3525 = vmatprep.mubr.bf16.mxu0 %v642
    %3526 = vmatmul.mubr.bf16.gmra.mrb[0].mxu0 %v641
    %v3527 = vpop.f32.mrb[0].mxu0
    %v3528 = vadd.f32 %v3485, %v3527
    %v3529 = vpop.f32.mrb[0].mxu0
    %v3530 = vadd.f32 %v3487, %v3529
    %v3531 = vpop.f32.mrb[0].mxu0
    %v3532 = vadd.f32 %v3489, %v3531
    %v3533 = vpop.f32.mrb[0].mxu0
    %v3534 = vadd.f32 %v3491, %v3533
    %3535 = vdwg.mxu0
    %3536 = vmatprep.subr.bf16.mxu0 %v2386
    %3537 = vmatpush1.bf16.msra.mxu0 %v2385
    %3538 = vmatprep.subr.bf16.mxu0 %v2394
    %3539 = vmatpush1.bf16.msra.mxu0 %v2393
    %3540 = vmatprep.subr.bf16.mxu0 %v2402
    %3541 = vmatpush1.bf16.msra.mxu0 %v2401
    %3542 = vmatprep.subr.bf16.mxu0 %v2410
    %3543 = vmatpush1.bf16.msra.mxu0 %v2409
    %3544 = vmatprep.subr.bf16.mxu0 %v2418
    %3545 = vmatpush1.bf16.msra.mxu0 %v2417
    %3546 = vmatprep.subr.bf16.mxu0 %v2426
    %3547 = vmatpush1.bf16.msra.mxu0 %v2425
    %3548 = vmatprep.subr.bf16.mxu0 %v2434
    %3549 = vmatpush1.bf16.msra.mxu0 %v2433
    %3550 = vmatprep.subr.bf16.mxu0 %v2442
    %3551 = vmatpush1.bf16.msra.mxu0 %v2441
    %3552 = vmatprep.subr.bf16.mxu0 0
    %3553 = vmatpush1.bf16.msra.mxu0 0
    %3554 = vmatprep.subr.bf16.mxu0 0
    %3555 = vmatpush1.bf16.msra.mxu0 0
    %3556 = vmatprep.subr.bf16.mxu0 0
    %3557 = vmatpush1.bf16.msra.mxu0 0
    %3558 = vmatprep.subr.bf16.mxu0 0
    %3559 = vmatpush1.bf16.msra.mxu0 0
    %3560 = vmatprep.subr.bf16.mxu0 0
    %3561 = vmatpush1.bf16.msra.mxu0 0
    %3562 = vmatprep.subr.bf16.mxu0 0
    %3563 = vmatpush1.bf16.msra.mxu0 0
    %3564 = vmatprep.subr.bf16.mxu0 0
    %3565 = vmatpush1.bf16.msra.mxu0 0
    %3566 = vmatprep.subr.bf16.mxu0 0
    %3567 = vmatpush1.bf16.msra.mxu0 0
    %3568 = vmatprep.mubr.bf16.mxu0 0
    %3569 = vmatmul.mubr.bf16.gmra.mrb[0].mxu0 %v643
    %v3570 = vpop.f32.mrb[0].mxu0
    %v3571 = vadd.f32 %v3528, %v3570
    %v3572 = vpop.f32.mrb[0].mxu0
    %v3573 = vadd.f32 %v3530, %v3572
    %v3574 = vpop.f32.mrb[0].mxu0
    %v3575 = vadd.f32 %v3532, %v3574
    %v3576 = vpop.f32.mrb[0].mxu0
    %v3577 = vadd.f32 %v3534, %v3576
    %3578 = vdwg.mxu0
    %v3579 = vmax.f32 %v3055, 0.0
    %v3580 = vmax.f32 %v3057, 0.0
    %v3581 = vmax.f32 %v3227, 0.0
    %v3582 = vmax.f32 %v3229, 0.0
    %v3583 = vmax.f32 %v3399, 0.0
    %v3584 = vmax.f32 %v3401, 0.0
    %v3585 = vmax.f32 %v3571, 0.0
    %v3586 = vmax.f32 %v3573, 0.0
    %v3587 = vmax.f32 %v3059, 0.0
    %v3588 = vmax.f32 %v3061, 0.0
    %v3589 = vmax.f32 %v3231, 0.0
    %v3590 = vmax.f32 %v3233, 0.0
    %v3591 = vmax.f32 %v3403, 0.0
    %v3592 = vmax.f32 %v3405, 0.0
    %v3593 = vmax.f32 %v3575, 0.0
    %v3594 = vmax.f32 %v3577, 0.0
    %v3595 = vpack.c.bf16 %v3587, %v3579
    %v3596 = vpack.c.bf16 %v3588, %v3580
    %v3597 = vpack.c.bf16 %v3589, %v3581
    %v3598 = vpack.c.bf16 %v3590, %v3582
    %v3599 = vpack.c.bf16 %v3591, %v3583
    %v3600 = vpack.c.bf16 %v3592, %v3584
    %v3601 = vpack.c.bf16 %v3593, %v3585
    %v3602 = vpack.c.bf16 %v3594, %v3586
    %v3603 = vld [vmem:[#allocation8] sm:$0xff]
    %v3604 = vld [vmem:[#allocation8 + $0x8] sm:$0xff]
    %v3605 = vld [vmem:[#allocation8 + $0x10] sm:$0xff]
    %v3606 = vld [vmem:[#allocation8 + $0x18] sm:$0xff]
    %v3607 = vld [vmem:[#allocation8 + $0x20] sm:$0xff]
    %v3608 = vld [vmem:[#allocation8 + $0x28] sm:$0xff]
    %v3609 = vld [vmem:[#allocation8 + $0x30] sm:$0xff]
    %v3610 = vld [vmem:[#allocation8 + $0x38] sm:$0xff]
    %v3611 = vld [vmem:[#allocation8 + $0x40] sm:$0xff]
    %v3612 = vld [vmem:[#allocation8 + $0x48] sm:$0xff]
    %v3613 = vld [vmem:[#allocation8 + $0x50] sm:$0xff]
    %v3614 = vld [vmem:[#allocation8 + $0x58] sm:$0xff]
    %v3615 = vld [vmem:[#allocation8 + $0x60] sm:$0xff]
    %v3616 = vld [vmem:[#allocation8 + $0x68] sm:$0xff]
    %v3617 = vld [vmem:[#allocation8 + $0x70] sm:$0xff]
    %v3618 = vld [vmem:[#allocation8 + $0x78] sm:$0xff]
    %v3619 = vld [vmem:[#allocation8 + $0x80] sm:$0xff]
    %v3620 = vld [vmem:[#allocation8 + $0x88] sm:$0xff]
    %v3621 = vld [vmem:[#allocation8 + $0x90] sm:$0xff]
    %v3622 = vld [vmem:[#allocation8 + $0x98] sm:$0xff]
    %v3623 = vld [vmem:[#allocation8 + $0xa0] sm:$0xff]
    %v3624 = vld [vmem:[#allocation8 + $0xa8] sm:$0xff]
    %v3625 = vld [vmem:[#allocation8 + $0xb0] sm:$0xff]
    %v3626 = vld [vmem:[#allocation8 + $0xb8] sm:$0xff]
    %v3627 = vld [vmem:[#allocation8 + $0xc0] sm:$0xff]
    %v3628 = vld [vmem:[#allocation8 + $0xc8] sm:$0xff]
    %v3629 = vld [vmem:[#allocation8 + $0xd0] sm:$0xff]
    %v3630 = vld [vmem:[#allocation8 + $0xd8] sm:$0xff]
    %v3631 = vld [vmem:[#allocation8 + $0xe0] sm:$0xff]
    %v3632 = vld [vmem:[#allocation8 + $0xe8] sm:$0xff]
    %v3633 = vld [vmem:[#allocation8 + $0xf0] sm:$0xff]
    %v3634 = vld [vmem:[#allocation8 + $0xf8] sm:$0xff]
    %v3635 = vld [vmem:[#allocation8 + $0x100] sm:$0xff]
    %v3636 = vld [vmem:[#allocation8 + $0x108] sm:$0xff]
    %v3637 = vld [vmem:[#allocation8 + $0x110] sm:$0xff]
    %v3638 = vld [vmem:[#allocation8 + $0x118] sm:$0xff]
    %v3639 = vld [vmem:[#allocation8 + $0x120] sm:$0xff]
    %v3640 = vld [vmem:[#allocation8 + $0x128] sm:$0xff]
    %v3641 = vld [vmem:[#allocation8 + $0x130] sm:$0xff]
    %v3642 = vld [vmem:[#allocation8 + $0x138] sm:$0xff]
    %v3643 = vld [vmem:[#allocation8 + $0x140] sm:$0xff]
    %v3644 = vld [vmem:[#allocation8 + $0x148] sm:$0xff]
    %v3645 = vld [vmem:[#allocation8 + $0x150] sm:$0xff]
    %v3646 = vld [vmem:[#allocation8 + $0x158] sm:$0xff]
    %v3647 = vld [vmem:[#allocation8 + $0x160] sm:$0xff]
    %v3648 = vld [vmem:[#allocation8 + $0x168] sm:$0xff]
    %v3649 = vld [vmem:[#allocation8 + $0x170] sm:$0xff]
    %v3650 = vld [vmem:[#allocation8 + $0x178] sm:$0xff]
    %v3651 = vld [vmem:[#allocation8 + $0x180] sm:$0xff]
    %v3652 = vld [vmem:[#allocation8 + $0x188] sm:$0xff]
    %v3653 = vld [vmem:[#allocation8 + $0x190] sm:$0xff]
    %v3654 = vld [vmem:[#allocation8 + $0x198] sm:$0xff]
    %v3655 = vld [vmem:[#allocation8 + $0x1a0] sm:$0xff]
    %v3656 = vld [vmem:[#allocation8 + $0x1a8] sm:$0xff]
    %v3657 = vld [vmem:[#allocation8 + $0x1b0] sm:$0xff]
    %v3658 = vld [vmem:[#allocation8 + $0x1b8] sm:$0xff]
    %v3659 = vld [vmem:[#allocation8 + $0x1c0] sm:$0xff]
    %v3660 = vld [vmem:[#allocation8 + $0x1c8] sm:$0xff]
    %v3661 = vld [vmem:[#allocation8 + $0x1d0] sm:$0xff]
    %v3662 = vld [vmem:[#allocation8 + $0x1d8] sm:$0xff]
    %v3663 = vld [vmem:[#allocation8 + $0x1e0] sm:$0xff]
    %v3664 = vld [vmem:[#allocation8 + $0x1e8] sm:$0xff]
    %v3665 = vld [vmem:[#allocation8 + $0x1f0] sm:$0xff]
    %v3666 = vld [vmem:[#allocation8 + $0x1f8] sm:$0xff]
    %v3667 = vld [vmem:[#allocation8 + $0x200] sm:$0xff]
    %v3668 = vld [vmem:[#allocation8 + $0x208] sm:$0xff]
    %v3669 = vld [vmem:[#allocation8 + $0x210] sm:$0xff]
    %v3670 = vld [vmem:[#allocation8 + $0x218] sm:$0xff]
    %v3671 = vld [vmem:[#allocation8 + $0x220] sm:$0xff]
    %v3672 = vld [vmem:[#allocation8 + $0x228] sm:$0xff]
    %v3673 = vld [vmem:[#allocation8 + $0x230] sm:$0xff]
    %v3674 = vld [vmem:[#allocation8 + $0x238] sm:$0xff]
    %v3675 = vld [vmem:[#allocation8 + $0x240] sm:$0xff]
    %v3676 = vld [vmem:[#allocation8 + $0x248] sm:$0xff]
    %v3677 = vld [vmem:[#allocation8 + $0x250] sm:$0xff]
    %v3678 = vld [vmem:[#allocation8 + $0x258] sm:$0xff]
    %v3679 = vld [vmem:[#allocation8 + $0x260] sm:$0xff]
    %v3680 = vld [vmem:[#allocation8 + $0x268] sm:$0xff]
    %v3681 = vld [vmem:[#allocation8 + $0x270] sm:$0xff]
    %v3682 = vld [vmem:[#allocation8 + $0x278] sm:$0xff]
    %v3683 = vld [vmem:[#allocation8 + $0x280] sm:$0xff]
    %v3684 = vld [vmem:[#allocation8 + $0x288] sm:$0xff]
    %v3685 = vld [vmem:[#allocation8 + $0x290] sm:$0xff]
    %v3686 = vld [vmem:[#allocation8 + $0x298] sm:$0xff]
    %v3687 = vld [vmem:[#allocation8 + $0x2a0] sm:$0xff]
    %v3688 = vld [vmem:[#allocation8 + $0x2a8] sm:$0xff]
    %v3689 = vld [vmem:[#allocation8 + $0x2b0] sm:$0xff]
    %v3690 = vld [vmem:[#allocation8 + $0x2b8] sm:$0xff]
    %v3691 = vld [vmem:[#allocation8 + $0x2c0] sm:$0xff]
    %v3692 = vld [vmem:[#allocation8 + $0x2c8] sm:$0xff]
    %v3693 = vld [vmem:[#allocation8 + $0x2d0] sm:$0xff]
    %v3694 = vld [vmem:[#allocation8 + $0x2d8] sm:$0xff]
    %v3695 = vld [vmem:[#allocation8 + $0x2e0] sm:$0xff]
    %v3696 = vld [vmem:[#allocation8 + $0x2e8] sm:$0xff]
    %v3697 = vld [vmem:[#allocation8 + $0x2f0] sm:$0xff]
    %v3698 = vld [vmem:[#allocation8 + $0x2f8] sm:$0xff]
    %v3699 = vld [vmem:[#allocation8 + $0x300] sm:$0xff]
    %v3700 = vld [vmem:[#allocation8 + $0x308] sm:$0xff]
    %v3701 = vld [vmem:[#allocation8 + $0x310] sm:$0xff]
    %v3702 = vld [vmem:[#allocation8 + $0x318] sm:$0xff]
    %v3703 = vld [vmem:[#allocation8 + $0x320] sm:$0xff]
    %v3704 = vld [vmem:[#allocation8 + $0x328] sm:$0xff]
    %v3705 = vld [vmem:[#allocation8 + $0x330] sm:$0xff]
    %v3706 = vld [vmem:[#allocation8 + $0x338] sm:$0xff]
    %v3707 = vld [vmem:[#allocation8 + $0x340] sm:$0xff]
    %v3708 = vld [vmem:[#allocation8 + $0x348] sm:$0xff]
    %v3709 = vld [vmem:[#allocation8 + $0x350] sm:$0xff]
    %v3710 = vld [vmem:[#allocation8 + $0x358] sm:$0xff]
    %v3711 = vld [vmem:[#allocation8 + $0x360] sm:$0xff]
    %v3712 = vld [vmem:[#allocation8 + $0x368] sm:$0xff]
    %v3713 = vld [vmem:[#allocation8 + $0x370] sm:$0xff]
    %v3714 = vld [vmem:[#allocation8 + $0x378] sm:$0xff]
    %v3715 = vld [vmem:[#allocation8 + $0x380] sm:$0xff]
    %v3716 = vld [vmem:[#allocation8 + $0x388] sm:$0xff]
    %v3717 = vld [vmem:[#allocation8 + $0x390] sm:$0xff]
    %v3718 = vld [vmem:[#allocation8 + $0x398] sm:$0xff]
    %v3719 = vld [vmem:[#allocation8 + $0x3a0] sm:$0xff]
    %v3720 = vld [vmem:[#allocation8 + $0x3a8] sm:$0xff]
    %v3721 = vld [vmem:[#allocation8 + $0x3b0] sm:$0xff]
    %v3722 = vld [vmem:[#allocation8 + $0x3b8] sm:$0xff]
    %v3723 = vld [vmem:[#allocation8 + $0x3c0] sm:$0xff]
    %v3724 = vld [vmem:[#allocation8 + $0x3c8] sm:$0xff]
    %v3725 = vld [vmem:[#allocation8 + $0x3d0] sm:$0xff]
    %v3726 = vld [vmem:[#allocation8 + $0x3d8] sm:$0xff]
    %v3727 = vld [vmem:[#allocation8 + $0x3e0] sm:$0xff]
    %v3728 = vld [vmem:[#allocation8 + $0x3e8] sm:$0xff]
    %v3729 = vld [vmem:[#allocation8 + $0x3f0] sm:$0xff]
    %v3730 = vld [vmem:[#allocation8 + $0x3f8] sm:$0xff]
    %v3731 = vld [vmem:[#allocation10] sm:$0x3]
    %v3733 = vlaneseq
    %v3734 = vshrl.u32 %v3733, 7
    %v3735 = vsub.s32 0, %v3734
    %v3736 = vrot.slane %v3731, %v3735
    %v3737 = vlaneseq
    %v3738 = vshrl.u32 %v3737, 7
    %v3739 = vsub.s32 1, %v3738
    %v3740 = vrot.slane %v3731, %v3739
    %v3871 = vunpack.c.l.b16 %v3603
    %v3872 = vunpack.c.h.b16 %v3603
    %v3873 = vunpack.c.l.b16 %v3604
    %v3874 = vunpack.c.h.b16 %v3604
    %v3875 = vunpack.c.l.b16 %v3605
    %v3876 = vunpack.c.h.b16 %v3605
    %v3877 = vunpack.c.l.b16 %v3606
    %v3878 = vunpack.c.h.b16 %v3606
    %v3879 = vunpack.c.l.b16 %v3607
    %v3880 = vunpack.c.h.b16 %v3607
    %v3881 = vunpack.c.l.b16 %v3608
    %v3882 = vunpack.c.h.b16 %v3608
    %v3883 = vunpack.c.l.b16 %v3609
    %v3884 = vunpack.c.h.b16 %v3609
    %v3885 = vunpack.c.l.b16 %v3610
    %v3886 = vunpack.c.h.b16 %v3610
    %v3887 = vunpack.c.l.b16 %v3611
    %v3888 = vunpack.c.h.b16 %v3611
    %v3889 = vunpack.c.l.b16 %v3612
    %v3890 = vunpack.c.h.b16 %v3612
    %v3891 = vunpack.c.l.b16 %v3613
    %v3892 = vunpack.c.h.b16 %v3613
    %v3893 = vunpack.c.l.b16 %v3614
    %v3894 = vunpack.c.h.b16 %v3614
    %v3895 = vunpack.c.l.b16 %v3615
    %v3896 = vunpack.c.h.b16 %v3615
    %v3897 = vunpack.c.l.b16 %v3616
    %v3898 = vunpack.c.h.b16 %v3616
    %v3899 = vunpack.c.l.b16 %v3617
    %v3900 = vunpack.c.h.b16 %v3617
    %v3901 = vunpack.c.l.b16 %v3618
    %v3902 = vunpack.c.h.b16 %v3618
    %v3903 = vunpack.c.l.b16 %v3619
    %v3904 = vunpack.c.h.b16 %v3619
    %v3905 = vunpack.c.l.b16 %v3620
    %v3906 = vunpack.c.h.b16 %v3620
    %v3907 = vunpack.c.l.b16 %v3621
    %v3908 = vunpack.c.h.b16 %v3621
    %v3909 = vunpack.c.l.b16 %v3622
    %v3910 = vunpack.c.h.b16 %v3622
    %v3911 = vunpack.c.l.b16 %v3623
    %v3912 = vunpack.c.h.b16 %v3623
    %v3913 = vunpack.c.l.b16 %v3624
    %v3914 = vunpack.c.h.b16 %v3624
    %v3915 = vunpack.c.l.b16 %v3625
    %v3916 = vunpack.c.h.b16 %v3625
    %v3917 = vunpack.c.l.b16 %v3626
    %v3918 = vunpack.c.h.b16 %v3626
    %v3919 = vunpack.c.l.b16 %v3627
    %v3920 = vunpack.c.h.b16 %v3627
    %v3921 = vunpack.c.l.b16 %v3628
    %v3922 = vunpack.c.h.b16 %v3628
    %v3923 = vunpack.c.l.b16 %v3629
    %v3924 = vunpack.c.h.b16 %v3629
    %v3925 = vunpack.c.l.b16 %v3630
    %v3926 = vunpack.c.h.b16 %v3630
    %v3927 = vunpack.c.l.b16 %v3631
    %v3928 = vunpack.c.h.b16 %v3631
    %v3929 = vunpack.c.l.b16 %v3632
    %v3930 = vunpack.c.h.b16 %v3632
    %v3931 = vunpack.c.l.b16 %v3633
    %v3932 = vunpack.c.h.b16 %v3633
    %v3933 = vunpack.c.l.b16 %v3634
    %v3934 = vunpack.c.h.b16 %v3634
    %v3935 = vunpack.c.l.b16 %v3635
    %v3936 = vunpack.c.h.b16 %v3635
    %v3937 = vunpack.c.l.b16 %v3636
    %v3938 = vunpack.c.h.b16 %v3636
    %v3939 = vunpack.c.l.b16 %v3637
    %v3940 = vunpack.c.h.b16 %v3637
    %v3941 = vunpack.c.l.b16 %v3638
    %v3942 = vunpack.c.h.b16 %v3638
    %v3943 = vunpack.c.l.b16 %v3639
    %v3944 = vunpack.c.h.b16 %v3639
    %v3945 = vunpack.c.l.b16 %v3640
    %v3946 = vunpack.c.h.b16 %v3640
    %v3947 = vunpack.c.l.b16 %v3641
    %v3948 = vunpack.c.h.b16 %v3641
    %v3949 = vunpack.c.l.b16 %v3642
    %v3950 = vunpack.c.h.b16 %v3642
    %v3951 = vunpack.c.l.b16 %v3643
    %v3952 = vunpack.c.h.b16 %v3643
    %v3953 = vunpack.c.l.b16 %v3644
    %v3954 = vunpack.c.h.b16 %v3644
    %v3955 = vunpack.c.l.b16 %v3645
    %v3956 = vunpack.c.h.b16 %v3645
    %v3957 = vunpack.c.l.b16 %v3646
    %v3958 = vunpack.c.h.b16 %v3646
    %v3959 = vunpack.c.l.b16 %v3647
    %v3960 = vunpack.c.h.b16 %v3647
    %v3961 = vunpack.c.l.b16 %v3648
    %v3962 = vunpack.c.h.b16 %v3648
    %v3963 = vunpack.c.l.b16 %v3649
    %v3964 = vunpack.c.h.b16 %v3649
    %v3965 = vunpack.c.l.b16 %v3650
    %v3966 = vunpack.c.h.b16 %v3650
    %v3967 = vunpack.c.l.b16 %v3651
    %v3968 = vunpack.c.h.b16 %v3651
    %v3969 = vunpack.c.l.b16 %v3652
    %v3970 = vunpack.c.h.b16 %v3652
    %v3971 = vunpack.c.l.b16 %v3653
    %v3972 = vunpack.c.h.b16 %v3653
    %v3973 = vunpack.c.l.b16 %v3654
    %v3974 = vunpack.c.h.b16 %v3654
    %v3975 = vunpack.c.l.b16 %v3655
    %v3976 = vunpack.c.h.b16 %v3655
    %v3977 = vunpack.c.l.b16 %v3656
    %v3978 = vunpack.c.h.b16 %v3656
    %v3979 = vunpack.c.l.b16 %v3657
    %v3980 = vunpack.c.h.b16 %v3657
    %v3981 = vunpack.c.l.b16 %v3658
    %v3982 = vunpack.c.h.b16 %v3658
    %v3983 = vunpack.c.l.b16 %v3659
    %v3984 = vunpack.c.h.b16 %v3659
    %v3985 = vunpack.c.l.b16 %v3660
    %v3986 = vunpack.c.h.b16 %v3660
    %v3987 = vunpack.c.l.b16 %v3661
    %v3988 = vunpack.c.h.b16 %v3661
    %v3989 = vunpack.c.l.b16 %v3662
    %v3990 = vunpack.c.h.b16 %v3662
    %v3991 = vunpack.c.l.b16 %v3663
    %v3992 = vunpack.c.h.b16 %v3663
    %v3993 = vunpack.c.l.b16 %v3664
    %v3994 = vunpack.c.h.b16 %v3664
    %v3995 = vunpack.c.l.b16 %v3665
    %v3996 = vunpack.c.h.b16 %v3665
    %v3997 = vunpack.c.l.b16 %v3666
    %v3998 = vunpack.c.h.b16 %v3666
    %v3999 = vunpack.c.l.b16 %v3667
    %v4000 = vunpack.c.h.b16 %v3667
    %v4001 = vunpack.c.l.b16 %v3668
    %v4002 = vunpack.c.h.b16 %v3668
    %v4003 = vunpack.c.l.b16 %v3669
    %v4004 = vunpack.c.h.b16 %v3669
    %v4005 = vunpack.c.l.b16 %v3670
    %v4006 = vunpack.c.h.b16 %v3670
    %v4007 = vunpack.c.l.b16 %v3671
    %v4008 = vunpack.c.h.b16 %v3671
    %v4009 = vunpack.c.l.b16 %v3672
    %v4010 = vunpack.c.h.b16 %v3672
    %v4011 = vunpack.c.l.b16 %v3673
    %v4012 = vunpack.c.h.b16 %v3673
    %v4013 = vunpack.c.l.b16 %v3674
    %v4014 = vunpack.c.h.b16 %v3674
    %v4015 = vunpack.c.l.b16 %v3675
    %v4016 = vunpack.c.h.b16 %v3675
    %v4017 = vunpack.c.l.b16 %v3676
    %v4018 = vunpack.c.h.b16 %v3676
    %v4019 = vunpack.c.l.b16 %v3677
    %v4020 = vunpack.c.h.b16 %v3677
    %v4021 = vunpack.c.l.b16 %v3678
    %v4022 = vunpack.c.h.b16 %v3678
    %v4023 = vunpack.c.l.b16 %v3679
    %v4024 = vunpack.c.h.b16 %v3679
    %v4025 = vunpack.c.l.b16 %v3680
    %v4026 = vunpack.c.h.b16 %v3680
    %v4027 = vunpack.c.l.b16 %v3681
    %v4028 = vunpack.c.h.b16 %v3681
    %v4029 = vunpack.c.l.b16 %v3682
    %v4030 = vunpack.c.h.b16 %v3682
    %v4031 = vunpack.c.l.b16 %v3683
    %v4032 = vunpack.c.h.b16 %v3683
    %v4033 = vunpack.c.l.b16 %v3684
    %v4034 = vunpack.c.h.b16 %v3684
    %v4035 = vunpack.c.l.b16 %v3685
    %v4036 = vunpack.c.h.b16 %v3685
    %v4037 = vunpack.c.l.b16 %v3686
    %v4038 = vunpack.c.h.b16 %v3686
    %v4039 = vunpack.c.l.b16 %v3687
    %v4040 = vunpack.c.h.b16 %v3687
    %v4041 = vunpack.c.l.b16 %v3688
    %v4042 = vunpack.c.h.b16 %v3688
    %v4043 = vunpack.c.l.b16 %v3689
    %v4044 = vunpack.c.h.b16 %v3689
    %v4045 = vunpack.c.l.b16 %v3690
    %v4046 = vunpack.c.h.b16 %v3690
    %v4047 = vunpack.c.l.b16 %v3691
    %v4048 = vunpack.c.h.b16 %v3691
    %v4049 = vunpack.c.l.b16 %v3692
    %v4050 = vunpack.c.h.b16 %v3692
    %v4051 = vunpack.c.l.b16 %v3693
    %v4052 = vunpack.c.h.b16 %v3693
    %v4053 = vunpack.c.l.b16 %v3694
    %v4054 = vunpack.c.h.b16 %v3694
    %v4055 = vunpack.c.l.b16 %v3695
    %v4056 = vunpack.c.h.b16 %v3695
    %v4057 = vunpack.c.l.b16 %v3696
    %v4058 = vunpack.c.h.b16 %v3696
    %v4059 = vunpack.c.l.b16 %v3697
    %v4060 = vunpack.c.h.b16 %v3697
    %v4061 = vunpack.c.l.b16 %v3698
    %v4062 = vunpack.c.h.b16 %v3698
    %v4063 = vunpack.c.l.b16 %v3699
    %v4064 = vunpack.c.h.b16 %v3699
    %v4065 = vunpack.c.l.b16 %v3700
    %v4066 = vunpack.c.h.b16 %v3700
    %v4067 = vunpack.c.l.b16 %v3701
    %v4068 = vunpack.c.h.b16 %v3701
    %v4069 = vunpack.c.l.b16 %v3702
    %v4070 = vunpack.c.h.b16 %v3702
    %v4071 = vunpack.c.l.b16 %v3703
    %v4072 = vunpack.c.h.b16 %v3703
    %v4073 = vunpack.c.l.b16 %v3704
    %v4074 = vunpack.c.h.b16 %v3704
    %v4075 = vunpack.c.l.b16 %v3705
    %v4076 = vunpack.c.h.b16 %v3705
    %v4077 = vunpack.c.l.b16 %v3706
    %v4078 = vunpack.c.h.b16 %v3706
    %v4079 = vunpack.c.l.b16 %v3707
    %v4080 = vunpack.c.h.b16 %v3707
    %v4081 = vunpack.c.l.b16 %v3708
    %v4082 = vunpack.c.h.b16 %v3708
    %v4083 = vunpack.c.l.b16 %v3709
    %v4084 = vunpack.c.h.b16 %v3709
    %v4085 = vunpack.c.l.b16 %v3710
    %v4086 = vunpack.c.h.b16 %v3710
    %v4087 = vunpack.c.l.b16 %v3711
    %v4088 = vunpack.c.h.b16 %v3711
    %v4089 = vunpack.c.l.b16 %v3712
    %v4090 = vunpack.c.h.b16 %v3712
    %v4091 = vunpack.c.l.b16 %v3713
    %v4092 = vunpack.c.h.b16 %v3713
    %v4093 = vunpack.c.l.b16 %v3714
    %v4094 = vunpack.c.h.b16 %v3714
    %v4095 = vunpack.c.l.b16 %v3715
    %v4096 = vunpack.c.h.b16 %v3715
    %v4097 = vunpack.c.l.b16 %v3716
    %v4098 = vunpack.c.h.b16 %v3716
    %v4099 = vunpack.c.l.b16 %v3717
    %v4100 = vunpack.c.h.b16 %v3717
    %v4101 = vunpack.c.l.b16 %v3718
    %v4102 = vunpack.c.h.b16 %v3718
    %v4103 = vunpack.c.l.b16 %v3719
    %v4104 = vunpack.c.h.b16 %v3719
    %v4105 = vunpack.c.l.b16 %v3720
    %v4106 = vunpack.c.h.b16 %v3720
    %v4107 = vunpack.c.l.b16 %v3721
    %v4108 = vunpack.c.h.b16 %v3721
    %v4109 = vunpack.c.l.b16 %v3722
    %v4110 = vunpack.c.h.b16 %v3722
    %v4111 = vunpack.c.l.b16 %v3723
    %v4112 = vunpack.c.h.b16 %v3723
    %v4113 = vunpack.c.l.b16 %v3724
    %v4114 = vunpack.c.h.b16 %v3724
    %v4115 = vunpack.c.l.b16 %v3725
    %v4116 = vunpack.c.h.b16 %v3725
    %v4117 = vunpack.c.l.b16 %v3726
    %v4118 = vunpack.c.h.b16 %v3726
    %v4119 = vunpack.c.l.b16 %v3727
    %v4120 = vunpack.c.h.b16 %v3727
    %v4121 = vunpack.c.l.b16 %v3728
    %v4122 = vunpack.c.h.b16 %v3728
    %v4123 = vunpack.c.l.b16 %v3729
    %v4124 = vunpack.c.h.b16 %v3729
    %v4125 = vunpack.c.l.b16 %v3730
    %v4126 = vunpack.c.h.b16 %v3730
    %v4127 = vpack.c.b16 %v3873, %v3871
    %v4128 = vpack.c.b16 %v3874, %v3872
    %v4129 = vpack.c.b16 %v3877, %v3875
    %v4130 = vpack.c.b16 %v3878, %v3876
    %v4131 = vpack.c.b16 %v3881, %v3879
    %v4132 = vpack.c.b16 %v3882, %v3880
    %v4133 = vpack.c.b16 %v3885, %v3883
    %v4134 = vpack.c.b16 %v3886, %v3884
    %v4135 = vpack.c.b16 %v3889, %v3887
    %v4136 = vpack.c.b16 %v3890, %v3888
    %v4137 = vpack.c.b16 %v3893, %v3891
    %v4138 = vpack.c.b16 %v3894, %v3892
    %v4139 = vpack.c.b16 %v3897, %v3895
    %v4140 = vpack.c.b16 %v3898, %v3896
    %v4141 = vpack.c.b16 %v3901, %v3899
    %v4142 = vpack.c.b16 %v3902, %v3900
    %v4143 = vpack.c.b16 %v3905, %v3903
    %v4144 = vpack.c.b16 %v3906, %v3904
    %v4145 = vpack.c.b16 %v3909, %v3907
    %v4146 = vpack.c.b16 %v3910, %v3908
    %v4147 = vpack.c.b16 %v3913, %v3911
    %v4148 = vpack.c.b16 %v3914, %v3912
    %v4149 = vpack.c.b16 %v3917, %v3915
    %v4150 = vpack.c.b16 %v3918, %v3916
    %v4151 = vpack.c.b16 %v3921, %v3919
    %v4152 = vpack.c.b16 %v3922, %v3920
    %v4153 = vpack.c.b16 %v3925, %v3923
    %v4154 = vpack.c.b16 %v3926, %v3924
    %v4155 = vpack.c.b16 %v3929, %v3927
    %v4156 = vpack.c.b16 %v3930, %v3928
    %v4157 = vpack.c.b16 %v3933, %v3931
    %v4158 = vpack.c.b16 %v3934, %v3932
    %v4159 = vpack.c.b16 %v3937, %v3935
    %v4160 = vpack.c.b16 %v3938, %v3936
    %v4161 = vpack.c.b16 %v3941, %v3939
    %v4162 = vpack.c.b16 %v3942, %v3940
    %v4163 = vpack.c.b16 %v3945, %v3943
    %v4164 = vpack.c.b16 %v3946, %v3944
    %v4165 = vpack.c.b16 %v3949, %v3947
    %v4166 = vpack.c.b16 %v3950, %v3948
    %v4167 = vpack.c.b16 %v3953, %v3951
    %v4168 = vpack.c.b16 %v3954, %v3952
    %v4169 = vpack.c.b16 %v3957, %v3955
    %v4170 = vpack.c.b16 %v3958, %v3956
    %v4171 = vpack.c.b16 %v3961, %v3959
    %v4172 = vpack.c.b16 %v3962, %v3960
    %v4173 = vpack.c.b16 %v3965, %v3963
    %v4174 = vpack.c.b16 %v3966, %v3964
    %v4175 = vpack.c.b16 %v3969, %v3967
    %v4176 = vpack.c.b16 %v3970, %v3968
    %v4177 = vpack.c.b16 %v3973, %v3971
    %v4178 = vpack.c.b16 %v3974, %v3972
    %v4179 = vpack.c.b16 %v3977, %v3975
    %v4180 = vpack.c.b16 %v3978, %v3976
    %v4181 = vpack.c.b16 %v3981, %v3979
    %v4182 = vpack.c.b16 %v3982, %v3980
    %v4183 = vpack.c.b16 %v3985, %v3983
    %v4184 = vpack.c.b16 %v3986, %v3984
    %v4185 = vpack.c.b16 %v3989, %v3987
    %v4186 = vpack.c.b16 %v3990, %v3988
    %v4187 = vpack.c.b16 %v3993, %v3991
    %v4188 = vpack.c.b16 %v3994, %v3992
    %v4189 = vpack.c.b16 %v3997, %v3995
    %v4190 = vpack.c.b16 %v3998, %v3996
    %v4191 = vpack.c.b16 %v4001, %v3999
    %v4192 = vpack.c.b16 %v4002, %v4000
    %v4193 = vpack.c.b16 %v4005, %v4003
    %v4194 = vpack.c.b16 %v4006, %v4004
    %v4195 = vpack.c.b16 %v4009, %v4007
    %v4196 = vpack.c.b16 %v4010, %v4008
    %v4197 = vpack.c.b16 %v4013, %v4011
    %v4198 = vpack.c.b16 %v4014, %v4012
    %v4199 = vpack.c.b16 %v4017, %v4015
    %v4200 = vpack.c.b16 %v4018, %v4016
    %v4201 = vpack.c.b16 %v4021, %v4019
    %v4202 = vpack.c.b16 %v4022, %v4020
    %v4203 = vpack.c.b16 %v4025, %v4023
    %v4204 = vpack.c.b16 %v4026, %v4024
    %v4205 = vpack.c.b16 %v4029, %v4027
    %v4206 = vpack.c.b16 %v4030, %v4028
    %v4207 = vpack.c.b16 %v4033, %v4031
    %v4208 = vpack.c.b16 %v4034, %v4032
    %v4209 = vpack.c.b16 %v4037, %v4035
    %v4210 = vpack.c.b16 %v4038, %v4036
    %v4211 = vpack.c.b16 %v4041, %v4039
    %v4212 = vpack.c.b16 %v4042, %v4040
    %v4213 = vpack.c.b16 %v4045, %v4043
    %v4214 = vpack.c.b16 %v4046, %v4044
    %v4215 = vpack.c.b16 %v4049, %v4047
    %v4216 = vpack.c.b16 %v4050, %v4048
    %v4217 = vpack.c.b16 %v4053, %v4051
    %v4218 = vpack.c.b16 %v4054, %v4052
    %v4219 = vpack.c.b16 %v4057, %v4055
    %v4220 = vpack.c.b16 %v4058, %v4056
    %v4221 = vpack.c.b16 %v4061, %v4059
    %v4222 = vpack.c.b16 %v4062, %v4060
    %v4223 = vpack.c.b16 %v4065, %v4063
    %v4224 = vpack.c.b16 %v4066, %v4064
    %v4225 = vpack.c.b16 %v4069, %v4067
    %v4226 = vpack.c.b16 %v4070, %v4068
    %v4227 = vpack.c.b16 %v4073, %v4071
    %v4228 = vpack.c.b16 %v4074, %v4072
    %v4229 = vpack.c.b16 %v4077, %v4075
    %v4230 = vpack.c.b16 %v4078, %v4076
    %v4231 = vpack.c.b16 %v4081, %v4079
    %v4232 = vpack.c.b16 %v4082, %v4080
    %v4233 = vpack.c.b16 %v4085, %v4083
    %v4234 = vpack.c.b16 %v4086, %v4084
    %v4235 = vpack.c.b16 %v4089, %v4087
    %v4236 = vpack.c.b16 %v4090, %v4088
    %v4237 = vpack.c.b16 %v4093, %v4091
    %v4238 = vpack.c.b16 %v4094, %v4092
    %v4239 = vpack.c.b16 %v4097, %v4095
    %v4240 = vpack.c.b16 %v4098, %v4096
    %v4241 = vpack.c.b16 %v4101, %v4099
    %v4242 = vpack.c.b16 %v4102, %v4100
    %v4243 = vpack.c.b16 %v4105, %v4103
    %v4244 = vpack.c.b16 %v4106, %v4104
    %v4245 = vpack.c.b16 %v4109, %v4107
    %v4246 = vpack.c.b16 %v4110, %v4108
    %v4247 = vpack.c.b16 %v4113, %v4111
    %v4248 = vpack.c.b16 %v4114, %v4112
    %v4249 = vpack.c.b16 %v4117, %v4115
    %v4250 = vpack.c.b16 %v4118, %v4116
    %v4251 = vpack.c.b16 %v4121, %v4119
    %v4252 = vpack.c.b16 %v4122, %v4120
    %v4253 = vpack.c.b16 %v4125, %v4123
    %v4254 = vpack.c.b16 %v4126, %v4124
    %4383 = vmatprep.subr.bf16.mxu0 %v4128
    %4384 = vmatpush1.bf16.msra.mxu0 %v4127
    %4385 = vmatprep.subr.bf16.mxu0 %v4130
    %4386 = vmatpush1.bf16.msra.mxu0 %v4129
    %4387 = vmatprep.subr.bf16.mxu0 %v4132
    %4388 = vmatpush1.bf16.msra.mxu0 %v4131
    %4389 = vmatprep.subr.bf16.mxu0 %v4134
    %4390 = vmatpush1.bf16.msra.mxu0 %v4133
    %4391 = vmatprep.subr.bf16.mxu0 %v4136
    %4392 = vmatpush1.bf16.msra.mxu0 %v4135
    %4393 = vmatprep.subr.bf16.mxu0 %v4138
    %4394 = vmatpush1.bf16.msra.mxu0 %v4137
    %4395 = vmatprep.subr.bf16.mxu0 %v4140
    %4396 = vmatpush1.bf16.msra.mxu0 %v4139
    %4397 = vmatprep.subr.bf16.mxu0 %v4142
    %4398 = vmatpush1.bf16.msra.mxu0 %v4141
    %4399 = vmatprep.subr.bf16.mxu0 %v4144
    %4400 = vmatpush1.bf16.msra.mxu0 %v4143
    %4401 = vmatprep.subr.bf16.mxu0 %v4146
    %4402 = vmatpush1.bf16.msra.mxu0 %v4145
    %4403 = vmatprep.subr.bf16.mxu0 %v4148
    %4404 = vmatpush1.bf16.msra.mxu0 %v4147
    %4405 = vmatprep.subr.bf16.mxu0 %v4150
    %4406 = vmatpush1.bf16.msra.mxu0 %v4149
    %4407 = vmatprep.subr.bf16.mxu0 %v4152
    %4408 = vmatpush1.bf16.msra.mxu0 %v4151
    %4409 = vmatprep.subr.bf16.mxu0 %v4154
    %4410 = vmatpush1.bf16.msra.mxu0 %v4153
    %4411 = vmatprep.subr.bf16.mxu0 %v4156
    %4412 = vmatpush1.bf16.msra.mxu0 %v4155
    %4413 = vmatprep.subr.bf16.mxu0 %v4158
    %4414 = vmatpush1.bf16.msra.mxu0 %v4157
    %4415 = vmatprep.mubr.bf16.mxu0 %v3596
    %4416 = vmatmul.mubr.bf16.gmra.mrb[0].mxu0 %v3595
    %v4417 = vpop.f32.mrb[0].mxu0
    %v4418 = vadd.f32 %v3736, %v4417
    %v4419 = vpop.f32.mrb[0].mxu0
    %v4420 = vadd.f32 %v3740, %v4419
    %v4421 = vpop.f32.mrb[0].mxu0
    %v4422 = vadd.f32 %v3736, %v4421
    %v4423 = vpop.f32.mrb[0].mxu0
    %v4424 = vadd.f32 %v3740, %v4423
    %4425 = vdwg.mxu0
    %4426 = vmatprep.subr.bf16.mxu0 %v4160
    %4427 = vmatpush1.bf16.msra.mxu0 %v4159
    %4428 = vmatprep.subr.bf16.mxu0 %v4162
    %4429 = vmatpush1.bf16.msra.mxu0 %v4161
    %4430 = vmatprep.subr.bf16.mxu0 %v4164
    %4431 = vmatpush1.bf16.msra.mxu0 %v4163
    %4432 = vmatprep.subr.bf16.mxu0 %v4166
    %4433 = vmatpush1.bf16.msra.mxu0 %v4165
    %4434 = vmatprep.subr.bf16.mxu0 %v4168
    %4435 = vmatpush1.bf16.msra.mxu0 %v4167
    %4436 = vmatprep.subr.bf16.mxu0 %v4170
    %4437 = vmatpush1.bf16.msra.mxu0 %v4169
    %4438 = vmatprep.subr.bf16.mxu0 %v4172
    %4439 = vmatpush1.bf16.msra.mxu0 %v4171
    %4440 = vmatprep.subr.bf16.mxu0 %v4174
    %4441 = vmatpush1.bf16.msra.mxu0 %v4173
    %4442 = vmatprep.subr.bf16.mxu0 %v4176
    %4443 = vmatpush1.bf16.msra.mxu0 %v4175
    %4444 = vmatprep.subr.bf16.mxu0 %v4178
    %4445 = vmatpush1.bf16.msra.mxu0 %v4177
    %4446 = vmatprep.subr.bf16.mxu0 %v4180
    %4447 = vmatpush1.bf16.msra.mxu0 %v4179
    %4448 = vmatprep.subr.bf16.mxu0 %v4182
    %4449 = vmatpush1.bf16.msra.mxu0 %v4181
    %4450 = vmatprep.subr.bf16.mxu0 %v4184
    %4451 = vmatpush1.bf16.msra.mxu0 %v4183
    %4452 = vmatprep.subr.bf16.mxu0 %v4186
    %4453 = vmatpush1.bf16.msra.mxu0 %v4185
    %4454 = vmatprep.subr.bf16.mxu0 %v4188
    %4455 = vmatpush1.bf16.msra.mxu0 %v4187
    %4456 = vmatprep.subr.bf16.mxu0 %v4190
    %4457 = vmatpush1.bf16.msra.mxu0 %v4189
    %4458 = vmatprep.mubr.bf16.mxu0 %v3598
    %4459 = vmatmul.mubr.bf16.gmra.mrb[0].mxu0 %v3597
    %v4460 = vpop.f32.mrb[0].mxu0
    %v4461 = vadd.f32 %v4418, %v4460
    %v4462 = vpop.f32.mrb[0].mxu0
    %v4463 = vadd.f32 %v4420, %v4462
    %v4464 = vpop.f32.mrb[0].mxu0
    %v4465 = vadd.f32 %v4422, %v4464
    %v4466 = vpop.f32.mrb[0].mxu0
    %v4467 = vadd.f32 %v4424, %v4466
    %4468 = vdwg.mxu0
    %4469 = vmatprep.subr.bf16.mxu0 %v4192
    %4470 = vmatpush1.bf16.msra.mxu0 %v4191
    %4471 = vmatprep.subr.bf16.mxu0 %v4194
    %4472 = vmatpush1.bf16.msra.mxu0 %v4193
    %4473 = vmatprep.subr.bf16.mxu0 %v4196
    %4474 = vmatpush1.bf16.msra.mxu0 %v4195
    %4475 = vmatprep.subr.bf16.mxu0 %v4198
    %4476 = vmatpush1.bf16.msra.mxu0 %v4197
    %4477 = vmatprep.subr.bf16.mxu0 %v4200
    %4478 = vmatpush1.bf16.msra.mxu0 %v4199
    %4479 = vmatprep.subr.bf16.mxu0 %v4202
    %4480 = vmatpush1.bf16.msra.mxu0 %v4201
    %4481 = vmatprep.subr.bf16.mxu0 %v4204
    %4482 = vmatpush1.bf16.msra.mxu0 %v4203
    %4483 = vmatprep.subr.bf16.mxu0 %v4206
    %4484 = vmatpush1.bf16.msra.mxu0 %v4205
    %4485 = vmatprep.subr.bf16.mxu0 %v4208
    %4486 = vmatpush1.bf16.msra.mxu0 %v4207
    %4487 = vmatprep.subr.bf16.mxu0 %v4210
    %4488 = vmatpush1.bf16.msra.mxu0 %v4209
    %4489 = vmatprep.subr.bf16.mxu0 %v4212
    %4490 = vmatpush1.bf16.msra.mxu0 %v4211
    %4491 = vmatprep.subr.bf16.mxu0 %v4214
    %4492 = vmatpush1.bf16.msra.mxu0 %v4213
    %4493 = vmatprep.subr.bf16.mxu0 %v4216
    %4494 = vmatpush1.bf16.msra.mxu0 %v4215
    %4495 = vmatprep.subr.bf16.mxu0 %v4218
    %4496 = vmatpush1.bf16.msra.mxu0 %v4217
    %4497 = vmatprep.subr.bf16.mxu0 %v4220
    %4498 = vmatpush1.bf16.msra.mxu0 %v4219
    %4499 = vmatprep.subr.bf16.mxu0 %v4222
    %4500 = vmatpush1.bf16.msra.mxu0 %v4221
    %4501 = vmatprep.mubr.bf16.mxu0 %v3600
    %4502 = vmatmul.mubr.bf16.gmra.mrb[0].mxu0 %v3599
    %v4503 = vpop.f32.mrb[0].mxu0
    %v4504 = vadd.f32 %v4461, %v4503
    %v4505 = vpop.f32.mrb[0].mxu0
    %v4506 = vadd.f32 %v4463, %v4505
    %v4507 = vpop.f32.mrb[0].mxu0
    %v4508 = vadd.f32 %v4465, %v4507
    %v4509 = vpop.f32.mrb[0].mxu0
    %v4510 = vadd.f32 %v4467, %v4509
    %4511 = vdwg.mxu0
    %4512 = vmatprep.subr.bf16.mxu0 %v4224
    %4513 = vmatpush1.bf16.msra.mxu0 %v4223
    %4514 = vmatprep.subr.bf16.mxu0 %v4226
    %4515 = vmatpush1.bf16.msra.mxu0 %v4225
    %4516 = vmatprep.subr.bf16.mxu0 %v4228
    %4517 = vmatpush1.bf16.msra.mxu0 %v4227
    %4518 = vmatprep.subr.bf16.mxu0 %v4230
    %4519 = vmatpush1.bf16.msra.mxu0 %v4229
    %4520 = vmatprep.subr.bf16.mxu0 %v4232
    %4521 = vmatpush1.bf16.msra.mxu0 %v4231
    %4522 = vmatprep.subr.bf16.mxu0 %v4234
    %4523 = vmatpush1.bf16.msra.mxu0 %v4233
    %4524 = vmatprep.subr.bf16.mxu0 %v4236
    %4525 = vmatpush1.bf16.msra.mxu0 %v4235
    %4526 = vmatprep.subr.bf16.mxu0 %v4238
    %4527 = vmatpush1.bf16.msra.mxu0 %v4237
    %4528 = vmatprep.subr.bf16.mxu0 %v4240
    %4529 = vmatpush1.bf16.msra.mxu0 %v4239
    %4530 = vmatprep.subr.bf16.mxu0 %v4242
    %4531 = vmatpush1.bf16.msra.mxu0 %v4241
    %4532 = vmatprep.subr.bf16.mxu0 %v4244
    %4533 = vmatpush1.bf16.msra.mxu0 %v4243
    %4534 = vmatprep.subr.bf16.mxu0 %v4246
    %4535 = vmatpush1.bf16.msra.mxu0 %v4245
    %4536 = vmatprep.subr.bf16.mxu0 %v4248
    %4537 = vmatpush1.bf16.msra.mxu0 %v4247
    %4538 = vmatprep.subr.bf16.mxu0 %v4250
    %4539 = vmatpush1.bf16.msra.mxu0 %v4249
    %4540 = vmatprep.subr.bf16.mxu0 %v4252
    %4541 = vmatpush1.bf16.msra.mxu0 %v4251
    %4542 = vmatprep.subr.bf16.mxu0 %v4254
    %4543 = vmatpush1.bf16.msra.mxu0 %v4253
    %4544 = vmatprep.mubr.bf16.mxu0 %v3602
    %4545 = vmatmul.mubr.bf16.gmra.mrb[0].mxu0 %v3601
    %v4546 = vpop.f32.mrb[0].mxu0
    %v4547 = vadd.f32 %v4504, %v4546
    %v4548 = vpop.f32.mrb[0].mxu0
    %v4549 = vadd.f32 %v4506, %v4548
    %v4550 = vpop.f32.mrb[0].mxu0
    %v4551 = vadd.f32 %v4508, %v4550
    %v4552 = vpop.f32.mrb[0].mxu0
    %v4553 = vadd.f32 %v4510, %v4552
    %4554 = vdwg.mxu0
    %v4555 = vmax.f32 %v4547, 0.0
    %v4556 = vmax.f32 %v4549, 0.0
    %v4557 = vmax.f32 %v4551, 0.0
    %v4558 = vmax.f32 %v4553, 0.0
    %v4559 = vpack.c.bf16 %v4557, %v4555
    %v4560 = vpack.c.bf16 %v4558, %v4556
    %v4561 = vld [vmem:[#allocation11] sm:$0xf]
    %v4562 = vld [vmem:[#allocation11 + $0x4] sm:$0xf]
    %v4563 = vld [vmem:[#allocation11 + $0x8] sm:$0xf]
    %v4564 = vld [vmem:[#allocation11 + $0xc] sm:$0xf]
    %v4565 = vld [vmem:[#allocation11 + $0x10] sm:$0xf]
    %v4566 = vld [vmem:[#allocation11 + $0x14] sm:$0xf]
    %v4567 = vld [vmem:[#allocation11 + $0x18] sm:$0xf]
    %v4568 = vld [vmem:[#allocation11 + $0x1c] sm:$0xf]
    %v4569 = vld [vmem:[#allocation11 + $0x20] sm:$0xf]
    %v4570 = vld [vmem:[#allocation11 + $0x24] sm:$0xf]
    %v4571 = vld [vmem:[#allocation11 + $0x28] sm:$0xf]
    %v4572 = vld [vmem:[#allocation11 + $0x2c] sm:$0xf]
    %v4573 = vld [vmem:[#allocation11 + $0x30] sm:$0xf]
    %v4574 = vld [vmem:[#allocation11 + $0x34] sm:$0xf]
    %v4575 = vld [vmem:[#allocation11 + $0x38] sm:$0xf]
    %v4576 = vld [vmem:[#allocation11 + $0x3c] sm:$0xf]
    %v4577 = vld [vmem:[#allocation11 + $0x40] sm:$0xf]
    %v4578 = vld [vmem:[#allocation11 + $0x44] sm:$0xf]
    %v4579 = vld [vmem:[#allocation11 + $0x48] sm:$0xf]
    %v4580 = vld [vmem:[#allocation11 + $0x4c] sm:$0xf]
    %v4581 = vld [vmem:[#allocation11 + $0x50] sm:$0xf]
    %v4582 = vld [vmem:[#allocation11 + $0x54] sm:$0xf]
    %v4583 = vld [vmem:[#allocation11 + $0x58] sm:$0xf]
    %v4584 = vld [vmem:[#allocation11 + $0x5c] sm:$0xf]
    %v4585 = vld [vmem:[#allocation11 + $0x60] sm:$0xf]
    %v4586 = vld [vmem:[#allocation11 + $0x64] sm:$0xf]
    %v4587 = vld [vmem:[#allocation11 + $0x68] sm:$0xf]
    %v4588 = vld [vmem:[#allocation11 + $0x6c] sm:$0xf]
    %v4589 = vld [vmem:[#allocation11 + $0x70] sm:$0xf]
    %v4590 = vld [vmem:[#allocation11 + $0x74] sm:$0xf]
    %v4591 = vld [vmem:[#allocation11 + $0x78] sm:$0xf]
    %v4592 = vld [vmem:[#allocation11 + $0x7c] sm:$0xf]
    %v4593 = vld [vmem:[#allocation13] sm:$0x1]
    %v4595 = vlaneseq
    %v4596 = vshrl.u32 %v4595, 7
    %v4597 = vsub.s32 0, %v4596
    %v4598 = vrot.slane %v4593, %v4597
    %v4632 = vunpack.c.l.b16 %v4561
    %v4633 = vunpack.c.l.b16 %v4562
    %v4634 = vunpack.c.l.b16 %v4563
    %v4635 = vunpack.c.l.b16 %v4564
    %v4636 = vunpack.c.l.b16 %v4565
    %v4637 = vunpack.c.l.b16 %v4566
    %v4638 = vunpack.c.l.b16 %v4567
    %v4639 = vunpack.c.l.b16 %v4568
    %v4640 = vunpack.c.l.b16 %v4569
    %v4641 = vunpack.c.l.b16 %v4570
    %v4642 = vunpack.c.l.b16 %v4571
    %v4643 = vunpack.c.l.b16 %v4572
    %v4644 = vunpack.c.l.b16 %v4573
    %v4645 = vunpack.c.l.b16 %v4574
    %v4646 = vunpack.c.l.b16 %v4575
    %v4647 = vunpack.c.l.b16 %v4576
    %v4648 = vunpack.c.l.b16 %v4577
    %v4649 = vunpack.c.l.b16 %v4578
    %v4650 = vunpack.c.l.b16 %v4579
    %v4651 = vunpack.c.l.b16 %v4580
    %v4652 = vunpack.c.l.b16 %v4581
    %v4653 = vunpack.c.l.b16 %v4582
    %v4654 = vunpack.c.l.b16 %v4583
    %v4655 = vunpack.c.l.b16 %v4584
    %v4656 = vunpack.c.l.b16 %v4585
    %v4657 = vunpack.c.l.b16 %v4586
    %v4658 = vunpack.c.l.b16 %v4587
    %v4659 = vunpack.c.l.b16 %v4588
    %v4660 = vunpack.c.l.b16 %v4589
    %v4661 = vunpack.c.l.b16 %v4590
    %v4662 = vunpack.c.l.b16 %v4591
    %v4663 = vunpack.c.l.b16 %v4592
    %v4664 = vpack.c.b16 %v4633, %v4632
    %v4665 = vpack.c.b16 %v4635, %v4634
    %v4666 = vpack.c.b16 %v4637, %v4636
    %v4667 = vpack.c.b16 %v4639, %v4638
    %v4668 = vpack.c.b16 %v4641, %v4640
    %v4669 = vpack.c.b16 %v4643, %v4642
    %v4670 = vpack.c.b16 %v4645, %v4644
    %v4671 = vpack.c.b16 %v4647, %v4646
    %v4672 = vpack.c.b16 %v4649, %v4648
    %v4673 = vpack.c.b16 %v4651, %v4650
    %v4674 = vpack.c.b16 %v4653, %v4652
    %v4675 = vpack.c.b16 %v4655, %v4654
    %v4676 = vpack.c.b16 %v4657, %v4656
    %v4677 = vpack.c.b16 %v4659, %v4658
    %v4678 = vpack.c.b16 %v4661, %v4660
    %v4679 = vpack.c.b16 %v4663, %v4662
    %4696 = vmatprep.subr.bf16.mxu0 0
    %4697 = vmatpush1.bf16.msra.mxu0 %v4664
    %4698 = vmatprep.subr.bf16.mxu0 0
    %4699 = vmatpush1.bf16.msra.mxu0 %v4665
    %4700 = vmatprep.subr.bf16.mxu0 0
    %4701 = vmatpush1.bf16.msra.mxu0 %v4666
    %4702 = vmatprep.subr.bf16.mxu0 0
    %4703 = vmatpush1.bf16.msra.mxu0 %v4667
    %4704 = vmatprep.subr.bf16.mxu0 0
    %4705 = vmatpush1.bf16.msra.mxu0 %v4668
    %4706 = vmatprep.subr.bf16.mxu0 0
    %4707 = vmatpush1.bf16.msra.mxu0 %v4669
    %4708 = vmatprep.subr.bf16.mxu0 0
    %4709 = vmatpush1.bf16.msra.mxu0 %v4670
    %4710 = vmatprep.subr.bf16.mxu0 0
    %4711 = vmatpush1.bf16.msra.mxu0 %v4671
    %4712 = vmatprep.subr.bf16.mxu0 0
    %4713 = vmatpush1.bf16.msra.mxu0 %v4672
    %4714 = vmatprep.subr.bf16.mxu0 0
    %4715 = vmatpush1.bf16.msra.mxu0 %v4673
    %4716 = vmatprep.subr.bf16.mxu0 0
    %4717 = vmatpush1.bf16.msra.mxu0 %v4674
    %4718 = vmatprep.subr.bf16.mxu0 0
    %4719 = vmatpush1.bf16.msra.mxu0 %v4675
    %4720 = vmatprep.subr.bf16.mxu0 0
    %4721 = vmatpush1.bf16.msra.mxu0 %v4676
    %4722 = vmatprep.subr.bf16.mxu0 0
    %4723 = vmatpush1.bf16.msra.mxu0 %v4677
    %4724 = vmatprep.subr.bf16.mxu0 0
    %4725 = vmatpush1.bf16.msra.mxu0 %v4678
    %4726 = vmatprep.subr.bf16.mxu0 0
    %4727 = vmatpush1.bf16.msra.mxu0 %v4679
    %4728 = vmatprep.mubr.bf16.mxu0 %v4560
    %4729 = vmatmul.mubr.bf16.gmra.mrb[0].mxu0 %v4559
    %v4730 = vpop.f32.mrb[0].mxu0
    %v4731 = vadd.f32 %v4598, %v4730
    %v4732 = vpop.f32.mrb[0].mxu0
    %v4733 = vpop.f32.mrb[0].mxu0
    %v4734 = vadd.f32 %v4598, %v4733
    %v4735 = vpop.f32.mrb[0].mxu0
    %4736 = vdwg.mxu0
    %v4737 = vpack.c.bf16 %v4734, %v4731
    %v4739 = vunpack.c.l.b16 %v4737
    %v4740 = vunpack.c.h.b16 %v4737
    %v4741 = vpack.c.b16 %v4739, %v4739
    %v4742 = vpack.c.b16 %v4740, %v4740
    %4745 = vst [vmem:[#allocation14] sm:$0xf] %v4741
    %4746 = vst [vmem:[#allocation14 + $0x4] sm:$0xf] %v4742
    // Predicated region
    $region58: #{tpu_custom_call.1} parent=1 // pred_check
      _
    $region59: #{tpu_custom_call.1} parent=1 // pred_check_branch
      %4748 = sbr.rel (0) target = $region61
    $region60: #{tpu_custom_call.1} parent=1 // pred_region
      %s4750 = ssub.s32 128, 128
      %4751 = vsyncadd [#allocation4], %s4750
      %s4752 = sshll.u32 [#allocation14], 4
      %s4753 = int_to_ptr.vmem [resolvable:$true] %s4752
      %4758 = dma.vmem_to_hbm [thread:$0]  %s4753, 128, %s7, [#allocation4], 64, 64, 4
    $region61: #{tpu_custom_call.1} parent=1 // pred_fallthru
      _
    // Predicated region
    $region62: #{tpu_custom_call.1} parent=1 // pred_check
      _
    $region63: #{tpu_custom_call.1} parent=1 // pred_check_branch
      %4760 = sbr.rel (0) target = $region65
    $region64: #{tpu_custom_call.1} parent=1 // pred_region
      %4761 = dma.done [#allocation4], 128
    $region65: #{tpu_custom_call.1} parent=1 // pred_fallthru
      _
    %4762 = vsyncpa [#allocation3], 1
    %4763 = vsyncpa [#allocation6], 1
    %4764 = vsyncpa [#allocation9], 1
    %4765 = vsyncpa [#allocation12], 1
    %4766 = vsyncpa [#allocation4], 1

</llo_original>
